<compile_context>
chip_gen: v6e
topology: v6e:2x2x1
jax: 0.10.0
libtpu: 0.0.40
codegen_flags: <defaults>
</compile_context>

<pallas_src>
import jax
import jax.numpy as jnp
from jax.experimental import pallas as pl
from jax.experimental.pallas import tpu as pltpu


# ---------------------------------------------------------------------------
# BN folding (eval mode): y = s*(conv(x)+b-mean)+beta  ==  conv_{w*s}(x) + b'
# ---------------------------------------------------------------------------
def _fold_bn(w, b, bn, eps=1e-5):
    gamma, beta, mean, var = bn
    s = gamma / jnp.sqrt(var + eps)
    return w * s, s * (b - mean) + beta          # w is (kh, kw, cin, cout)


# ---------------------------------------------------------------------------
# Fused whole-network kernel
# ---------------------------------------------------------------------------
def _make_fused_kernel(*, G, width, depth, H, W, Wp):
    W_RUN = W * G                                # rows per interior y-run
    SPAN_P0 = Wp + 1                             # first interior (y,x) position
    SPAN = ((H - 1) * Wp + W) * G                # rows of the contiguous interior span

    def kernel(patches_ref, w0_ref, b0_ref, wsec_ref, bsec_ref,
               fcw_ref, fcb_ref, out_ref, act_ref):
        # Zero the haloed activation scratch once.  Only interior row-runs are
        # ever written afterwards, so halo rows stay zero (no mask multiply).
        act_ref[...] = jnp.zeros_like(act_ref)

        # ---- initial block: composed 4x4/s4 conv (folded BN1+BN2) + ReLU ----
        # patches: (H*W*G, K_PAD) bf16 (K zero-padded to a lane-dense 128).
        y = jnp.dot(patches_ref[...], w0_ref[...],
                    preferred_element_type=jnp.float32)        # (H*W*G, width) f32
        y = jnp.maximum(y + b0_ref[...], 0.0)
        y_bf = y.astype(jnp.bfloat16)
        for h in range(H):                                     # interior-only writes
            dst = ((h + 1) * Wp + 1) * G
            act_ref[dst:dst + W_RUN, :] = y_bf[h * W_RUN:(h + 1) * W_RUN, :]

        fc_bases = [(h * W + w) * G for h in range(H) for w in range(W)]

        # ---- secondary ConvLayers: 3x3 conv (pad=1) + folded BN + ReLU ------
        # Per layer: 3 matmuls of K=3*width (one per kernel row dy); the LHS of
        # each is the lane-concat of 3 sublane-aligned, statically shifted row
        # windows of the bf16 scratch.  f32 accumulation, one cast per layer.
        for d in range(depth):
            parts = []
            for j in range(3):                                 # dy = j - 1
                base = (SPAN_P0 + (j - 1) * Wp) * G
                lhs = jnp.concatenate(
                    [act_ref[base - G:base - G + SPAN, :],     # dx = -1
                     act_ref[base:base + SPAN, :],             # dx =  0
                     act_ref[base + G:base + G + SPAN, :]],    # dx = +1
                    axis=1)                                    # (SPAN, 3*width) bf16
                parts.append(jnp.dot(lhs, wsec_ref[d, j, :, :],
                                     preferred_element_type=jnp.float32))
            y = jnp.maximum(parts[0] + parts[1] + parts[2] + bsec_ref[d, :, :], 0.0)
            y_bf = y.astype(jnp.bfloat16)
            for h in range(H):                                 # interior-only writes
                dst = ((h + 1) * Wp + 1) * G
                src = h * Wp * G
                act_ref[dst:dst + W_RUN, :] = y_bf[src:src + W_RUN, :]
            fc_bases = [(h * Wp + w) * G for h in range(H) for w in range(W)]

        # ---- fc: consume the last activation (still live) in row layout -----
        # fc weights were permuted to (h, w, c)-chunk order and zero-padded to
        # 128 classes at prepare time; output is a dense (G, 128) tile, the
        # real (batch, num_classes) logits are sliced outside the kernel.
        chunks = [y[b:b + G, :] for b in fc_bases]             # 16 x (G, width)
        x_fc = jnp.concatenate(chunks, axis=1).astype(jnp.bfloat16)  # (G, H*W*width)
        out_ref[...] = (jnp.dot(x_fc, fcw_ref[...],
                                preferred_element_type=jnp.float32)
                        + fcb_ref[...])

    return kernel


# ---------------------------------------------------------------------------
# Build the fused forward: one-time folding / composition / permutation of the
# parameters, then a single pallas_call.
# ---------------------------------------------------------------------------
def build_conv_arch_forward(params, *, batch, input_channel_number,
                            input_image_width, num_classes, depth, width):
    cin = input_channel_number
    assert input_image_width >= 4
    H = W = input_image_width // 4               # spatial size after initial block
    Hp, Wp = H + 2, W + 2                        # +1 halo ring for the 3x3 convs
    PP = Hp * Wp
    G = 16                                       # rows per (y,x) group (bf16 sublane tile)
    assert batch <= G, "batch must fit in one aligned row group"
    k0 = 16 * cin                                # contraction of composed 4x4 conv
    K_PAD = max(128, -(-k0 // 128) * 128)        # lane-dense padded contraction
    C_PAD = max(128, -(-num_classes // 128) * 128)  # lane-dense padded classes

    # -- compose conv1+BN1 with conv2+BN2 into one 4x4 stride-4 affine conv --
    w1, b1 = _fold_bn(params["c1_w"], params["c1_b"], params["bn1"])
    w2, b2 = _fold_bn(params["c2_w"], params["c2_b"], params["bn2"])
    w0 = jnp.einsum("abxc,ijco->iajbxo", w1, w2).reshape(4, 4, cin, width)
    b0 = jnp.einsum("ijco,c->o", w2, b1) + b2
    w0_mat = jnp.zeros((K_PAD, width), jnp.float32).at[:k0, :].set(
        w0.reshape(k0, width)).astype(jnp.bfloat16)
    b0_row = b0.reshape(1, width).astype(jnp.float32)

    # -- secondary layers: fold BN, per-dy (3*width, width) K-concat weights --
    ws, bs = [], []
    for layer in params["secondary"]:
        w, b = _fold_bn(layer["w"], layer["b"], layer["bn"])   # (3,3,width,width) HWIO
        ws.append(w.reshape(3, 3 * width, width))              # rows ordered (dx, cin)
        bs.append(b.reshape(1, width))
    if depth == 0:                               # dummy (never read); keeps specs static
        ws.append(jnp.zeros((3, 3 * width, width), jnp.float32))
        bs.append(jnp.zeros((1, width), jnp.float32))
    w_sec = jnp.stack(ws).astype(jnp.bfloat16)                 # (d, 3, 3*width, width)
    b_sec = jnp.stack(bs).astype(jnp.float32)                  # (d, 1, width)
    d_stack = w_sec.shape[0]

    # -- fc: torch flattens NCHW (c, h, w); permute rows once to the kernel's
    #    (h, w, c) chunk order and zero-pad classes to a lane-dense 128 --------
    fc_w = params["fc_w"].reshape(width, H, W, num_classes)
    fc_w = jnp.transpose(fc_w, (1, 2, 0, 3)).reshape(H * W * width, num_classes)
    fc_w_pad = jnp.zeros((H * W * width, C_PAD), jnp.float32).at[:, :num_classes].set(
        fc_w).astype(jnp.bfloat16)
    fc_b_pad = jnp.zeros((1, C_PAD), jnp.float32).at[:, :num_classes].set(
        params["fc_b"].reshape(1, num_classes))

    kernel = _make_fused_kernel(G=G, width=width, depth=depth, H=H, W=W, Wp=Wp)

    fused = pl.pallas_call(
        kernel,
        out_shape=jax.ShapeDtypeStruct((G, C_PAD), jnp.float32),
        # Everything fits in VMEM (a few hundred KiB): one fused step.
        grid=(1,),
        in_specs=[
            pl.BlockSpec((H * W * G, K_PAD), lambda i: (0, 0)),       # s2d patches
            pl.BlockSpec((K_PAD, width), lambda i: (0, 0)),           # composed conv w
            pl.BlockSpec((1, width), lambda i: (0, 0)),               # composed conv b
            pl.BlockSpec((d_stack, 3, 3 * width, width), lambda i: (0, 0, 0, 0)),
            pl.BlockSpec((d_stack, 1, width), lambda i: (0, 0, 0)),
            pl.BlockSpec((H * W * width, C_PAD), lambda i: (0, 0)),   # fc w (padded)
            pl.BlockSpec((1, C_PAD), lambda i: (0, 0)),               # fc b (padded)
        ],
        out_specs=pl.BlockSpec((G, C_PAD), lambda i: (0, 0)),
        scratch_shapes=[pltpu.VMEM((PP * G, width), jnp.bfloat16)],   # haloed activation
        compiler_params=pltpu.CompilerParams(
            dimension_semantics=("arbitrary",)),
    )

    def forward(x_nchw):
        # Layout plumbing only (tiny input): space-to-depth for the composed
        # 4x4/s4 conv, rows ordered (y, x, group) with the batch group padded
        # to G=16 rows and the contraction K zero-padded to a lane-dense 128.
        x = x_nchw[:, :, :4 * H, :4 * W].astype(jnp.float32)
        xr = x.reshape(batch, cin, H, 4, W, 4)                 # (b, c, ho, kh, wo, kw)
        p = jnp.transpose(xr, (2, 4, 0, 3, 5, 1))              # (ho, wo, b, kh, kw, c)
        p = p.reshape(H, W, batch, k0)
        p = jnp.pad(p, ((0, 0), (0, 0), (0, G - batch), (0, K_PAD - k0)))
        patches = p.reshape(H * W * G, K_PAD).astype(jnp.bfloat16)
        out = fused(patches, w0_mat, b0_row, w_sec, b_sec, fc_w_pad, fc_b_pad)
        return out[:batch, :num_classes]                       # drop pad rows / classes

    return jax.jit(forward)


# ---------------------------------------------------------------------------
# Pure-JAX reference (eval-mode BN), used only for a numerical cross-check.
# ---------------------------------------------------------------------------
def conv_arch_reference(x_nchw, params, eps=1e-5):
    def bn(y, bnp):
        g, beta, m, v = bnp
        return (y - m) * (g / jnp.sqrt(v + eps)) + beta

    def conv(y, w, b, stride, padding):
        out = jax.lax.conv_general_dilated(
            y, w, window_strides=(stride, stride), padding=padding,
            dimension_numbers=("NHWC", "HWIO", "NHWC"))
        return out + b

    x = jnp.transpose(x_nchw, (0, 2, 3, 1)).astype(jnp.float32)
    x = bn(conv(x, params["c1_w"], params["c1_b"], 2, "VALID"), params["bn1"])
    x = bn(conv(x, params["c2_w"], params["c2_b"], 2, "VALID"), params["bn2"])
    x = jnp.maximum(x, 0.0)
    for layer in params["secondary"]:
        x = jnp.maximum(bn(conv(x, layer["w"], layer["b"], 1, "SAME"),
                           layer["bn"]), 0.0)
    b = x.shape[0]
    x_flat = jnp.transpose(x, (0, 3, 1, 2)).reshape(b, -1)   # NCHW flatten (torch .view)
    return x_flat @ params["fc_w"] + params["fc_b"]


# ---------------------------------------------------------------------------
# Deterministic parameter construction (mirrors ConvArch.__init__ shapes)
# ---------------------------------------------------------------------------
def make_bn_params(key, c):
    k1, k2, k3, k4 = jax.random.split(key, 4)
    gamma = 1.0 + 0.1 * jax.random.normal(k1, (c,), jnp.float32)
    beta = 0.1 * jax.random.normal(k2, (c,), jnp.float32)
    mean = 0.1 * jax.random.normal(k3, (c,), jnp.float32)
    var = jax.random.uniform(k4, (c,), jnp.float32, 0.5, 1.5)
    return (gamma, beta, mean, var)


def init_conv_arch_params(key, in_ch, img_w, num_classes, depth, width):
    keys = jax.random.split(key, 8 + 2 * depth)
    s = 0.05
    params = {}
    params["c1_w"] = s * jax.random.normal(keys[0], (2, 2, in_ch, width), jnp.float32)
    params["c1_b"] = s * jax.random.normal(keys[1], (width,), jnp.float32)
    params["bn1"] = make_bn_params(keys[2], width)
    params["c2_w"] = s * jax.random.normal(keys[3], (2, 2, width, width), jnp.float32)
    params["c2_b"] = s * jax.random.normal(keys[4], (width,), jnp.float32)
    params["bn2"] = make_bn_params(keys[5], width)
    sec = []
    for d in range(depth):
        kw, kb = jax.random.split(keys[8 + 2 * d], 2)
        sec.append({
            "w": s * jax.random.normal(kw, (3, 3, width, width), jnp.float32),
            "b": s * jax.random.normal(kb, (width,), jnp.float32),
            "bn": make_bn_params(keys[8 + 2 * d + 1], width),
        })
    params["secondary"] = sec
    fc_in = width * (img_w // 4) ** 2
    params["fc_w"] = s * jax.random.normal(keys[6], (fc_in, num_classes), jnp.float32)
    params["fc_b"] = s * jax.random.normal(keys[7], (num_classes,), jnp.float32)
    return params


if __name__ == "__main__":
    # Shapes consistent with the module:
    # input_channel_number=4, input_image_width=16, num_classes=10, depth=2, width=32
    B, C_IN, IMG_W = 2, 4, 16
    NUM_CLASSES, DEPTH, WIDTH = 10, 2, 32

    key = jax.random.PRNGKey(0)
    k_params, k_x = jax.random.split(key)
    params = init_conv_arch_params(k_params, C_IN, IMG_W, NUM_CLASSES, DEPTH, WIDTH)
    x = jax.random.normal(k_x, (B, C_IN, IMG_W, IMG_W), jnp.float32)  # NCHW input

    forward = build_conv_arch_forward(
        params, batch=B, input_channel_number=C_IN, input_image_width=IMG_W,
        num_classes=NUM_CLASSES, depth=DEPTH, width=WIDTH)

    out = jax.block_until_ready(forward(x))
    assert out.shape == (B, NUM_CLASSES), out.shape
    assert bool(jnp.all(jnp.isfinite(out)))

    # Cross-check against a pure-JAX reference (bf16 MXU operands => loose tol).
    ref = conv_arch_reference(x, params)
    err = float(jnp.max(jnp.abs(out - ref)))
    assert err < 2e-2, f"kernel deviates from reference: max |diff| = {err}"
    print("KERNEL_OK")
</pallas_src>

<mosaic_0001>
module attributes {stable_mosaic.version = 11 : i64} {
  func.func @kernel(%arg0: i32, %arg1: memref<256x128xbf16, #tpu.memory_space<vmem>>, %arg2: memref<128x32xbf16, #tpu.memory_space<vmem>>, %arg3: memref<1x32xf32, #tpu.memory_space<vmem>>, %arg4: memref<2x3x96x32xbf16, #tpu.memory_space<vmem>>, %arg5: memref<2x1x32xf32, #tpu.memory_space<vmem>>, %arg6: memref<512x128xbf16, #tpu.memory_space<vmem>>, %arg7: memref<1x128xf32, #tpu.memory_space<vmem>>, %arg8: memref<16x128xf32, #tpu.memory_space<vmem>>, %arg9: memref<576x32xbf16, #tpu.memory_space<vmem>>) attributes {dimension_semantics = [#tpu.dimension_semantics<arbitrary>], iteration_bounds = array<i64: 1>, scalar_prefetch = 0 : i64, scratch_operands = 1 : i64, tpu.core_type = #tpu.core_type<tc>, window_params = [{pipeline_mode = #tpu.pipeline_mode<synchronous>, transform_indices = @transform_0, window_bounds = array<i64: 256, 128>}, {pipeline_mode = #tpu.pipeline_mode<synchronous>, transform_indices = @transform_1, window_bounds = array<i64: 128, 32>}, {pipeline_mode = #tpu.pipeline_mode<synchronous>, transform_indices = @transform_2, window_bounds = array<i64: 1, 32>}, {pipeline_mode = #tpu.pipeline_mode<synchronous>, transform_indices = @transform_3, window_bounds = array<i64: 2, 3, 96, 32>}, {pipeline_mode = #tpu.pipeline_mode<synchronous>, transform_indices = @transform_4, window_bounds = array<i64: 2, 1, 32>}, {pipeline_mode = #tpu.pipeline_mode<synchronous>, transform_indices = @transform_5, window_bounds = array<i64: 512, 128>}, {pipeline_mode = #tpu.pipeline_mode<synchronous>, transform_indices = @transform_6, window_bounds = array<i64: 1, 128>}, {pipeline_mode = #tpu.pipeline_mode<synchronous>, transform_indices = @transform_7, window_bounds = array<i64: 16, 128>}]} {
    %cst = arith.constant 0.000000e+00 : bf16
    %0 = vector.broadcast %cst : bf16 to vector<576x32xbf16>
    %c0 = arith.constant 0 : index
    %c0_0 = arith.constant 0 : index
    %1 = vector.load %arg9[%c0, %c0_0] : memref<576x32xbf16, #tpu.memory_space<vmem>>, vector<576x32xbf16>
    tpu.vector_store %arg9[%c0, %c0_0], %0 {strides = array<i32>} : memref<576x32xbf16, #tpu.memory_space<vmem>>, vector<576x32xbf16>,
    %c0_1 = arith.constant 0 : index
    %c0_2 = arith.constant 0 : index
    %2 = vector.load %arg1[%c0_1, %c0_2] : memref<256x128xbf16, #tpu.memory_space<vmem>>, vector<256x128xbf16>
    %c0_3 = arith.constant 0 : index
    %c0_4 = arith.constant 0 : index
    %3 = vector.load %arg2[%c0_3, %c0_4] : memref<128x32xbf16, #tpu.memory_space<vmem>>, vector<128x32xbf16>
    %cst_5 = arith.constant dense<0.000000e+00> : vector<256x32xf32>
    %4 = tpu.matmul %2, %3, %cst_5 {dimension_numbers = #tpu.dot_dimension_numbers<[1], [0], [0], [1], [0, 0, 1, 1], [], []>} : vector<256x128xbf16>, vector<128x32xbf16>, vector<256x32xf32> -> vector<256x32xf32>
    %c0_6 = arith.constant 0 : index
    %c0_7 = arith.constant 0 : index
    %5 = vector.load %arg3[%c0_6, %c0_7] : memref<1x32xf32, #tpu.memory_space<vmem>>, vector<1x32xf32>
    %6 = vector.broadcast %5 : vector<1x32xf32> to vector<256x32xf32>
    %7 = arith.addf %4, %6 : vector<256x32xf32>
    %cst_8 = arith.constant 0.000000e+00 : f32
    %8 = vector.broadcast %cst_8 : f32 to vector<256x32xf32>
    %9 = arith.maximumf %7, %8 : vector<256x32xf32>
    %10 = arith.truncf %9 : vector<256x32xf32> to vector<256x32xbf16>
    %11 = vector.extract_strided_slice %10 {offsets = [0, 0], sizes = [64, 32], strides = [1, 1]} : vector<256x32xbf16> to vector<64x32xbf16>
    %c112 = arith.constant 112 : index
    %c0_9 = arith.constant 0 : index
    %12 = vector.load %arg9[%c112, %c0_9] : memref<576x32xbf16, #tpu.memory_space<vmem>>, vector<64x32xbf16>
    tpu.vector_store %arg9[%c112, %c0_9], %11 {strides = array<i32>} : memref<576x32xbf16, #tpu.memory_space<vmem>>, vector<64x32xbf16>,
    %13 = vector.extract_strided_slice %10 {offsets = [64, 0], sizes = [64, 32], strides = [1, 1]} : vector<256x32xbf16> to vector<64x32xbf16>
    %c208 = arith.constant 208 : index
    %c0_10 = arith.constant 0 : index
    %14 = vector.load %arg9[%c208, %c0_10] : memref<576x32xbf16, #tpu.memory_space<vmem>>, vector<64x32xbf16>
    tpu.vector_store %arg9[%c208, %c0_10], %13 {strides = array<i32>} : memref<576x32xbf16, #tpu.memory_space<vmem>>, vector<64x32xbf16>,
    %15 = vector.extract_strided_slice %10 {offsets = [128, 0], sizes = [64, 32], strides = [1, 1]} : vector<256x32xbf16> to vector<64x32xbf16>
    %c304 = arith.constant 304 : index
    %c0_11 = arith.constant 0 : index
    %16 = vector.load %arg9[%c304, %c0_11] : memref<576x32xbf16, #tpu.memory_space<vmem>>, vector<64x32xbf16>
    tpu.vector_store %arg9[%c304, %c0_11], %15 {strides = array<i32>} : memref<576x32xbf16, #tpu.memory_space<vmem>>, vector<64x32xbf16>,
    %17 = vector.extract_strided_slice %10 {offsets = [192, 0], sizes = [64, 32], strides = [1, 1]} : vector<256x32xbf16> to vector<64x32xbf16>
    %c400 = arith.constant 400 : index
    %c0_12 = arith.constant 0 : index
    %18 = vector.load %arg9[%c400, %c0_12] : memref<576x32xbf16, #tpu.memory_space<vmem>>, vector<64x32xbf16>
    tpu.vector_store %arg9[%c400, %c0_12], %17 {strides = array<i32>} : memref<576x32xbf16, #tpu.memory_space<vmem>>, vector<64x32xbf16>,
    %c0_13 = arith.constant 0 : index
    %c0_14 = arith.constant 0 : index
    %19 = vector.load %arg9[%c0_13, %c0_14] : memref<576x32xbf16, #tpu.memory_space<vmem>>, vector<352x32xbf16>
    %c16 = arith.constant 16 : index
    %c0_15 = arith.constant 0 : index
    %20 = vector.load %arg9[%c16, %c0_15] : memref<576x32xbf16, #tpu.memory_space<vmem>>, vector<352x32xbf16>
    %c32 = arith.constant 32 : index
    %c0_16 = arith.constant 0 : index
    %21 = vector.load %arg9[%c32, %c0_16] : memref<576x32xbf16, #tpu.memory_space<vmem>>, vector<352x32xbf16>
    %22 = tpu.concatenate %19, %20, %21 in 1 : vector<352x32xbf16>, vector<352x32xbf16>, vector<352x32xbf16> -> vector<352x96xbf16>
    %c0_17 = arith.constant 0 : index
    %c0_18 = arith.constant 0 : index
    %c0_19 = arith.constant 0 : index
    %c0_20 = arith.constant 0 : index
    %23 = vector.load %arg4[%c0_17, %c0_18, %c0_19, %c0_20] : memref<2x3x96x32xbf16, #tpu.memory_space<vmem>>, vector<1x1x96x32xbf16>
    %24 = vector.shape_cast %23 : vector<1x1x96x32xbf16> to vector<96x32xbf16>
    %cst_21 = arith.constant dense<0.000000e+00> : vector<352x32xf32>
    %25 = tpu.matmul %22, %24, %cst_21 {dimension_numbers = #tpu.dot_dimension_numbers<[1], [0], [0], [1], [0, 0, 1, 1], [], []>} : vector<352x96xbf16>, vector<96x32xbf16>, vector<352x32xf32> -> vector<352x32xf32>
    %c96 = arith.constant 96 : index
    %c0_22 = arith.constant 0 : index
    %26 = vector.load %arg9[%c96, %c0_22] : memref<576x32xbf16, #tpu.memory_space<vmem>>, vector<352x32xbf16>
    %c112_23 = arith.constant 112 : index
    %c0_24 = arith.constant 0 : index
    %27 = vector.load %arg9[%c112_23, %c0_24] : memref<576x32xbf16, #tpu.memory_space<vmem>>, vector<352x32xbf16>
    %c128 = arith.constant 128 : index
    %c0_25 = arith.constant 0 : index
    %28 = vector.load %arg9[%c128, %c0_25] : memref<576x32xbf16, #tpu.memory_space<vmem>>, vector<352x32xbf16>
    %29 = tpu.concatenate %26, %27, %28 in 1 : vector<352x32xbf16>, vector<352x32xbf16>, vector<352x32xbf16> -> vector<352x96xbf16>
    %c0_26 = arith.constant 0 : index
    %c1 = arith.constant 1 : index
    %c0_27 = arith.constant 0 : index
    %c0_28 = arith.constant 0 : index
    %30 = vector.load %arg4[%c0_26, %c1, %c0_27, %c0_28] : memref<2x3x96x32xbf16, #tpu.memory_space<vmem>>, vector<1x1x96x32xbf16>
    %31 = vector.shape_cast %30 : vector<1x1x96x32xbf16> to vector<96x32xbf16>
    %cst_29 = arith.constant dense<0.000000e+00> : vector<352x32xf32>
    %32 = tpu.matmul %29, %31, %cst_29 {dimension_numbers = #tpu.dot_dimension_numbers<[1], [0], [0], [1], [0, 0, 1, 1], [], []>} : vector<352x96xbf16>, vector<96x32xbf16>, vector<352x32xf32> -> vector<352x32xf32>
    %c192 = arith.constant 192 : index
    %c0_30 = arith.constant 0 : index
    %33 = vector.load %arg9[%c192, %c0_30] : memref<576x32xbf16, #tpu.memory_space<vmem>>, vector<352x32xbf16>
    %c208_31 = arith.constant 208 : index
    %c0_32 = arith.constant 0 : index
    %34 = vector.load %arg9[%c208_31, %c0_32] : memref<576x32xbf16, #tpu.memory_space<vmem>>, vector<352x32xbf16>
    %c224 = arith.constant 224 : index
    %c0_33 = arith.constant 0 : index
    %35 = vector.load %arg9[%c224, %c0_33] : memref<576x32xbf16, #tpu.memory_space<vmem>>, vector<352x32xbf16>
    %36 = tpu.concatenate %33, %34, %35 in 1 : vector<352x32xbf16>, vector<352x32xbf16>, vector<352x32xbf16> -> vector<352x96xbf16>
    %c0_34 = arith.constant 0 : index
    %c2 = arith.constant 2 : index
    %c0_35 = arith.constant 0 : index
    %c0_36 = arith.constant 0 : index
    %37 = vector.load %arg4[%c0_34, %c2, %c0_35, %c0_36] : memref<2x3x96x32xbf16, #tpu.memory_space<vmem>>, vector<1x1x96x32xbf16>
    %38 = vector.shape_cast %37 : vector<1x1x96x32xbf16> to vector<96x32xbf16>
    %cst_37 = arith.constant dense<0.000000e+00> : vector<352x32xf32>
    %39 = tpu.matmul %36, %38, %cst_37 {dimension_numbers = #tpu.dot_dimension_numbers<[1], [0], [0], [1], [0, 0, 1, 1], [], []>} : vector<352x96xbf16>, vector<96x32xbf16>, vector<352x32xf32> -> vector<352x32xf32>
    %40 = arith.addf %25, %32 : vector<352x32xf32>
    %41 = arith.addf %40, %39 : vector<352x32xf32>
    %c0_38 = arith.constant 0 : index
    %c0_39 = arith.constant 0 : index
    %c0_40 = arith.constant 0 : index
    %42 = vector.load %arg5[%c0_38, %c0_39, %c0_40] : memref<2x1x32xf32, #tpu.memory_space<vmem>>, vector<1x1x32xf32>
    %43 = vector.shape_cast %42 : vector<1x1x32xf32> to vector<1x32xf32>
    %44 = vector.broadcast %43 : vector<1x32xf32> to vector<352x32xf32>
    %45 = arith.addf %41, %44 : vector<352x32xf32>
    %cst_41 = arith.constant 0.000000e+00 : f32
    %46 = vector.broadcast %cst_41 : f32 to vector<352x32xf32>
    %47 = arith.maximumf %45, %46 : vector<352x32xf32>
    %48 = arith.truncf %47 : vector<352x32xf32> to vector<352x32xbf16>
    %49 = vector.extract_strided_slice %48 {offsets = [0, 0], sizes = [64, 32], strides = [1, 1]} : vector<352x32xbf16> to vector<64x32xbf16>
    %c112_42 = arith.constant 112 : index
    %c0_43 = arith.constant 0 : index
    %50 = vector.load %arg9[%c112_42, %c0_43] : memref<576x32xbf16, #tpu.memory_space<vmem>>, vector<64x32xbf16>
    tpu.vector_store %arg9[%c112_42, %c0_43], %49 {strides = array<i32>} : memref<576x32xbf16, #tpu.memory_space<vmem>>, vector<64x32xbf16>,
    %51 = vector.extract_strided_slice %48 {offsets = [96, 0], sizes = [64, 32], strides = [1, 1]} : vector<352x32xbf16> to vector<64x32xbf16>
    %c208_44 = arith.constant 208 : index
    %c0_45 = arith.constant 0 : index
    %52 = vector.load %arg9[%c208_44, %c0_45] : memref<576x32xbf16, #tpu.memory_space<vmem>>, vector<64x32xbf16>
    tpu.vector_store %arg9[%c208_44, %c0_45], %51 {strides = array<i32>} : memref<576x32xbf16, #tpu.memory_space<vmem>>, vector<64x32xbf16>,
    %53 = vector.extract_strided_slice %48 {offsets = [192, 0], sizes = [64, 32], strides = [1, 1]} : vector<352x32xbf16> to vector<64x32xbf16>
    %c304_46 = arith.constant 304 : index
    %c0_47 = arith.constant 0 : index
    %54 = vector.load %arg9[%c304_46, %c0_47] : memref<576x32xbf16, #tpu.memory_space<vmem>>, vector<64x32xbf16>
    tpu.vector_store %arg9[%c304_46, %c0_47], %53 {strides = array<i32>} : memref<576x32xbf16, #tpu.memory_space<vmem>>, vector<64x32xbf16>,
    %55 = vector.extract_strided_slice %48 {offsets = [288, 0], sizes = [64, 32], strides = [1, 1]} : vector<352x32xbf16> to vector<64x32xbf16>
    %c400_48 = arith.constant 400 : index
    %c0_49 = arith.constant 0 : index
    %56 = vector.load %arg9[%c400_48, %c0_49] : memref<576x32xbf16, #tpu.memory_space<vmem>>, vector<64x32xbf16>
    tpu.vector_store %arg9[%c400_48, %c0_49], %55 {strides = array<i32>} : memref<576x32xbf16, #tpu.memory_space<vmem>>, vector<64x32xbf16>,
    %c0_50 = arith.constant 0 : index
    %c0_51 = arith.constant 0 : index
    %57 = vector.load %arg9[%c0_50, %c0_51] : memref<576x32xbf16, #tpu.memory_space<vmem>>, vector<352x32xbf16>
    %c16_52 = arith.constant 16 : index
    %c0_53 = arith.constant 0 : index
    %58 = vector.load %arg9[%c16_52, %c0_53] : memref<576x32xbf16, #tpu.memory_space<vmem>>, vector<352x32xbf16>
    %c32_54 = arith.constant 32 : index
    %c0_55 = arith.constant 0 : index
    %59 = vector.load %arg9[%c32_54, %c0_55] : memref<576x32xbf16, #tpu.memory_space<vmem>>, vector<352x32xbf16>
    %60 = tpu.concatenate %57, %58, %59 in 1 : vector<352x32xbf16>, vector<352x32xbf16>, vector<352x32xbf16> -> vector<352x96xbf16>
    %c1_56 = arith.constant 1 : index
    %c0_57 = arith.constant 0 : index
    %c0_58 = arith.constant 0 : index
    %c0_59 = arith.constant 0 : index
    %61 = vector.load %arg4[%c1_56, %c0_57, %c0_58, %c0_59] : memref<2x3x96x32xbf16, #tpu.memory_space<vmem>>, vector<1x1x96x32xbf16>
    %62 = vector.shape_cast %61 : vector<1x1x96x32xbf16> to vector<96x32xbf16>
    %cst_60 = arith.constant dense<0.000000e+00> : vector<352x32xf32>
    %63 = tpu.matmul %60, %62, %cst_60 {dimension_numbers = #tpu.dot_dimension_numbers<[1], [0], [0], [1], [0, 0, 1, 1], [], []>} : vector<352x96xbf16>, vector<96x32xbf16>, vector<352x32xf32> -> vector<352x32xf32>
    %c96_61 = arith.constant 96 : index
    %c0_62 = arith.constant 0 : index
    %64 = vector.load %arg9[%c96_61, %c0_62] : memref<576x32xbf16, #tpu.memory_space<vmem>>, vector<352x32xbf16>
    %c112_63 = arith.constant 112 : index
    %c0_64 = arith.constant 0 : index
    %65 = vector.load %arg9[%c112_63, %c0_64] : memref<576x32xbf16, #tpu.memory_space<vmem>>, vector<352x32xbf16>
    %c128_65 = arith.constant 128 : index
    %c0_66 = arith.constant 0 : index
    %66 = vector.load %arg9[%c128_65, %c0_66] : memref<576x32xbf16, #tpu.memory_space<vmem>>, vector<352x32xbf16>
    %67 = tpu.concatenate %64, %65, %66 in 1 : vector<352x32xbf16>, vector<352x32xbf16>, vector<352x32xbf16> -> vector<352x96xbf16>
    %c1_67 = arith.constant 1 : index
    %c1_68 = arith.constant 1 : index
    %c0_69 = arith.constant 0 : index
    %c0_70 = arith.constant 0 : index
    %68 = vector.load %arg4[%c1_67, %c1_68, %c0_69, %c0_70] : memref<2x3x96x32xbf16, #tpu.memory_space<vmem>>, vector<1x1x96x32xbf16>
    %69 = vector.shape_cast %68 : vector<1x1x96x32xbf16> to vector<96x32xbf16>
    %cst_71 = arith.constant dense<0.000000e+00> : vector<352x32xf32>
    %70 = tpu.matmul %67, %69, %cst_71 {dimension_numbers = #tpu.dot_dimension_numbers<[1], [0], [0], [1], [0, 0, 1, 1], [], []>} : vector<352x96xbf16>, vector<96x32xbf16>, vector<352x32xf32> -> vector<352x32xf32>
    %c192_72 = arith.constant 192 : index
    %c0_73 = arith.constant 0 : index
    %71 = vector.load %arg9[%c192_72, %c0_73] : memref<576x32xbf16, #tpu.memory_space<vmem>>, vector<352x32xbf16>
    %c208_74 = arith.constant 208 : index
    %c0_75 = arith.constant 0 : index
    %72 = vector.load %arg9[%c208_74, %c0_75] : memref<576x32xbf16, #tpu.memory_space<vmem>>, vector<352x32xbf16>
    %c224_76 = arith.constant 224 : index
    %c0_77 = arith.constant 0 : index
    %73 = vector.load %arg9[%c224_76, %c0_77] : memref<576x32xbf16, #tpu.memory_space<vmem>>, vector<352x32xbf16>
    %74 = tpu.concatenate %71, %72, %73 in 1 : vector<352x32xbf16>, vector<352x32xbf16>, vector<352x32xbf16> -> vector<352x96xbf16>
    %c1_78 = arith.constant 1 : index
    %c2_79 = arith.constant 2 : index
    %c0_80 = arith.constant 0 : index
    %c0_81 = arith.constant 0 : index
    %75 = vector.load %arg4[%c1_78, %c2_79, %c0_80, %c0_81] : memref<2x3x96x32xbf16, #tpu.memory_space<vmem>>, vector<1x1x96x32xbf16>
    %76 = vector.shape_cast %75 : vector<1x1x96x32xbf16> to vector<96x32xbf16>
    %cst_82 = arith.constant dense<0.000000e+00> : vector<352x32xf32>
    %77 = tpu.matmul %74, %76, %cst_82 {dimension_numbers = #tpu.dot_dimension_numbers<[1], [0], [0], [1], [0, 0, 1, 1], [], []>} : vector<352x96xbf16>, vector<96x32xbf16>, vector<352x32xf32> -> vector<352x32xf32>
    %78 = arith.addf %63, %70 : vector<352x32xf32>
    %79 = arith.addf %78, %77 : vector<352x32xf32>
    %c1_83 = arith.constant 1 : index
    %c0_84 = arith.constant 0 : index
    %c0_85 = arith.constant 0 : index
    %80 = vector.load %arg5[%c1_83, %c0_84, %c0_85] : memref<2x1x32xf32, #tpu.memory_space<vmem>>, vector<1x1x32xf32>
    %81 = vector.shape_cast %80 : vector<1x1x32xf32> to vector<1x32xf32>
    %82 = vector.broadcast %81 : vector<1x32xf32> to vector<352x32xf32>
    %83 = arith.addf %79, %82 : vector<352x32xf32>
    %cst_86 = arith.constant 0.000000e+00 : f32
    %84 = vector.broadcast %cst_86 : f32 to vector<352x32xf32>
    %85 = arith.maximumf %83, %84 : vector<352x32xf32>
    %86 = arith.truncf %85 : vector<352x32xf32> to vector<352x32xbf16>
    %87 = vector.extract_strided_slice %86 {offsets = [0, 0], sizes = [64, 32], strides = [1, 1]} : vector<352x32xbf16> to vector<64x32xbf16>
    %c112_87 = arith.constant 112 : index
    %c0_88 = arith.constant 0 : index
    %88 = vector.load %arg9[%c112_87, %c0_88] : memref<576x32xbf16, #tpu.memory_space<vmem>>, vector<64x32xbf16>
    tpu.vector_store %arg9[%c112_87, %c0_88], %87 {strides = array<i32>} : memref<576x32xbf16, #tpu.memory_space<vmem>>, vector<64x32xbf16>,
    %89 = vector.extract_strided_slice %86 {offsets = [96, 0], sizes = [64, 32], strides = [1, 1]} : vector<352x32xbf16> to vector<64x32xbf16>
    %c208_89 = arith.constant 208 : index
    %c0_90 = arith.constant 0 : index
    %90 = vector.load %arg9[%c208_89, %c0_90] : memref<576x32xbf16, #tpu.memory_space<vmem>>, vector<64x32xbf16>
    tpu.vector_store %arg9[%c208_89, %c0_90], %89 {strides = array<i32>} : memref<576x32xbf16, #tpu.memory_space<vmem>>, vector<64x32xbf16>,
    %91 = vector.extract_strided_slice %86 {offsets = [192, 0], sizes = [64, 32], strides = [1, 1]} : vector<352x32xbf16> to vector<64x32xbf16>
    %c304_91 = arith.constant 304 : index
    %c0_92 = arith.constant 0 : index
    %92 = vector.load %arg9[%c304_91, %c0_92] : memref<576x32xbf16, #tpu.memory_space<vmem>>, vector<64x32xbf16>
    tpu.vector_store %arg9[%c304_91, %c0_92], %91 {strides = array<i32>} : memref<576x32xbf16, #tpu.memory_space<vmem>>, vector<64x32xbf16>,
    %93 = vector.extract_strided_slice %86 {offsets = [288, 0], sizes = [64, 32], strides = [1, 1]} : vector<352x32xbf16> to vector<64x32xbf16>
    %c400_93 = arith.constant 400 : index
    %c0_94 = arith.constant 0 : index
    %94 = vector.load %arg9[%c400_93, %c0_94] : memref<576x32xbf16, #tpu.memory_space<vmem>>, vector<64x32xbf16>
    tpu.vector_store %arg9[%c400_93, %c0_94], %93 {strides = array<i32>} : memref<576x32xbf16, #tpu.memory_space<vmem>>, vector<64x32xbf16>,
    %95 = vector.extract_strided_slice %85 {offsets = [0, 0], sizes = [16, 32], strides = [1, 1]} : vector<352x32xf32> to vector<16x32xf32>
    %96 = vector.extract_strided_slice %85 {offsets = [16, 0], sizes = [16, 32], strides = [1, 1]} : vector<352x32xf32> to vector<16x32xf32>
    %97 = vector.extract_strided_slice %85 {offsets = [32, 0], sizes = [16, 32], strides = [1, 1]} : vector<352x32xf32> to vector<16x32xf32>
    %98 = vector.extract_strided_slice %85 {offsets = [48, 0], sizes = [16, 32], strides = [1, 1]} : vector<352x32xf32> to vector<16x32xf32>
    %99 = vector.extract_strided_slice %85 {offsets = [96, 0], sizes = [16, 32], strides = [1, 1]} : vector<352x32xf32> to vector<16x32xf32>
    %100 = vector.extract_strided_slice %85 {offsets = [112, 0], sizes = [16, 32], strides = [1, 1]} : vector<352x32xf32> to vector<16x32xf32>
    %101 = vector.extract_strided_slice %85 {offsets = [128, 0], sizes = [16, 32], strides = [1, 1]} : vector<352x32xf32> to vector<16x32xf32>
    %102 = vector.extract_strided_slice %85 {offsets = [144, 0], sizes = [16, 32], strides = [1, 1]} : vector<352x32xf32> to vector<16x32xf32>
    %103 = vector.extract_strided_slice %85 {offsets = [192, 0], sizes = [16, 32], strides = [1, 1]} : vector<352x32xf32> to vector<16x32xf32>
    %104 = vector.extract_strided_slice %85 {offsets = [208, 0], sizes = [16, 32], strides = [1, 1]} : vector<352x32xf32> to vector<16x32xf32>
    %105 = vector.extract_strided_slice %85 {offsets = [224, 0], sizes = [16, 32], strides = [1, 1]} : vector<352x32xf32> to vector<16x32xf32>
    %106 = vector.extract_strided_slice %85 {offsets = [240, 0], sizes = [16, 32], strides = [1, 1]} : vector<352x32xf32> to vector<16x32xf32>
    %107 = vector.extract_strided_slice %85 {offsets = [288, 0], sizes = [16, 32], strides = [1, 1]} : vector<352x32xf32> to vector<16x32xf32>
    %108 = vector.extract_strided_slice %85 {offsets = [304, 0], sizes = [16, 32], strides = [1, 1]} : vector<352x32xf32> to vector<16x32xf32>
    %109 = vector.extract_strided_slice %85 {offsets = [320, 0], sizes = [16, 32], strides = [1, 1]} : vector<352x32xf32> to vector<16x32xf32>
    %110 = vector.extract_strided_slice %85 {offsets = [336, 0], sizes = [16, 32], strides = [1, 1]} : vector<352x32xf32> to vector<16x32xf32>
    %111 = tpu.concatenate %95, %96, %97, %98, %99, %100, %101, %102, %103, %104, %105, %106, %107, %108, %109, %110 in 1 : vector<16x32xf32>, vector<16x32xf32>, vector<16x32xf32>, vector<16x32xf32>, vector<16x32xf32>, vector<16x32xf32>, vector<16x32xf32>, vector<16x32xf32>, vector<16x32xf32>, vector<16x32xf32>, vector<16x32xf32>, vector<16x32xf32>, vector<16x32xf32>, vector<16x32xf32>, vector<16x32xf32>, vector<16x32xf32> -> vector<16x512xf32>
    %112 = arith.truncf %111 : vector<16x512xf32> to vector<16x512xbf16>
    %c0_95 = arith.constant 0 : index
    %c0_96 = arith.constant 0 : index
    %113 = vector.load %arg6[%c0_95, %c0_96] : memref<512x128xbf16, #tpu.memory_space<vmem>>, vector<512x128xbf16>
    %cst_97 = arith.constant dense<0.000000e+00> : vector<16x128xf32>
    %114 = tpu.matmul %112, %113, %cst_97 {dimension_numbers = #tpu.dot_dimension_numbers<[1], [0], [0], [1], [0, 0, 1, 1], [], []>} : vector<16x512xbf16>, vector<512x128xbf16>, vector<16x128xf32> -> vector<16x128xf32>
    %c0_98 = arith.constant 0 : index
    %c0_99 = arith.constant 0 : index
    %115 = vector.load %arg7[%c0_98, %c0_99] : memref<1x128xf32, #tpu.memory_space<vmem>>, vector<1x128xf32>
    %116 = vector.broadcast %115 : vector<1x128xf32> to vector<16x128xf32>
    %117 = arith.addf %114, %116 : vector<16x128xf32>
    %c0_100 = arith.constant 0 : index
    %c0_101 = arith.constant 0 : index
    %118 = vector.load %arg8[%c0_100, %c0_101] : memref<16x128xf32, #tpu.memory_space<vmem>>, vector<16x128xf32>
    tpu.vector_store %arg8[%c0_100, %c0_101], %117 {strides = array<i32>} : memref<16x128xf32, #tpu.memory_space<vmem>>, vector<16x128xf32>,
    return
  }
  func.func @transform_0(%arg0: i32) -> (i32, i32) {
    %c0_i32 = arith.constant 0 : i32
    %c0_i32_0 = arith.constant 0 : i32
    %c0_i32_1 = arith.constant 0 : i32
    return %c0_i32, %c0_i32_0 : i32, i32
  }
  func.func @transform_1(%arg0: i32) -> (i32, i32) {
    %c0_i32 = arith.constant 0 : i32
    %c0_i32_0 = arith.constant 0 : i32
    %c0_i32_1 = arith.constant 0 : i32
    return %c0_i32, %c0_i32_0 : i32, i32
  }
  func.func @transform_2(%arg0: i32) -> (i32, i32) {
    %c0_i32 = arith.constant 0 : i32
    %c0_i32_0 = arith.constant 0 : i32
    %c0_i32_1 = arith.constant 0 : i32
    return %c0_i32, %c0_i32_0 : i32, i32
  }
  func.func @transform_3(%arg0: i32) -> (i32, i32, i32, i32) {
    %c0_i32 = arith.constant 0 : i32
    %c0_i32_0 = arith.constant 0 : i32
    %c0_i32_1 = arith.constant 0 : i32
    %c0_i32_2 = arith.constant 0 : i32
    %c0_i32_3 = arith.constant 0 : i32
    return %c0_i32, %c0_i32_0, %c0_i32_1, %c0_i32_2 : i32, i32, i32, i32
  }
  func.func @transform_4(%arg0: i32) -> (i32, i32, i32) {
    %c0_i32 = arith.constant 0 : i32
    %c0_i32_0 = arith.constant 0 : i32
    %c0_i32_1 = arith.constant 0 : i32
    %c0_i32_2 = arith.constant 0 : i32
    return %c0_i32, %c0_i32_0, %c0_i32_1 : i32, i32, i32
  }
  func.func @transform_5(%arg0: i32) -> (i32, i32) {
    %c0_i32 = arith.constant 0 : i32
    %c0_i32_0 = arith.constant 0 : i32
    %c0_i32_1 = arith.constant 0 : i32
    return %c0_i32, %c0_i32_0 : i32, i32
  }
  func.func @transform_6(%arg0: i32) -> (i32, i32) {
    %c0_i32 = arith.constant 0 : i32
    %c0_i32_0 = arith.constant 0 : i32
    %c0_i32_1 = arith.constant 0 : i32
    return %c0_i32, %c0_i32_0 : i32, i32
  }
  func.func @transform_7(%arg0: i32) -> (i32, i32) {
    %c0_i32 = arith.constant 0 : i32
    %c0_i32_0 = arith.constant 0 : i32
    %c0_i32_1 = arith.constant 0 : i32
    return %c0_i32, %c0_i32_0 : i32, i32
  }
}

</mosaic_0001>

<llo_original>
// kernel: forward.1
$region0: #{forward.1}
  #allocation0 [shape = 'u32[]', space=smem, size = 0x4, offset = 0x4, fixed_abs, tag = 'smem constant byte address 0x4 - core index']
  #allocation1 [shape = 'u32[144,128]{1,0:T(1,128)}', space=vmem, size = 0x12000, scoped, tag = 'internal scratch']
  #allocation2 [shape = 'bf16[576,32]{1,0:T(8,128)(2,1)}', space=vmem, size = 0x24000, scoped, tag = 'scratch operand']
  %s0 = inlined_call_operand.vmem [shape: bf16[256,128], index: 0, kind: input, shape index: {}]
  %s1 = inlined_call_operand.vmem [shape: bf16[128,32], index: 1, kind: input, shape index: {}]
  %s2 = inlined_call_operand.vmem [shape: f32[1,32], index: 2, kind: input, shape index: {}]
  %s3 = inlined_call_operand.vmem [shape: bf16[2,3,96,32], index: 3, kind: input, shape index: {}]
  %s4 = inlined_call_operand.vmem [shape: f32[2,1,32], index: 4, kind: input, shape index: {}]
  %s5 = inlined_call_operand.vmem [shape: bf16[512,128], index: 5, kind: input, shape index: {}]
  %s6 = inlined_call_operand.vmem [shape: f32[1,128], index: 6, kind: input, shape index: {}]
  %s7 = inlined_call_operand.vmem [shape: f32[16,128], index: 7, kind: output, shape index: {}]
  %s8 = sld [smem:[#allocation0]]
  $region38: #{forward.1} parent=0
    _
  %s10 = ssub.s32 1, %s8
  %s11 = scalar_select 0, %s10, %s8
  // Predicated region
  $region2: #{forward.1} parent=0 // pred_check
    _
  $region3: #{forward.1} parent=0 // pred_check_branch
    %13 = sbr.rel (0) target = $region5
  $region4: #{forward.1} parent=0 // pred_region
    _
  $region5: #{forward.1} parent=0 // pred_fallthru
    _
  // Predicated region
  $region6: #{forward.1} parent=0 // pred_check
    _
  $region7: #{forward.1} parent=0 // pred_check_branch
    %15 = sbr.rel (0) target = $region9
  $region8: #{forward.1} parent=0 // pred_region
    _
  $region9: #{forward.1} parent=0 // pred_fallthru
    _
  // Predicated region
  $region10: #{forward.1} parent=0 // pred_check
    _
  $region11: #{forward.1} parent=0 // pred_check_branch
    %17 = sbr.rel (0) target = $region13
  $region12: #{forward.1} parent=0 // pred_region
    _
  $region13: #{forward.1} parent=0 // pred_fallthru
    _
  // Predicated region
  $region14: #{forward.1} parent=0 // pred_check
    _
  $region15: #{forward.1} parent=0 // pred_check_branch
    %19 = sbr.rel (0) target = $region17
  $region16: #{forward.1} parent=0 // pred_region
    _
  $region17: #{forward.1} parent=0 // pred_fallthru
    _
  // Predicated region
  $region18: #{forward.1} parent=0 // pred_check
    _
  $region19: #{forward.1} parent=0 // pred_check_branch
    %21 = sbr.rel (0) target = $region21
  $region20: #{forward.1} parent=0 // pred_region
    _
  $region21: #{forward.1} parent=0 // pred_fallthru
    _
  // Predicated region
  $region22: #{forward.1} parent=0 // pred_check
    _
  $region23: #{forward.1} parent=0 // pred_check_branch
    %23 = sbr.rel (0) target = $region25
  $region24: #{forward.1} parent=0 // pred_region
    _
  $region25: #{forward.1} parent=0 // pred_fallthru
    _
  // Predicated region
  $region26: #{forward.1} parent=0 // pred_check
    _
  $region27: #{forward.1} parent=0 // pred_check_branch
    %25 = sbr.rel (0) target = $region29
  $region28: #{forward.1} parent=0 // pred_region
    _
  $region29: #{forward.1} parent=0 // pred_fallthru
    _
  %vm27 = vcmask 257024
  %28 = vst.msk [vmem:[#allocation2] sm:$0xf] %vm27, 0
  %29 = vst.msk [vmem:[#allocation2 + $0x4] sm:$0xf] %vm27, 0
  %30 = vst.msk [vmem:[#allocation2 + $0x8] sm:$0xf] %vm27, 0
  %31 = vst.msk [vmem:[#allocation2 + $0xc] sm:$0xf] %vm27, 0
  %32 = vst.msk [vmem:[#allocation2 + $0x10] sm:$0xf] %vm27, 0
  %33 = vst.msk [vmem:[#allocation2 + $0x14] sm:$0xf] %vm27, 0
  %34 = vst.msk [vmem:[#allocation2 + $0x18] sm:$0xf] %vm27, 0
  %35 = vst.msk [vmem:[#allocation2 + $0x1c] sm:$0xf] %vm27, 0
  %36 = vst.msk [vmem:[#allocation2 + $0x20] sm:$0xf] %vm27, 0
  %37 = vst.msk [vmem:[#allocation2 + $0x24] sm:$0xf] %vm27, 0
  %38 = vst.msk [vmem:[#allocation2 + $0x28] sm:$0xf] %vm27, 0
  %39 = vst.msk [vmem:[#allocation2 + $0x2c] sm:$0xf] %vm27, 0
  %40 = vst.msk [vmem:[#allocation2 + $0x30] sm:$0xf] %vm27, 0
  %41 = vst.msk [vmem:[#allocation2 + $0x34] sm:$0xf] %vm27, 0
  %42 = vst.msk [vmem:[#allocation2 + $0x38] sm:$0xf] %vm27, 0
  %43 = vst.msk [vmem:[#allocation2 + $0x3c] sm:$0xf] %vm27, 0
  %44 = vst.msk [vmem:[#allocation2 + $0x40] sm:$0xf] %vm27, 0
  %45 = vst.msk [vmem:[#allocation2 + $0x44] sm:$0xf] %vm27, 0
  %46 = vst.msk [vmem:[#allocation2 + $0x48] sm:$0xf] %vm27, 0
  %47 = vst.msk [vmem:[#allocation2 + $0x4c] sm:$0xf] %vm27, 0
  %48 = vst.msk [vmem:[#allocation2 + $0x50] sm:$0xf] %vm27, 0
  %49 = vst.msk [vmem:[#allocation2 + $0x54] sm:$0xf] %vm27, 0
  %50 = vst.msk [vmem:[#allocation2 + $0x58] sm:$0xf] %vm27, 0
  %51 = vst.msk [vmem:[#allocation2 + $0x5c] sm:$0xf] %vm27, 0
  %52 = vst.msk [vmem:[#allocation2 + $0x60] sm:$0xf] %vm27, 0
  %53 = vst.msk [vmem:[#allocation2 + $0x64] sm:$0xf] %vm27, 0
  %54 = vst.msk [vmem:[#allocation2 + $0x68] sm:$0xf] %vm27, 0
  %55 = vst.msk [vmem:[#allocation2 + $0x6c] sm:$0xf] %vm27, 0
  %56 = vst.msk [vmem:[#allocation2 + $0x70] sm:$0xf] %vm27, 0
  %57 = vst.msk [vmem:[#allocation2 + $0x74] sm:$0xf] %vm27, 0
  %58 = vst.msk [vmem:[#allocation2 + $0x78] sm:$0xf] %vm27, 0
  %59 = vst.msk [vmem:[#allocation2 + $0x7c] sm:$0xf] %vm27, 0
  %60 = vst.msk [vmem:[#allocation2 + $0x80] sm:$0xf] %vm27, 0
  %61 = vst.msk [vmem:[#allocation2 + $0x84] sm:$0xf] %vm27, 0
  %62 = vst.msk [vmem:[#allocation2 + $0x88] sm:$0xf] %vm27, 0
  %63 = vst.msk [vmem:[#allocation2 + $0x8c] sm:$0xf] %vm27, 0
  %64 = vst.msk [vmem:[#allocation2 + $0x90] sm:$0xf] %vm27, 0
  %65 = vst.msk [vmem:[#allocation2 + $0x94] sm:$0xf] %vm27, 0
  %66 = vst.msk [vmem:[#allocation2 + $0x98] sm:$0xf] %vm27, 0
  %67 = vst.msk [vmem:[#allocation2 + $0x9c] sm:$0xf] %vm27, 0
  %68 = vst.msk [vmem:[#allocation2 + $0xa0] sm:$0xf] %vm27, 0
  %69 = vst.msk [vmem:[#allocation2 + $0xa4] sm:$0xf] %vm27, 0
  %70 = vst.msk [vmem:[#allocation2 + $0xa8] sm:$0xf] %vm27, 0
  %71 = vst.msk [vmem:[#allocation2 + $0xac] sm:$0xf] %vm27, 0
  %72 = vst.msk [vmem:[#allocation2 + $0xb0] sm:$0xf] %vm27, 0
  %73 = vst.msk [vmem:[#allocation2 + $0xb4] sm:$0xf] %vm27, 0
  %74 = vst.msk [vmem:[#allocation2 + $0xb8] sm:$0xf] %vm27, 0
  %75 = vst.msk [vmem:[#allocation2 + $0xbc] sm:$0xf] %vm27, 0
  %76 = vst.msk [vmem:[#allocation2 + $0xc0] sm:$0xf] %vm27, 0
  %77 = vst.msk [vmem:[#allocation2 + $0xc4] sm:$0xf] %vm27, 0
  %78 = vst.msk [vmem:[#allocation2 + $0xc8] sm:$0xf] %vm27, 0
  %79 = vst.msk [vmem:[#allocation2 + $0xcc] sm:$0xf] %vm27, 0
  %80 = vst.msk [vmem:[#allocation2 + $0xd0] sm:$0xf] %vm27, 0
  %81 = vst.msk [vmem:[#allocation2 + $0xd4] sm:$0xf] %vm27, 0
  %82 = vst.msk [vmem:[#allocation2 + $0xd8] sm:$0xf] %vm27, 0
  %83 = vst.msk [vmem:[#allocation2 + $0xdc] sm:$0xf] %vm27, 0
  %84 = vst.msk [vmem:[#allocation2 + $0xe0] sm:$0xf] %vm27, 0
  %85 = vst.msk [vmem:[#allocation2 + $0xe4] sm:$0xf] %vm27, 0
  %86 = vst.msk [vmem:[#allocation2 + $0xe8] sm:$0xf] %vm27, 0
  %87 = vst.msk [vmem:[#allocation2 + $0xec] sm:$0xf] %vm27, 0
  %88 = vst.msk [vmem:[#allocation2 + $0xf0] sm:$0xf] %vm27, 0
  %89 = vst.msk [vmem:[#allocation2 + $0xf4] sm:$0xf] %vm27, 0
  %90 = vst.msk [vmem:[#allocation2 + $0xf8] sm:$0xf] %vm27, 0
  %91 = vst.msk [vmem:[#allocation2 + $0xfc] sm:$0xf] %vm27, 0
  %92 = vst.msk [vmem:[#allocation2 + $0x100] sm:$0xf] %vm27, 0
  %93 = vst.msk [vmem:[#allocation2 + $0x104] sm:$0xf] %vm27, 0
  %94 = vst.msk [vmem:[#allocation2 + $0x108] sm:$0xf] %vm27, 0
  %95 = vst.msk [vmem:[#allocation2 + $0x10c] sm:$0xf] %vm27, 0
  %96 = vst.msk [vmem:[#allocation2 + $0x110] sm:$0xf] %vm27, 0
  %97 = vst.msk [vmem:[#allocation2 + $0x114] sm:$0xf] %vm27, 0
  %98 = vst.msk [vmem:[#allocation2 + $0x118] sm:$0xf] %vm27, 0
  %99 = vst.msk [vmem:[#allocation2 + $0x11c] sm:$0xf] %vm27, 0
  %v100 = vld [vmem:[%s0] sm:$0xf]
  %v101 = vld [vmem:[%s0 + $0x4] sm:$0xf]
  %v102 = vld [vmem:[%s0 + $0x8] sm:$0xf]
  %v103 = vld [vmem:[%s0 + $0xc] sm:$0xf]
  %v104 = vld [vmem:[%s0 + $0x10] sm:$0xf]
  %v105 = vld [vmem:[%s0 + $0x14] sm:$0xf]
  %v106 = vld [vmem:[%s0 + $0x18] sm:$0xf]
  %v107 = vld [vmem:[%s0 + $0x1c] sm:$0xf]
  %v108 = vld [vmem:[%s0 + $0x20] sm:$0xf]
  %v109 = vld [vmem:[%s0 + $0x24] sm:$0xf]
  %v110 = vld [vmem:[%s0 + $0x28] sm:$0xf]
  %v111 = vld [vmem:[%s0 + $0x2c] sm:$0xf]
  %v112 = vld [vmem:[%s0 + $0x30] sm:$0xf]
  %v113 = vld [vmem:[%s0 + $0x34] sm:$0xf]
  %v114 = vld [vmem:[%s0 + $0x38] sm:$0xf]
  %v115 = vld [vmem:[%s0 + $0x3c] sm:$0xf]
  %v116 = vld [vmem:[%s0 + $0x40] sm:$0xf]
  %v117 = vld [vmem:[%s0 + $0x44] sm:$0xf]
  %v118 = vld [vmem:[%s0 + $0x48] sm:$0xf]
  %v119 = vld [vmem:[%s0 + $0x4c] sm:$0xf]
  %v120 = vld [vmem:[%s0 + $0x50] sm:$0xf]
  %v121 = vld [vmem:[%s0 + $0x54] sm:$0xf]
  %v122 = vld [vmem:[%s0 + $0x58] sm:$0xf]
  %v123 = vld [vmem:[%s0 + $0x5c] sm:$0xf]
  %v124 = vld [vmem:[%s0 + $0x60] sm:$0xf]
  %v125 = vld [vmem:[%s0 + $0x64] sm:$0xf]
  %v126 = vld [vmem:[%s0 + $0x68] sm:$0xf]
  %v127 = vld [vmem:[%s0 + $0x6c] sm:$0xf]
  %v128 = vld [vmem:[%s0 + $0x70] sm:$0xf]
  %v129 = vld [vmem:[%s0 + $0x74] sm:$0xf]
  %v130 = vld [vmem:[%s0 + $0x78] sm:$0xf]
  %v131 = vld [vmem:[%s0 + $0x7c] sm:$0xf]
  %v132 = vld [vmem:[%s1] sm:$0xf]
  %v133 = vld [vmem:[%s1 + $0x4] sm:$0xf]
  %v134 = vld [vmem:[%s1 + $0x8] sm:$0xf]
  %v135 = vld [vmem:[%s1 + $0xc] sm:$0xf]
  %v136 = vld [vmem:[%s1 + $0x10] sm:$0xf]
  %v137 = vld [vmem:[%s1 + $0x14] sm:$0xf]
  %v138 = vld [vmem:[%s1 + $0x18] sm:$0xf]
  %v139 = vld [vmem:[%s1 + $0x1c] sm:$0xf]
  %v140 = vld [vmem:[%s1 + $0x20] sm:$0xf]
  %v141 = vld [vmem:[%s1 + $0x24] sm:$0xf]
  %v142 = vld [vmem:[%s1 + $0x28] sm:$0xf]
  %v143 = vld [vmem:[%s1 + $0x2c] sm:$0xf]
  %v144 = vld [vmem:[%s1 + $0x30] sm:$0xf]
  %v145 = vld [vmem:[%s1 + $0x34] sm:$0xf]
  %v146 = vld [vmem:[%s1 + $0x38] sm:$0xf]
  %v147 = vld [vmem:[%s1 + $0x3c] sm:$0xf]
  %v148 = vld [vmem:[%s2] sm:$0x1]
  %v150 = vlaneseq
  %v151 = vshrl.u32 %v150, 7
  %v152 = vsub.s32 0, %v151
  %v153 = vrot.slane %v148, %v152
  %v187 = vunpack.c.l.b16 %v100
  %v188 = vunpack.c.l.b16 %v101
  %v189 = vunpack.c.l.b16 %v102
  %v190 = vunpack.c.l.b16 %v103
  %v191 = vunpack.c.l.b16 %v104
  %v192 = vunpack.c.l.b16 %v105
  %v193 = vunpack.c.l.b16 %v106
  %v194 = vunpack.c.l.b16 %v107
  %v195 = vunpack.c.l.b16 %v108
  %v196 = vunpack.c.l.b16 %v109
  %v197 = vunpack.c.l.b16 %v110
  %v198 = vunpack.c.l.b16 %v111
  %v199 = vunpack.c.l.b16 %v112
  %v200 = vunpack.c.l.b16 %v113
  %v201 = vunpack.c.l.b16 %v114
  %v202 = vunpack.c.l.b16 %v115
  %v203 = vunpack.c.l.b16 %v116
  %v204 = vunpack.c.l.b16 %v117
  %v205 = vunpack.c.l.b16 %v118
  %v206 = vunpack.c.l.b16 %v119
  %v207 = vunpack.c.l.b16 %v120
  %v208 = vunpack.c.l.b16 %v121
  %v209 = vunpack.c.l.b16 %v122
  %v210 = vunpack.c.l.b16 %v123
  %v211 = vunpack.c.l.b16 %v124
  %v212 = vunpack.c.l.b16 %v125
  %v213 = vunpack.c.l.b16 %v126
  %v214 = vunpack.c.l.b16 %v127
  %v215 = vunpack.c.l.b16 %v128
  %v216 = vunpack.c.l.b16 %v129
  %v217 = vunpack.c.l.b16 %v130
  %v218 = vunpack.c.l.b16 %v131
  %v219 = vpack.c.b16 %v188, %v187
  %v220 = vpack.c.b16 %v190, %v189
  %v221 = vpack.c.b16 %v192, %v191
  %v222 = vpack.c.b16 %v194, %v193
  %v223 = vpack.c.b16 %v196, %v195
  %v224 = vpack.c.b16 %v198, %v197
  %v225 = vpack.c.b16 %v200, %v199
  %v226 = vpack.c.b16 %v202, %v201
  %v227 = vpack.c.b16 %v204, %v203
  %v228 = vpack.c.b16 %v206, %v205
  %v229 = vpack.c.b16 %v208, %v207
  %v230 = vpack.c.b16 %v210, %v209
  %v231 = vpack.c.b16 %v212, %v211
  %v232 = vpack.c.b16 %v214, %v213
  %v233 = vpack.c.b16 %v216, %v215
  %v234 = vpack.c.b16 %v218, %v217
  %v267 = vunpack.c.l.b16 %v132
  %v268 = vunpack.c.l.b16 %v133
  %v269 = vunpack.c.l.b16 %v134
  %v270 = vunpack.c.l.b16 %v135
  %v271 = vunpack.c.l.b16 %v136
  %v272 = vunpack.c.l.b16 %v137
  %v273 = vunpack.c.l.b16 %v138
  %v274 = vunpack.c.l.b16 %v139
  %v275 = vunpack.c.l.b16 %v140
  %v276 = vunpack.c.l.b16 %v141
  %v277 = vunpack.c.l.b16 %v142
  %v278 = vunpack.c.l.b16 %v143
  %v279 = vunpack.c.l.b16 %v144
  %v280 = vunpack.c.l.b16 %v145
  %v281 = vunpack.c.l.b16 %v146
  %v282 = vunpack.c.l.b16 %v147
  %v283 = vpack.c.b16 %v268, %v267
  %v284 = vpack.c.b16 %v270, %v269
  %v285 = vpack.c.b16 %v272, %v271
  %v286 = vpack.c.b16 %v274, %v273
  %v287 = vpack.c.b16 %v276, %v275
  %v288 = vpack.c.b16 %v278, %v277
  %v289 = vpack.c.b16 %v280, %v279
  %v290 = vpack.c.b16 %v282, %v281
  %299 = vmatprep.subr.bf16.mxu0 0
  %300 = vmatpush1.bf16.msra.mxu0 %v290
  %301 = vmatprep.subr.bf16.mxu0 0
  %302 = vmatpush1.bf16.msra.mxu0 %v289
  %303 = vmatprep.subr.bf16.mxu0 0
  %304 = vmatpush1.bf16.msra.mxu0 %v288
  %305 = vmatprep.subr.bf16.mxu0 0
  %306 = vmatpush1.bf16.msra.mxu0 %v287
  %307 = vmatprep.subr.bf16.mxu0 0
  %308 = vmatpush1.bf16.msra.mxu0 %v286
  %309 = vmatprep.subr.bf16.mxu0 0
  %310 = vmatpush1.bf16.msra.mxu0 %v285
  %311 = vmatprep.subr.bf16.mxu0 0
  %312 = vmatpush1.bf16.msra.mxu0 %v284
  %313 = vmatprep.subr.bf16.mxu0 0
  %314 = vmatpush1.bf16.msra.mxu0 %v283
  %315 = vmatprep.subr.bf16.mxu0 0
  %316 = vmatpush2.bf16.msra.mxu0 0
  %317 = vmatprep.subr.bf16.mxu0 0
  %318 = vmatpush2.bf16.msra.mxu0 0
  %319 = vmatprep.subr.bf16.mxu0 0
  %320 = vmatpush2.bf16.msra.mxu0 0
  %321 = vmatprep.subr.bf16.mxu0 0
  %322 = vmatpush2.bf16.msra.mxu0 0
  %323 = vmatprep.subr.bf16.mxu0 0
  %324 = vmatpush2.bf16.msra.mxu0 0
  %325 = vmatprep.subr.bf16.mxu0 0
  %326 = vmatpush2.bf16.msra.mxu0 0
  %327 = vmatprep.subr.bf16.mxu0 0
  %328 = vmatpush2.bf16.msra.mxu0 0
  %329 = vmatprep.subr.bf16.mxu0 0
  %330 = vmatpush2.bf16.msra.mxu0 0
  %331 = vmatprep.mubr.bf16.mxu0 0
  %332 = vmatmul.mubr.bf16.gmra.mxu0 %v219
  %v333 = vpop.f32.mrf.mxu0
  %v334 = vadd.f32 %v153, %v333
  %v335 = vpop.f32.mrf.mxu0
  %v336 = vpop.f32.mrf.mxu0
  %v337 = vadd.f32 %v153, %v336
  %v338 = vpop.f32.mrf.mxu0
  %339 = vmatprep.mubr.bf16.mxu0 0
  %340 = vmatmul.mubr.bf16.gmra.mxu0 %v220
  %v341 = vpop.f32.mrf.mxu0
  %v342 = vadd.f32 %v153, %v341
  %v343 = vpop.f32.mrf.mxu0
  %v344 = vpop.f32.mrf.mxu0
  %v345 = vadd.f32 %v153, %v344
  %v346 = vpop.f32.mrf.mxu0
  %347 = vmatprep.mubr.bf16.mxu0 0
  %348 = vmatmul.mubr.bf16.gmra.mxu0 %v221
  %v349 = vpop.f32.mrf.mxu0
  %v350 = vadd.f32 %v153, %v349
  %v351 = vpop.f32.mrf.mxu0
  %v352 = vpop.f32.mrf.mxu0
  %v353 = vadd.f32 %v153, %v352
  %v354 = vpop.f32.mrf.mxu0
  %355 = vmatprep.mubr.bf16.mxu0 0
  %356 = vmatmul.mubr.bf16.gmra.mxu0 %v222
  %v357 = vpop.f32.mrf.mxu0
  %v358 = vadd.f32 %v153, %v357
  %v359 = vpop.f32.mrf.mxu0
  %v360 = vpop.f32.mrf.mxu0
  %v361 = vadd.f32 %v153, %v360
  %v362 = vpop.f32.mrf.mxu0
  %363 = vmatprep.mubr.bf16.mxu0 0
  %364 = vmatmul.mubr.bf16.gmra.mxu0 %v223
  %v365 = vpop.f32.mrf.mxu0
  %v366 = vadd.f32 %v153, %v365
  %v367 = vpop.f32.mrf.mxu0
  %v368 = vpop.f32.mrf.mxu0
  %v369 = vadd.f32 %v153, %v368
  %v370 = vpop.f32.mrf.mxu0
  %371 = vmatprep.mubr.bf16.mxu0 0
  %372 = vmatmul.mubr.bf16.gmra.mxu0 %v224
  %v373 = vpop.f32.mrf.mxu0
  %v374 = vadd.f32 %v153, %v373
  %v375 = vpop.f32.mrf.mxu0
  %v376 = vpop.f32.mrf.mxu0
  %v377 = vadd.f32 %v153, %v376
  %v378 = vpop.f32.mrf.mxu0
  %379 = vmatprep.mubr.bf16.mxu0 0
  %380 = vmatmul.mubr.bf16.gmra.mxu0 %v225
  %v381 = vpop.f32.mrf.mxu0
  %v382 = vadd.f32 %v153, %v381
  %v383 = vpop.f32.mrf.mxu0
  %v384 = vpop.f32.mrf.mxu0
  %v385 = vadd.f32 %v153, %v384
  %v386 = vpop.f32.mrf.mxu0
  %387 = vmatprep.mubr.bf16.mxu0 0
  %388 = vmatmul.mubr.bf16.gmra.mxu0 %v226
  %v389 = vpop.f32.mrf.mxu0
  %v390 = vadd.f32 %v153, %v389
  %v391 = vpop.f32.mrf.mxu0
  %v392 = vpop.f32.mrf.mxu0
  %v393 = vadd.f32 %v153, %v392
  %v394 = vpop.f32.mrf.mxu0
  %395 = vmatprep.mubr.bf16.mxu0 0
  %396 = vmatmul.mubr.bf16.gmra.mxu0 %v227
  %v397 = vpop.f32.mrf.mxu0
  %v398 = vadd.f32 %v153, %v397
  %v399 = vpop.f32.mrf.mxu0
  %v400 = vpop.f32.mrf.mxu0
  %v401 = vadd.f32 %v153, %v400
  %v402 = vpop.f32.mrf.mxu0
  %403 = vmatprep.mubr.bf16.mxu0 0
  %404 = vmatmul.mubr.bf16.gmra.mxu0 %v228
  %v405 = vpop.f32.mrf.mxu0
  %v406 = vadd.f32 %v153, %v405
  %v407 = vpop.f32.mrf.mxu0
  %v408 = vpop.f32.mrf.mxu0
  %v409 = vadd.f32 %v153, %v408
  %v410 = vpop.f32.mrf.mxu0
  %411 = vmatprep.mubr.bf16.mxu0 0
  %412 = vmatmul.mubr.bf16.gmra.mxu0 %v229
  %v413 = vpop.f32.mrf.mxu0
  %v414 = vadd.f32 %v153, %v413
  %v415 = vpop.f32.mrf.mxu0
  %v416 = vpop.f32.mrf.mxu0
  %v417 = vadd.f32 %v153, %v416
  %v418 = vpop.f32.mrf.mxu0
  %419 = vmatprep.mubr.bf16.mxu0 0
  %420 = vmatmul.mubr.bf16.gmra.mxu0 %v230
  %v421 = vpop.f32.mrf.mxu0
  %v422 = vadd.f32 %v153, %v421
  %v423 = vpop.f32.mrf.mxu0
  %v424 = vpop.f32.mrf.mxu0
  %v425 = vadd.f32 %v153, %v424
  %v426 = vpop.f32.mrf.mxu0
  %427 = vmatprep.mubr.bf16.mxu0 0
  %428 = vmatmul.mubr.bf16.gmra.mxu0 %v231
  %v429 = vpop.f32.mrf.mxu0
  %v430 = vadd.f32 %v153, %v429
  %v431 = vpop.f32.mrf.mxu0
  %v432 = vpop.f32.mrf.mxu0
  %v433 = vadd.f32 %v153, %v432
  %v434 = vpop.f32.mrf.mxu0
  %435 = vmatprep.mubr.bf16.mxu0 0
  %436 = vmatmul.mubr.bf16.gmra.mxu0 %v232
  %v437 = vpop.f32.mrf.mxu0
  %v438 = vadd.f32 %v153, %v437
  %v439 = vpop.f32.mrf.mxu0
  %v440 = vpop.f32.mrf.mxu0
  %v441 = vadd.f32 %v153, %v440
  %v442 = vpop.f32.mrf.mxu0
  %443 = vmatprep.mubr.bf16.mxu0 0
  %444 = vmatmul.mubr.bf16.gmra.mxu0 %v233
  %v445 = vpop.f32.mrf.mxu0
  %v446 = vadd.f32 %v153, %v445
  %v447 = vpop.f32.mrf.mxu0
  %v448 = vpop.f32.mrf.mxu0
  %v449 = vadd.f32 %v153, %v448
  %v450 = vpop.f32.mrf.mxu0
  %451 = vmatprep.mubr.bf16.mxu0 0
  %452 = vmatmul.mubr.bf16.gmra.mxu0 %v234
  %v453 = vpop.f32.mrf.mxu0
  %v454 = vadd.f32 %v153, %v453
  %v455 = vpop.f32.mrf.mxu0
  %v456 = vpop.f32.mrf.mxu0
  %v457 = vadd.f32 %v153, %v456
  %v458 = vpop.f32.mrf.mxu0
  %459 = vdwg.mxu0
  %v460 = vmax.f32 %v334, 0.0
  %v461 = vmax.f32 %v337, 0.0
  %v462 = vmax.f32 %v342, 0.0
  %v463 = vmax.f32 %v345, 0.0
  %v464 = vmax.f32 %v350, 0.0
  %v465 = vmax.f32 %v353, 0.0
  %v466 = vmax.f32 %v358, 0.0
  %v467 = vmax.f32 %v361, 0.0
  %v468 = vmax.f32 %v366, 0.0
  %v469 = vmax.f32 %v369, 0.0
  %v470 = vmax.f32 %v374, 0.0
  %v471 = vmax.f32 %v377, 0.0
  %v472 = vmax.f32 %v382, 0.0
  %v473 = vmax.f32 %v385, 0.0
  %v474 = vmax.f32 %v390, 0.0
  %v475 = vmax.f32 %v393, 0.0
  %v476 = vmax.f32 %v398, 0.0
  %v477 = vmax.f32 %v401, 0.0
  %v478 = vmax.f32 %v406, 0.0
  %v479 = vmax.f32 %v409, 0.0
  %v480 = vmax.f32 %v414, 0.0
  %v481 = vmax.f32 %v417, 0.0
  %v482 = vmax.f32 %v422, 0.0
  %v483 = vmax.f32 %v425, 0.0
  %v484 = vmax.f32 %v430, 0.0
  %v485 = vmax.f32 %v433, 0.0
  %v486 = vmax.f32 %v438, 0.0
  %v487 = vmax.f32 %v441, 0.0
  %v488 = vmax.f32 %v446, 0.0
  %v489 = vmax.f32 %v449, 0.0
  %v490 = vmax.f32 %v454, 0.0
  %v491 = vmax.f32 %v457, 0.0
  %v492 = vpack.c.bf16 %v461, %v460
  %v493 = vpack.c.bf16 %v463, %v462
  %v494 = vpack.c.bf16 %v465, %v464
  %v495 = vpack.c.bf16 %v467, %v466
  %v496 = vpack.c.bf16 %v469, %v468
  %v497 = vpack.c.bf16 %v471, %v470
  %v498 = vpack.c.bf16 %v473, %v472
  %v499 = vpack.c.bf16 %v475, %v474
  %v500 = vpack.c.bf16 %v477, %v476
  %v501 = vpack.c.bf16 %v479, %v478
  %v502 = vpack.c.bf16 %v481, %v480
  %v503 = vpack.c.bf16 %v483, %v482
  %v504 = vpack.c.bf16 %v485, %v484
  %v505 = vpack.c.bf16 %v487, %v486
  %v506 = vpack.c.bf16 %v489, %v488
  %v507 = vpack.c.bf16 %v491, %v490
  %v512 = vunpack.c.l.b16 %v492
  %v513 = vunpack.c.h.b16 %v492
  %v514 = vunpack.c.l.b16 %v493
  %v515 = vunpack.c.h.b16 %v493
  %v516 = vunpack.c.l.b16 %v494
  %v517 = vunpack.c.h.b16 %v494
  %v518 = vunpack.c.l.b16 %v495
  %v519 = vunpack.c.h.b16 %v495
  %v520 = vpack.c.b16 %v512, %v512
  %v521 = vpack.c.b16 %v513, %v513
  %v522 = vpack.c.b16 %v514, %v514
  %v523 = vpack.c.b16 %v515, %v515
  %v524 = vpack.c.b16 %v516, %v516
  %v525 = vpack.c.b16 %v517, %v517
  %v526 = vpack.c.b16 %v518, %v518
  %v527 = vpack.c.b16 %v519, %v519
  %536 = vst.msk [vmem:[#allocation2 + $0x38] sm:$0xf] %vm27, %v520
  %537 = vst.msk [vmem:[#allocation2 + $0x3c] sm:$0xf] %vm27, %v521
  %538 = vst.msk [vmem:[#allocation2 + $0x40] sm:$0xf] %vm27, %v522
  %539 = vst.msk [vmem:[#allocation2 + $0x44] sm:$0xf] %vm27, %v523
  %540 = vst.msk [vmem:[#allocation2 + $0x48] sm:$0xf] %vm27, %v524
  %541 = vst.msk [vmem:[#allocation2 + $0x4c] sm:$0xf] %vm27, %v525
  %542 = vst.msk [vmem:[#allocation2 + $0x50] sm:$0xf] %vm27, %v526
  %543 = vst.msk [vmem:[#allocation2 + $0x54] sm:$0xf] %vm27, %v527
  %v548 = vunpack.c.l.b16 %v496
  %v549 = vunpack.c.h.b16 %v496
  %v550 = vunpack.c.l.b16 %v497
  %v551 = vunpack.c.h.b16 %v497
  %v552 = vunpack.c.l.b16 %v498
  %v553 = vunpack.c.h.b16 %v498
  %v554 = vunpack.c.l.b16 %v499
  %v555 = vunpack.c.h.b16 %v499
  %v556 = vpack.c.b16 %v548, %v548
  %v557 = vpack.c.b16 %v549, %v549
  %v558 = vpack.c.b16 %v550, %v550
  %v559 = vpack.c.b16 %v551, %v551
  %v560 = vpack.c.b16 %v552, %v552
  %v561 = vpack.c.b16 %v553, %v553
  %v562 = vpack.c.b16 %v554, %v554
  %v563 = vpack.c.b16 %v555, %v555
  %572 = vst.msk [vmem:[#allocation2 + $0x68] sm:$0xf] %vm27, %v556
  %573 = vst.msk [vmem:[#allocation2 + $0x6c] sm:$0xf] %vm27, %v557
  %574 = vst.msk [vmem:[#allocation2 + $0x70] sm:$0xf] %vm27, %v558
  %575 = vst.msk [vmem:[#allocation2 + $0x74] sm:$0xf] %vm27, %v559
  %576 = vst.msk [vmem:[#allocation2 + $0x78] sm:$0xf] %vm27, %v560
  %577 = vst.msk [vmem:[#allocation2 + $0x7c] sm:$0xf] %vm27, %v561
  %578 = vst.msk [vmem:[#allocation2 + $0x80] sm:$0xf] %vm27, %v562
  %579 = vst.msk [vmem:[#allocation2 + $0x84] sm:$0xf] %vm27, %v563
  %v584 = vunpack.c.l.b16 %v500
  %v585 = vunpack.c.h.b16 %v500
  %v586 = vunpack.c.l.b16 %v501
  %v587 = vunpack.c.h.b16 %v501
  %v588 = vunpack.c.l.b16 %v502
  %v589 = vunpack.c.h.b16 %v502
  %v590 = vunpack.c.l.b16 %v503
  %v591 = vunpack.c.h.b16 %v503
  %v592 = vpack.c.b16 %v584, %v584
  %v593 = vpack.c.b16 %v585, %v585
  %v594 = vpack.c.b16 %v586, %v586
  %v595 = vpack.c.b16 %v587, %v587
  %v596 = vpack.c.b16 %v588, %v588
  %v597 = vpack.c.b16 %v589, %v589
  %v598 = vpack.c.b16 %v590, %v590
  %v599 = vpack.c.b16 %v591, %v591
  %608 = vst.msk [vmem:[#allocation2 + $0x98] sm:$0xf] %vm27, %v592
  %609 = vst.msk [vmem:[#allocation2 + $0x9c] sm:$0xf] %vm27, %v593
  %610 = vst.msk [vmem:[#allocation2 + $0xa0] sm:$0xf] %vm27, %v594
  %611 = vst.msk [vmem:[#allocation2 + $0xa4] sm:$0xf] %vm27, %v595
  %612 = vst.msk [vmem:[#allocation2 + $0xa8] sm:$0xf] %vm27, %v596
  %613 = vst.msk [vmem:[#allocation2 + $0xac] sm:$0xf] %vm27, %v597
  %614 = vst.msk [vmem:[#allocation2 + $0xb0] sm:$0xf] %vm27, %v598
  %615 = vst.msk [vmem:[#allocation2 + $0xb4] sm:$0xf] %vm27, %v599
  %v620 = vunpack.c.l.b16 %v504
  %v621 = vunpack.c.h.b16 %v504
  %v622 = vunpack.c.l.b16 %v505
  %v623 = vunpack.c.h.b16 %v505
  %v624 = vunpack.c.l.b16 %v506
  %v625 = vunpack.c.h.b16 %v506
  %v626 = vunpack.c.l.b16 %v507
  %v627 = vunpack.c.h.b16 %v507
  %v628 = vpack.c.b16 %v620, %v620
  %v629 = vpack.c.b16 %v621, %v621
  %v630 = vpack.c.b16 %v622, %v622
  %v631 = vpack.c.b16 %v623, %v623
  %v632 = vpack.c.b16 %v624, %v624
  %v633 = vpack.c.b16 %v625, %v625
  %v634 = vpack.c.b16 %v626, %v626
  %v635 = vpack.c.b16 %v627, %v627
  %644 = vst.msk [vmem:[#allocation2 + $0xc8] sm:$0xf] %vm27, %v628
  %645 = vst.msk [vmem:[#allocation2 + $0xcc] sm:$0xf] %vm27, %v629
  %646 = vst.msk [vmem:[#allocation2 + $0xd0] sm:$0xf] %vm27, %v630
  %647 = vst.msk [vmem:[#allocation2 + $0xd4] sm:$0xf] %vm27, %v631
  %648 = vst.msk [vmem:[#allocation2 + $0xd8] sm:$0xf] %vm27, %v632
  %649 = vst.msk [vmem:[#allocation2 + $0xdc] sm:$0xf] %vm27, %v633
  %650 = vst.msk [vmem:[#allocation2 + $0xe0] sm:$0xf] %vm27, %v634
  %651 = vst.msk [vmem:[#allocation2 + $0xe4] sm:$0xf] %vm27, %v635
  %v652 = vld [vmem:[#allocation2] sm:$0xf]
  %v653 = vld [vmem:[#allocation2 + $0x4] sm:$0xf]
  %v654 = vld [vmem:[#allocation2 + $0x8] sm:$0xf]
  %v655 = vld [vmem:[#allocation2 + $0xc] sm:$0xf]
  %v656 = vld [vmem:[#allocation2 + $0x10] sm:$0xf]
  %v657 = vld [vmem:[#allocation2 + $0x14] sm:$0xf]
  %v658 = vld [vmem:[#allocation2 + $0x18] sm:$0xf]
  %v659 = vld [vmem:[#allocation2 + $0x1c] sm:$0xf]
  %v660 = vld [vmem:[#allocation2 + $0x20] sm:$0xf]
  %v661 = vld [vmem:[#allocation2 + $0x24] sm:$0xf]
  %v662 = vld [vmem:[#allocation2 + $0x28] sm:$0xf]
  %v663 = vld [vmem:[#allocation2 + $0x2c] sm:$0xf]
  %v664 = vld [vmem:[#allocation2 + $0x30] sm:$0xf]
  %v665 = vld [vmem:[#allocation2 + $0x34] sm:$0xf]
  %v666 = vld [vmem:[#allocation2 + $0x38] sm:$0xf]
  %v667 = vld [vmem:[#allocation2 + $0x3c] sm:$0xf]
  %v668 = vld [vmem:[#allocation2 + $0x40] sm:$0xf]
  %v669 = vld [vmem:[#allocation2 + $0x44] sm:$0xf]
  %v670 = vld [vmem:[#allocation2 + $0x48] sm:$0xf]
  %v671 = vld [vmem:[#allocation2 + $0x4c] sm:$0xf]
  %v672 = vld [vmem:[#allocation2 + $0x50] sm:$0xf]
  %v673 = vld [vmem:[#allocation2 + $0x54] sm:$0xf]
  %v674 = vld [vmem:[#allocation2 + $0x58] sm:$0xf]
  %v675 = vld [vmem:[#allocation2 + $0x5c] sm:$0xf]
  %v676 = vld [vmem:[#allocation2 + $0x60] sm:$0xf]
  %v677 = vld [vmem:[#allocation2 + $0x64] sm:$0xf]
  %v678 = vld [vmem:[#allocation2 + $0x68] sm:$0xf]
  %v679 = vld [vmem:[#allocation2 + $0x6c] sm:$0xf]
  %v680 = vld [vmem:[#allocation2 + $0x70] sm:$0xf]
  %v681 = vld [vmem:[#allocation2 + $0x74] sm:$0xf]
  %v682 = vld [vmem:[#allocation2 + $0x78] sm:$0xf]
  %v683 = vld [vmem:[#allocation2 + $0x7c] sm:$0xf]
  %v684 = vld [vmem:[#allocation2 + $0x80] sm:$0xf]
  %v685 = vld [vmem:[#allocation2 + $0x84] sm:$0xf]
  %v686 = vld [vmem:[#allocation2 + $0x88] sm:$0xf]
  %v687 = vld [vmem:[#allocation2 + $0x8c] sm:$0xf]
  %v688 = vld [vmem:[#allocation2 + $0x90] sm:$0xf]
  %v689 = vld [vmem:[#allocation2 + $0x94] sm:$0xf]
  %v690 = vld [vmem:[#allocation2 + $0x98] sm:$0xf]
  %v691 = vld [vmem:[#allocation2 + $0x9c] sm:$0xf]
  %v692 = vld [vmem:[#allocation2 + $0xa0] sm:$0xf]
  %v693 = vld [vmem:[#allocation2 + $0xa4] sm:$0xf]
  %v694 = vld [vmem:[#allocation2 + $0xa8] sm:$0xf]
  %v695 = vld [vmem:[#allocation2 + $0xac] sm:$0xf]
  %v696 = vld [vmem:[#allocation2 + $0xb0] sm:$0xf]
  %v697 = vld [vmem:[#allocation2 + $0xb4] sm:$0xf]
  %v698 = vld [vmem:[#allocation2 + $0xb8] sm:$0xf]
  %v699 = vld [vmem:[#allocation2 + $0xbc] sm:$0xf]
  %v744 = vunpack.c.l.b16 %v652
  %v745 = vunpack.c.l.b16 %v653
  %v746 = vunpack.c.l.b16 %v654
  %v747 = vunpack.c.l.b16 %v655
  %v748 = vunpack.c.l.b16 %v656
  %v749 = vunpack.c.l.b16 %v657
  %v750 = vunpack.c.l.b16 %v658
  %v751 = vunpack.c.l.b16 %v659
  %v752 = vunpack.c.l.b16 %v660
  %v753 = vunpack.c.l.b16 %v661
  %v754 = vunpack.c.l.b16 %v662
  %v755 = vunpack.c.l.b16 %v663
  %v756 = vunpack.c.l.b16 %v664
  %v757 = vunpack.c.l.b16 %v665
  %v758 = vunpack.c.l.b16 %v666
  %v759 = vunpack.c.l.b16 %v667
  %v760 = vunpack.c.l.b16 %v668
  %v761 = vunpack.c.l.b16 %v669
  %v762 = vunpack.c.l.b16 %v670
  %v763 = vunpack.c.l.b16 %v671
  %v764 = vunpack.c.l.b16 %v672
  %v765 = vunpack.c.l.b16 %v673
  %v766 = vunpack.c.l.b16 %v674
  %v767 = vunpack.c.l.b16 %v675
  %v768 = vunpack.c.l.b16 %v676
  %v769 = vunpack.c.l.b16 %v677
  %v770 = vunpack.c.l.b16 %v678
  %v771 = vunpack.c.l.b16 %v679
  %v772 = vunpack.c.l.b16 %v680
  %v773 = vunpack.c.l.b16 %v681
  %v774 = vunpack.c.l.b16 %v682
  %v775 = vunpack.c.l.b16 %v683
  %v776 = vunpack.c.l.b16 %v684
  %v777 = vunpack.c.l.b16 %v685
  %v778 = vunpack.c.l.b16 %v686
  %v779 = vunpack.c.l.b16 %v687
  %v780 = vunpack.c.l.b16 %v688
  %v781 = vunpack.c.l.b16 %v689
  %v782 = vunpack.c.l.b16 %v690
  %v783 = vunpack.c.l.b16 %v691
  %v784 = vunpack.c.l.b16 %v692
  %v785 = vunpack.c.l.b16 %v693
  %v786 = vunpack.c.l.b16 %v694
  %v787 = vunpack.c.l.b16 %v695
  %v788 = vpack.c.b16 %v745, %v744
  %v789 = vpack.c.b16 %v747, %v746
  %v790 = vpack.c.b16 %v749, %v748
  %v791 = vpack.c.b16 %v751, %v750
  %v792 = vpack.c.b16 %v753, %v752
  %v793 = vpack.c.b16 %v755, %v754
  %v794 = vpack.c.b16 %v757, %v756
  %v795 = vpack.c.b16 %v759, %v758
  %v796 = vpack.c.b16 %v761, %v760
  %v797 = vpack.c.b16 %v763, %v762
  %v798 = vpack.c.b16 %v765, %v764
  %v799 = vpack.c.b16 %v767, %v766
  %v800 = vpack.c.b16 %v769, %v768
  %v801 = vpack.c.b16 %v771, %v770
  %v802 = vpack.c.b16 %v773, %v772
  %v803 = vpack.c.b16 %v775, %v774
  %v804 = vpack.c.b16 %v777, %v776
  %v805 = vpack.c.b16 %v779, %v778
  %v806 = vpack.c.b16 %v781, %v780
  %v807 = vpack.c.b16 %v783, %v782
  %v808 = vpack.c.b16 %v785, %v784
  %v809 = vpack.c.b16 %v787, %v786
  %v812 = vunpack.c.l.b16 %v696
  %v813 = vunpack.c.l.b16 %v697
  %v814 = vpack.c.b16 %v813, %v812
  %815 = vrot.lane.b32.xlu0 %v789, 32
  %v816 = vpop.permute.xlu0 %815
  %817 = vrot.lane.b32.xlu0 %v790, 32
  %v818 = vpop.permute.xlu0 %817
  %819 = vrot.lane.b32.xlu0 %v791, 32
  %v820 = vpop.permute.xlu0 %819
  %821 = vrot.lane.b32.xlu0 %v792, 32
  %v822 = vpop.permute.xlu0 %821
  %823 = vrot.lane.b32.xlu0 %v793, 32
  %v824 = vpop.permute.xlu0 %823
  %825 = vrot.lane.b32.xlu0 %v794, 32
  %v826 = vpop.permute.xlu0 %825
  %827 = vrot.lane.b32.xlu0 %v795, 32
  %v828 = vpop.permute.xlu0 %827
  %829 = vrot.lane.b32.xlu0 %v796, 32
  %v830 = vpop.permute.xlu0 %829
  %831 = vrot.lane.b32.xlu0 %v797, 32
  %v832 = vpop.permute.xlu0 %831
  %833 = vrot.lane.b32.xlu0 %v798, 32
  %v834 = vpop.permute.xlu0 %833
  %835 = vrot.lane.b32.xlu0 %v799, 32
  %v836 = vpop.permute.xlu0 %835
  %837 = vrot.lane.b32.xlu0 %v800, 32
  %v838 = vpop.permute.xlu0 %837
  %839 = vrot.lane.b32.xlu0 %v801, 32
  %v840 = vpop.permute.xlu0 %839
  %841 = vrot.lane.b32.xlu0 %v802, 32
  %v842 = vpop.permute.xlu0 %841
  %843 = vrot.lane.b32.xlu0 %v803, 32
  %v844 = vpop.permute.xlu0 %843
  %845 = vrot.lane.b32.xlu0 %v804, 32
  %v846 = vpop.permute.xlu0 %845
  %847 = vrot.lane.b32.xlu0 %v805, 32
  %v848 = vpop.permute.xlu0 %847
  %849 = vrot.lane.b32.xlu0 %v806, 32
  %v850 = vpop.permute.xlu0 %849
  %851 = vrot.lane.b32.xlu0 %v807, 32
  %v852 = vpop.permute.xlu0 %851
  %853 = vrot.lane.b32.xlu0 %v808, 32
  %v854 = vpop.permute.xlu0 %853
  %855 = vrot.lane.b32.xlu0 %v809, 32
  %v856 = vpop.permute.xlu0 %855
  %857 = vrot.lane.b32.xlu0 %v814, 32
  %v858 = vpop.permute.xlu0 %857
  %v861 = vunpack.c.l.b16 %v698
  %v862 = vunpack.c.l.b16 %v699
  %v863 = vpack.c.b16 %v862, %v861
  %864 = vrot.lane.b32.xlu0 %v790, 64
  %v865 = vpop.permute.xlu0 %864
  %866 = vrot.lane.b32.xlu0 %v791, 64
  %v867 = vpop.permute.xlu0 %866
  %868 = vrot.lane.b32.xlu0 %v792, 64
  %v869 = vpop.permute.xlu0 %868
  %870 = vrot.lane.b32.xlu0 %v793, 64
  %v871 = vpop.permute.xlu0 %870
  %872 = vrot.lane.b32.xlu0 %v794, 64
  %v873 = vpop.permute.xlu0 %872
  %874 = vrot.lane.b32.xlu0 %v795, 64
  %v875 = vpop.permute.xlu0 %874
  %876 = vrot.lane.b32.xlu0 %v796, 64
  %v877 = vpop.permute.xlu0 %876
  %878 = vrot.lane.b32.xlu0 %v797, 64
  %v879 = vpop.permute.xlu0 %878
  %880 = vrot.lane.b32.xlu0 %v798, 64
  %v881 = vpop.permute.xlu0 %880
  %882 = vrot.lane.b32.xlu0 %v799, 64
  %v883 = vpop.permute.xlu0 %882
  %884 = vrot.lane.b32.xlu0 %v800, 64
  %v885 = vpop.permute.xlu0 %884
  %886 = vrot.lane.b32.xlu0 %v801, 64
  %v887 = vpop.permute.xlu0 %886
  %888 = vrot.lane.b32.xlu0 %v802, 64
  %v889 = vpop.permute.xlu0 %888
  %890 = vrot.lane.b32.xlu0 %v803, 64
  %v891 = vpop.permute.xlu0 %890
  %892 = vrot.lane.b32.xlu0 %v804, 64
  %v893 = vpop.permute.xlu0 %892
  %894 = vrot.lane.b32.xlu0 %v805, 64
  %v895 = vpop.permute.xlu0 %894
  %896 = vrot.lane.b32.xlu0 %v806, 64
  %v897 = vpop.permute.xlu0 %896
  %898 = vrot.lane.b32.xlu0 %v807, 64
  %v899 = vpop.permute.xlu0 %898
  %900 = vrot.lane.b32.xlu0 %v808, 64
  %v901 = vpop.permute.xlu0 %900
  %902 = vrot.lane.b32.xlu0 %v809, 64
  %v903 = vpop.permute.xlu0 %902
  %904 = vrot.lane.b32.xlu0 %v814, 64
  %v905 = vpop.permute.xlu0 %904
  %906 = vrot.lane.b32.xlu0 %v863, 64
  %v907 = vpop.permute.xlu0 %906
  %vm908 = vcmask 261120
  %v911 = vsel %vm908, %v788, %v816
  %v914 = vsel %vm908, %v789, %v818
  %v917 = vsel %vm908, %v790, %v820
  %v920 = vsel %vm908, %v791, %v822
  %v923 = vsel %vm908, %v792, %v824
  %v926 = vsel %vm908, %v793, %v826
  %v929 = vsel %vm908, %v794, %v828
  %v932 = vsel %vm908, %v795, %v830
  %v935 = vsel %vm908, %v796, %v832
  %v938 = vsel %vm908, %v797, %v834
  %v941 = vsel %vm908, %v798, %v836
  %v944 = vsel %vm908, %v799, %v838
  %v947 = vsel %vm908, %v800, %v840
  %v950 = vsel %vm908, %v801, %v842
  %v953 = vsel %vm908, %v802, %v844
  %v956 = vsel %vm908, %v803, %v846
  %v959 = vsel %vm908, %v804, %v848
  %v962 = vsel %vm908, %v805, %v850
  %v965 = vsel %vm908, %v806, %v852
  %v968 = vsel %vm908, %v807, %v854
  %v971 = vsel %vm908, %v808, %v856
  %v974 = vsel %vm908, %v809, %v858
  %vm975 = vcmask 523264
  %v977 = vsel %vm975, %v911, %v865
  %v979 = vsel %vm975, %v914, %v867
  %v981 = vsel %vm975, %v917, %v869
  %v983 = vsel %vm975, %v920, %v871
  %v985 = vsel %vm975, %v923, %v873
  %v987 = vsel %vm975, %v926, %v875
  %v989 = vsel %vm975, %v929, %v877
  %v991 = vsel %vm975, %v932, %v879
  %v993 = vsel %vm975, %v935, %v881
  %v995 = vsel %vm975, %v938, %v883
  %v997 = vsel %vm975, %v941, %v885
  %v999 = vsel %vm975, %v944, %v887
  %v1001 = vsel %vm975, %v947, %v889
  %v1003 = vsel %vm975, %v950, %v891
  %v1005 = vsel %vm975, %v953, %v893
  %v1007 = vsel %vm975, %v956, %v895
  %v1009 = vsel %vm975, %v959, %v897
  %v1011 = vsel %vm975, %v962, %v899
  %v1013 = vsel %vm975, %v965, %v901
  %v1015 = vsel %vm975, %v968, %v903
  %v1017 = vsel %vm975, %v971, %v905
  %v1019 = vsel %vm975, %v974, %v907
  %v1020 = vld [vmem:[%s3] sm:$0xf]
  %v1021 = vld [vmem:[%s3 + $0x4] sm:$0xf]
  %v1022 = vld [vmem:[%s3 + $0x8] sm:$0xf]
  %v1023 = vld [vmem:[%s3 + $0xc] sm:$0xf]
  %v1024 = vld [vmem:[%s3 + $0x10] sm:$0xf]
  %v1025 = vld [vmem:[%s3 + $0x14] sm:$0xf]
  %v1026 = vld [vmem:[%s3 + $0x18] sm:$0xf]
  %v1027 = vld [vmem:[%s3 + $0x1c] sm:$0xf]
  %v1028 = vld [vmem:[%s3 + $0x20] sm:$0xf]
  %v1029 = vld [vmem:[%s3 + $0x24] sm:$0xf]
  %v1030 = vld [vmem:[%s3 + $0x28] sm:$0xf]
  %v1031 = vld [vmem:[%s3 + $0x2c] sm:$0xf]
  %v1032 = vld [vmem:[#allocation2 + $0xc0] sm:$0xf]
  %v1033 = vld [vmem:[#allocation2 + $0xc4] sm:$0xf]
  %v1034 = vld [vmem:[#allocation2 + $0xc8] sm:$0xf]
  %v1035 = vld [vmem:[#allocation2 + $0xcc] sm:$0xf]
  %v1036 = vld [vmem:[#allocation2 + $0xd0] sm:$0xf]
  %v1037 = vld [vmem:[#allocation2 + $0xd4] sm:$0xf]
  %v1038 = vld [vmem:[#allocation2 + $0xd8] sm:$0xf]
  %v1039 = vld [vmem:[#allocation2 + $0xdc] sm:$0xf]
  %v1040 = vld [vmem:[#allocation2 + $0xe0] sm:$0xf]
  %v1041 = vld [vmem:[#allocation2 + $0xe4] sm:$0xf]
  %v1042 = vld [vmem:[#allocation2 + $0xe8] sm:$0xf]
  %v1043 = vld [vmem:[#allocation2 + $0xec] sm:$0xf]
  %v1052 = vunpack.c.l.b16 %v1032
  %v1053 = vunpack.c.l.b16 %v1033
  %v1054 = vunpack.c.l.b16 %v1034
  %v1055 = vunpack.c.l.b16 %v1035
  %v1056 = vunpack.c.l.b16 %v1036
  %v1057 = vunpack.c.l.b16 %v1037
  %v1058 = vunpack.c.l.b16 %v1038
  %v1059 = vunpack.c.l.b16 %v1039
  %v1060 = vpack.c.b16 %v1053, %v1052
  %v1061 = vpack.c.b16 %v1055, %v1054
  %v1062 = vpack.c.b16 %v1057, %v1056
  %v1063 = vpack.c.b16 %v1059, %v1058
  %v1066 = vunpack.c.l.b16 %v1040
  %v1067 = vunpack.c.l.b16 %v1041
  %v1068 = vpack.c.b16 %v1067, %v1066
  %1069 = vrot.lane.b32.xlu0 %v863, 32
  %v1070 = vpop.permute.xlu0 %1069
  %1071 = vrot.lane.b32.xlu0 %v1060, 32
  %v1072 = vpop.permute.xlu0 %1071
  %1073 = vrot.lane.b32.xlu0 %v1061, 32
  %v1074 = vpop.permute.xlu0 %1073
  %1075 = vrot.lane.b32.xlu0 %v1062, 32
  %v1076 = vpop.permute.xlu0 %1075
  %1077 = vrot.lane.b32.xlu0 %v1063, 32
  %v1078 = vpop.permute.xlu0 %1077
  %1079 = vrot.lane.b32.xlu0 %v1068, 32
  %v1080 = vpop.permute.xlu0 %1079
  %v1083 = vunpack.c.l.b16 %v1042
  %v1084 = vunpack.c.l.b16 %v1043
  %v1085 = vpack.c.b16 %v1084, %v1083
  %1086 = vrot.lane.b32.xlu0 %v1060, 64
  %v1087 = vpop.permute.xlu0 %1086
  %1088 = vrot.lane.b32.xlu0 %v1061, 64
  %v1089 = vpop.permute.xlu0 %1088
  %1090 = vrot.lane.b32.xlu0 %v1062, 64
  %v1091 = vpop.permute.xlu0 %1090
  %1092 = vrot.lane.b32.xlu0 %v1063, 64
  %v1093 = vpop.permute.xlu0 %1092
  %1094 = vrot.lane.b32.xlu0 %v1068, 64
  %v1095 = vpop.permute.xlu0 %1094
  %1096 = vrot.lane.b32.xlu0 %v1085, 64
  %v1097 = vpop.permute.xlu0 %1096
  %v1100 = vsel %vm908, %v814, %v1070
  %v1103 = vsel %vm908, %v863, %v1072
  %v1106 = vsel %vm908, %v1060, %v1074
  %v1109 = vsel %vm908, %v1061, %v1076
  %v1112 = vsel %vm908, %v1062, %v1078
  %v1115 = vsel %vm908, %v1063, %v1080
  %v1117 = vsel %vm975, %v1100, %v1087
  %v1119 = vsel %vm975, %v1103, %v1089
  %v1121 = vsel %vm975, %v1106, %v1091
  %v1123 = vsel %vm975, %v1109, %v1093
  %v1125 = vsel %vm975, %v1112, %v1095
  %v1127 = vsel %vm975, %v1115, %v1097
  %s1128 = scalar_lea.vmem %s3, 48
  %v1129 = vld [vmem:[%s1128] sm:$0xf]
  %v1130 = vld [vmem:[%s1128 + $0x4] sm:$0xf]
  %v1131 = vld [vmem:[%s1128 + $0x8] sm:$0xf]
  %v1132 = vld [vmem:[%s1128 + $0xc] sm:$0xf]
  %v1133 = vld [vmem:[%s1128 + $0x10] sm:$0xf]
  %v1134 = vld [vmem:[%s1128 + $0x14] sm:$0xf]
  %v1135 = vld [vmem:[%s1128 + $0x18] sm:$0xf]
  %v1136 = vld [vmem:[%s1128 + $0x1c] sm:$0xf]
  %v1137 = vld [vmem:[%s1128 + $0x20] sm:$0xf]
  %v1138 = vld [vmem:[%s1128 + $0x24] sm:$0xf]
  %v1139 = vld [vmem:[%s1128 + $0x28] sm:$0xf]
  %v1140 = vld [vmem:[%s1128 + $0x2c] sm:$0xf]
  %v1153 = vunpack.c.l.b16 %v1129
  %v1154 = vunpack.c.l.b16 %v1130
  %v1155 = vunpack.c.l.b16 %v1131
  %v1156 = vunpack.c.l.b16 %v1132
  %v1157 = vunpack.c.l.b16 %v1133
  %v1158 = vunpack.c.l.b16 %v1134
  %v1159 = vunpack.c.l.b16 %v1135
  %v1160 = vunpack.c.l.b16 %v1136
  %v1161 = vunpack.c.l.b16 %v1137
  %v1162 = vunpack.c.l.b16 %v1138
  %v1163 = vunpack.c.l.b16 %v1139
  %v1164 = vunpack.c.l.b16 %v1140
  %v1165 = vpack.c.b16 %v1154, %v1153
  %v1166 = vpack.c.b16 %v1156, %v1155
  %v1167 = vpack.c.b16 %v1158, %v1157
  %v1168 = vpack.c.b16 %v1160, %v1159
  %v1169 = vpack.c.b16 %v1162, %v1161
  %v1170 = vpack.c.b16 %v1164, %v1163
  %vm1177 = vcmask 785408
  %v1178 = vsel %vm1177, %v989, 0
  %v1180 = vsel %vm1177, %v991, 0
  %v1182 = vsel %vm1177, %v993, 0
  %v1184 = vsel %vm1177, %v995, 0
  %v1186 = vsel %vm1177, %v997, 0
  %v1188 = vsel %vm1177, %v999, 0
  %v1190 = vsel %vm1177, %v1001, 0
  %v1192 = vsel %vm1177, %v1003, 0
  %v1194 = vsel %vm1177, %v1005, 0
  %v1196 = vsel %vm1177, %v1007, 0
  %v1198 = vsel %vm1177, %v1009, 0
  %v1200 = vsel %vm1177, %v1011, 0
  %v1202 = vsel %vm1177, %v1013, 0
  %v1204 = vsel %vm1177, %v1015, 0
  %v1206 = vsel %vm1177, %v1017, 0
  %v1208 = vsel %vm1177, %v1019, 0
  %v1210 = vsel %vm1177, %v1117, 0
  %v1212 = vsel %vm1177, %v1119, 0
  %v1214 = vsel %vm1177, %v1121, 0
  %v1216 = vsel %vm1177, %v1123, 0
  %v1218 = vsel %vm1177, %v1125, 0
  %v1220 = vsel %vm1177, %v1127, 0
  %1222 = vmatprep.subr.bf16.mxu0 0
  %1223 = vmatpush1.bf16.msra.mxu0 0
  %1224 = vmatprep.subr.bf16.mxu0 0
  %1225 = vmatpush1.bf16.msra.mxu0 0
  %1226 = vmatprep.subr.bf16.mxu0 0
  %1227 = vmatpush1.bf16.msra.mxu0 %v1170
  %1228 = vmatprep.subr.bf16.mxu0 0
  %1229 = vmatpush1.bf16.msra.mxu0 %v1169
  %1230 = vmatprep.subr.bf16.mxu0 0
  %1231 = vmatpush1.bf16.msra.mxu0 %v1168
  %1232 = vmatprep.subr.bf16.mxu0 0
  %1233 = vmatpush1.bf16.msra.mxu0 %v1167
  %1234 = vmatprep.subr.bf16.mxu0 0
  %1235 = vmatpush1.bf16.msra.mxu0 %v1166
  %1236 = vmatprep.subr.bf16.mxu0 0
  %1237 = vmatpush1.bf16.msra.mxu0 %v1165
  %1238 = vmatprep.subr.bf16.mxu0 0
  %1239 = vmatpush2.bf16.msra.mxu0 0
  %1240 = vmatprep.subr.bf16.mxu0 0
  %1241 = vmatpush2.bf16.msra.mxu0 0
  %1242 = vmatprep.subr.bf16.mxu0 0
  %1243 = vmatpush2.bf16.msra.mxu0 0
  %1244 = vmatprep.subr.bf16.mxu0 0
  %1245 = vmatpush2.bf16.msra.mxu0 0
  %1246 = vmatprep.subr.bf16.mxu0 0
  %1247 = vmatpush2.bf16.msra.mxu0 0
  %1248 = vmatprep.subr.bf16.mxu0 0
  %1249 = vmatpush2.bf16.msra.mxu0 0
  %1250 = vmatprep.subr.bf16.mxu0 0
  %1251 = vmatpush2.bf16.msra.mxu0 0
  %1252 = vmatprep.subr.bf16.mxu0 0
  %1253 = vmatpush2.bf16.msra.mxu0 0
  %1254 = vmatprep.mubr.bf16.mxu0 0
  %1255 = vmatmul.mubr.bf16.gmra.mxu0 %v1178
  %v1256 = vpop.f32.mrf.mxu0
  %v1257 = vadd.f32 0.0, %v1256
  %v1258 = vpop.f32.mrf.mxu0
  %v1259 = vpop.f32.mrf.mxu0
  %v1260 = vadd.f32 0.0, %v1259
  %v1261 = vpop.f32.mrf.mxu0
  %1262 = vmatprep.mubr.bf16.mxu0 0
  %1263 = vmatmul.mubr.bf16.gmra.mxu0 %v1180
  %v1264 = vpop.f32.mrf.mxu0
  %v1265 = vadd.f32 0.0, %v1264
  %v1266 = vpop.f32.mrf.mxu0
  %v1267 = vpop.f32.mrf.mxu0
  %v1268 = vadd.f32 0.0, %v1267
  %v1269 = vpop.f32.mrf.mxu0
  %1270 = vmatprep.mubr.bf16.mxu0 0
  %1271 = vmatmul.mubr.bf16.gmra.mxu0 %v1182
  %v1272 = vpop.f32.mrf.mxu0
  %v1273 = vadd.f32 0.0, %v1272
  %v1274 = vpop.f32.mrf.mxu0
  %v1275 = vpop.f32.mrf.mxu0
  %v1276 = vadd.f32 0.0, %v1275
  %v1277 = vpop.f32.mrf.mxu0
  %1278 = vmatprep.mubr.bf16.mxu0 0
  %1279 = vmatmul.mubr.bf16.gmra.mxu0 %v1184
  %v1280 = vpop.f32.mrf.mxu0
  %v1281 = vadd.f32 0.0, %v1280
  %v1282 = vpop.f32.mrf.mxu0
  %v1283 = vpop.f32.mrf.mxu0
  %v1284 = vadd.f32 0.0, %v1283
  %v1285 = vpop.f32.mrf.mxu0
  %1286 = vmatprep.mubr.bf16.mxu0 0
  %1287 = vmatmul.mubr.bf16.gmra.mxu0 %v1186
  %v1288 = vpop.f32.mrf.mxu0
  %v1289 = vpop.f32.mrf.mxu0
  %v1290 = vpop.f32.mrf.mxu0
  %v1291 = vpop.f32.mrf.mxu0
  %1292 = vmatprep.mubr.bf16.mxu0 0
  %1293 = vmatmul.mubr.bf16.gmra.mxu0 %v1188
  %v1294 = vpop.f32.mrf.mxu0
  %v1295 = vpop.f32.mrf.mxu0
  %v1296 = vpop.f32.mrf.mxu0
  %v1297 = vpop.f32.mrf.mxu0
  %1298 = vmatprep.mubr.bf16.mxu0 0
  %1299 = vmatmul.mubr.bf16.gmra.mxu0 %v1190
  %v1300 = vpop.f32.mrf.mxu0
  %v1301 = vadd.f32 0.0, %v1300
  %v1302 = vpop.f32.mrf.mxu0
  %v1303 = vpop.f32.mrf.mxu0
  %v1304 = vadd.f32 0.0, %v1303
  %v1305 = vpop.f32.mrf.mxu0
  %1306 = vmatprep.mubr.bf16.mxu0 0
  %1307 = vmatmul.mubr.bf16.gmra.mxu0 %v1192
  %v1308 = vpop.f32.mrf.mxu0
  %v1309 = vadd.f32 0.0, %v1308
  %v1310 = vpop.f32.mrf.mxu0
  %v1311 = vpop.f32.mrf.mxu0
  %v1312 = vadd.f32 0.0, %v1311
  %v1313 = vpop.f32.mrf.mxu0
  %1314 = vmatprep.mubr.bf16.mxu0 0
  %1315 = vmatmul.mubr.bf16.gmra.mxu0 %v1194
  %v1316 = vpop.f32.mrf.mxu0
  %v1317 = vadd.f32 0.0, %v1316
  %v1318 = vpop.f32.mrf.mxu0
  %v1319 = vpop.f32.mrf.mxu0
  %v1320 = vadd.f32 0.0, %v1319
  %v1321 = vpop.f32.mrf.mxu0
  %1322 = vmatprep.mubr.bf16.mxu0 0
  %1323 = vmatmul.mubr.bf16.gmra.mxu0 %v1196
  %v1324 = vpop.f32.mrf.mxu0
  %v1325 = vadd.f32 0.0, %v1324
  %v1326 = vpop.f32.mrf.mxu0
  %v1327 = vpop.f32.mrf.mxu0
  %v1328 = vadd.f32 0.0, %v1327
  %v1329 = vpop.f32.mrf.mxu0
  %1330 = vmatprep.mubr.bf16.mxu0 0
  %1331 = vmatmul.mubr.bf16.gmra.mxu0 %v1198
  %v1332 = vpop.f32.mrf.mxu0
  %v1333 = vpop.f32.mrf.mxu0
  %v1334 = vpop.f32.mrf.mxu0
  %v1335 = vpop.f32.mrf.mxu0
  %1336 = vmatprep.mubr.bf16.mxu0 0
  %1337 = vmatmul.mubr.bf16.gmra.mxu0 %v1200
  %v1338 = vpop.f32.mrf.mxu0
  %v1339 = vpop.f32.mrf.mxu0
  %v1340 = vpop.f32.mrf.mxu0
  %v1341 = vpop.f32.mrf.mxu0
  %1342 = vmatprep.mubr.bf16.mxu0 0
  %1343 = vmatmul.mubr.bf16.gmra.mxu0 %v1202
  %v1344 = vpop.f32.mrf.mxu0
  %v1345 = vadd.f32 0.0, %v1344
  %v1346 = vpop.f32.mrf.mxu0
  %v1347 = vpop.f32.mrf.mxu0
  %v1348 = vadd.f32 0.0, %v1347
  %v1349 = vpop.f32.mrf.mxu0
  %1350 = vmatprep.mubr.bf16.mxu0 0
  %1351 = vmatmul.mubr.bf16.gmra.mxu0 %v1204
  %v1352 = vpop.f32.mrf.mxu0
  %v1353 = vadd.f32 0.0, %v1352
  %v1354 = vpop.f32.mrf.mxu0
  %v1355 = vpop.f32.mrf.mxu0
  %v1356 = vadd.f32 0.0, %v1355
  %v1357 = vpop.f32.mrf.mxu0
  %1358 = vmatprep.mubr.bf16.mxu0 0
  %1359 = vmatmul.mubr.bf16.gmra.mxu0 %v1206
  %v1360 = vpop.f32.mrf.mxu0
  %v1361 = vadd.f32 0.0, %v1360
  %v1362 = vpop.f32.mrf.mxu0
  %v1363 = vpop.f32.mrf.mxu0
  %v1364 = vadd.f32 0.0, %v1363
  %v1365 = vpop.f32.mrf.mxu0
  %1366 = vmatprep.mubr.bf16.mxu0 0
  %1367 = vmatmul.mubr.bf16.gmra.mxu0 %v1208
  %v1368 = vpop.f32.mrf.mxu0
  %v1369 = vadd.f32 0.0, %v1368
  %v1370 = vpop.f32.mrf.mxu0
  %v1371 = vpop.f32.mrf.mxu0
  %v1372 = vadd.f32 0.0, %v1371
  %v1373 = vpop.f32.mrf.mxu0
  %1374 = vmatprep.mubr.bf16.mxu0 0
  %1375 = vmatmul.mubr.bf16.gmra.mxu0 %v1210
  %v1376 = vpop.f32.mrf.mxu0
  %v1377 = vpop.f32.mrf.mxu0
  %v1378 = vpop.f32.mrf.mxu0
  %v1379 = vpop.f32.mrf.mxu0
  %1380 = vmatprep.mubr.bf16.mxu0 0
  %1381 = vmatmul.mubr.bf16.gmra.mxu0 %v1212
  %v1382 = vpop.f32.mrf.mxu0
  %v1383 = vpop.f32.mrf.mxu0
  %v1384 = vpop.f32.mrf.mxu0
  %v1385 = vpop.f32.mrf.mxu0
  %1386 = vmatprep.mubr.bf16.mxu0 0
  %1387 = vmatmul.mubr.bf16.gmra.mxu0 %v1214
  %v1388 = vpop.f32.mrf.mxu0
  %v1389 = vadd.f32 0.0, %v1388
  %v1390 = vpop.f32.mrf.mxu0
  %v1391 = vpop.f32.mrf.mxu0
  %v1392 = vadd.f32 0.0, %v1391
  %v1393 = vpop.f32.mrf.mxu0
  %1394 = vmatprep.mubr.bf16.mxu0 0
  %1395 = vmatmul.mubr.bf16.gmra.mxu0 %v1216
  %v1396 = vpop.f32.mrf.mxu0
  %v1397 = vadd.f32 0.0, %v1396
  %v1398 = vpop.f32.mrf.mxu0
  %v1399 = vpop.f32.mrf.mxu0
  %v1400 = vadd.f32 0.0, %v1399
  %v1401 = vpop.f32.mrf.mxu0
  %1402 = vmatprep.mubr.bf16.mxu0 0
  %1403 = vmatmul.mubr.bf16.gmra.mxu0 %v1218
  %v1404 = vpop.f32.mrf.mxu0
  %v1405 = vadd.f32 0.0, %v1404
  %v1406 = vpop.f32.mrf.mxu0
  %v1407 = vpop.f32.mrf.mxu0
  %v1408 = vadd.f32 0.0, %v1407
  %v1409 = vpop.f32.mrf.mxu0
  %1410 = vmatprep.mubr.bf16.mxu0 0
  %1411 = vmatmul.mubr.bf16.gmra.mxu0 %v1220
  %v1412 = vpop.f32.mrf.mxu0
  %v1413 = vadd.f32 0.0, %v1412
  %v1414 = vpop.f32.mrf.mxu0
  %v1415 = vpop.f32.mrf.mxu0
  %v1416 = vadd.f32 0.0, %v1415
  %v1417 = vpop.f32.mrf.mxu0
  %1418 = vdwg.mxu0
  %v1419 = vld [vmem:[#allocation2 + $0x60] sm:$0xf]
  %v1420 = vld [vmem:[#allocation2 + $0x64] sm:$0xf]
  %v1421 = vld [vmem:[#allocation2 + $0x68] sm:$0xf]
  %v1422 = vld [vmem:[#allocation2 + $0x6c] sm:$0xf]
  %v1423 = vld [vmem:[#allocation2 + $0x70] sm:$0xf]
  %v1424 = vld [vmem:[#allocation2 + $0x74] sm:$0xf]
  %v1425 = vld [vmem:[#allocation2 + $0x78] sm:$0xf]
  %v1426 = vld [vmem:[#allocation2 + $0x7c] sm:$0xf]
  %v1427 = vld [vmem:[#allocation2 + $0x80] sm:$0xf]
  %v1428 = vld [vmem:[#allocation2 + $0x84] sm:$0xf]
  %v1429 = vld [vmem:[#allocation2 + $0x88] sm:$0xf]
  %v1430 = vld [vmem:[#allocation2 + $0x8c] sm:$0xf]
  %v1431 = vld [vmem:[#allocation2 + $0x90] sm:$0xf]
  %v1432 = vld [vmem:[#allocation2 + $0x94] sm:$0xf]
  %v1433 = vld [vmem:[#allocation2 + $0x98] sm:$0xf]
  %v1434 = vld [vmem:[#allocation2 + $0x9c] sm:$0xf]
  %v1435 = vld [vmem:[#allocation2 + $0xa0] sm:$0xf]
  %v1436 = vld [vmem:[#allocation2 + $0xa4] sm:$0xf]
  %v1437 = vld [vmem:[#allocation2 + $0xa8] sm:$0xf]
  %v1438 = vld [vmem:[#allocation2 + $0xac] sm:$0xf]
  %v1439 = vld [vmem:[#allocation2 + $0xb0] sm:$0xf]
  %v1440 = vld [vmem:[#allocation2 + $0xb4] sm:$0xf]
  %v1441 = vld [vmem:[#allocation2 + $0xb8] sm:$0xf]
  %v1442 = vld [vmem:[#allocation2 + $0xbc] sm:$0xf]
  %v1443 = vld [vmem:[#allocation2 + $0xc0] sm:$0xf]
  %v1444 = vld [vmem:[#allocation2 + $0xc4] sm:$0xf]
  %v1445 = vld [vmem:[#allocation2 + $0xc8] sm:$0xf]
  %v1446 = vld [vmem:[#allocation2 + $0xcc] sm:$0xf]
  %v1447 = vld [vmem:[#allocation2 + $0xd0] sm:$0xf]
  %v1448 = vld [vmem:[#allocation2 + $0xd4] sm:$0xf]
  %v1449 = vld [vmem:[#allocation2 + $0xd8] sm:$0xf]
  %v1450 = vld [vmem:[#allocation2 + $0xdc] sm:$0xf]
  %v1451 = vld [vmem:[#allocation2 + $0xe0] sm:$0xf]
  %v1452 = vld [vmem:[#allocation2 + $0xe4] sm:$0xf]
  %v1453 = vld [vmem:[#allocation2 + $0xe8] sm:$0xf]
  %v1454 = vld [vmem:[#allocation2 + $0xec] sm:$0xf]
  %v1455 = vld [vmem:[#allocation2 + $0xf0] sm:$0xf]
  %v1456 = vld [vmem:[#allocation2 + $0xf4] sm:$0xf]
  %v1457 = vld [vmem:[#allocation2 + $0xf8] sm:$0xf]
  %v1458 = vld [vmem:[#allocation2 + $0xfc] sm:$0xf]
  %v1459 = vld [vmem:[#allocation2 + $0x100] sm:$0xf]
  %v1460 = vld [vmem:[#allocation2 + $0x104] sm:$0xf]
  %v1461 = vld [vmem:[#allocation2 + $0x108] sm:$0xf]
  %v1462 = vld [vmem:[#allocation2 + $0x10c] sm:$0xf]
  %v1463 = vld [vmem:[#allocation2 + $0x110] sm:$0xf]
  %v1464 = vld [vmem:[#allocation2 + $0x114] sm:$0xf]
  %v1465 = vld [vmem:[#allocation2 + $0x118] sm:$0xf]
  %v1466 = vld [vmem:[#allocation2 + $0x11c] sm:$0xf]
  %v1511 = vunpack.c.l.b16 %v1419
  %v1512 = vunpack.c.l.b16 %v1420
  %v1513 = vunpack.c.l.b16 %v1421
  %v1514 = vunpack.c.l.b16 %v1422
  %v1515 = vunpack.c.l.b16 %v1423
  %v1516 = vunpack.c.l.b16 %v1424
  %v1517 = vunpack.c.l.b16 %v1425
  %v1518 = vunpack.c.l.b16 %v1426
  %v1519 = vunpack.c.l.b16 %v1427
  %v1520 = vunpack.c.l.b16 %v1428
  %v1521 = vunpack.c.l.b16 %v1429
  %v1522 = vunpack.c.l.b16 %v1430
  %v1523 = vunpack.c.l.b16 %v1431
  %v1524 = vunpack.c.l.b16 %v1432
  %v1525 = vunpack.c.l.b16 %v1433
  %v1526 = vunpack.c.l.b16 %v1434
  %v1527 = vunpack.c.l.b16 %v1435
  %v1528 = vunpack.c.l.b16 %v1436
  %v1529 = vunpack.c.l.b16 %v1437
  %v1530 = vunpack.c.l.b16 %v1438
  %v1531 = vunpack.c.l.b16 %v1439
  %v1532 = vunpack.c.l.b16 %v1440
  %v1533 = vunpack.c.l.b16 %v1441
  %v1534 = vunpack.c.l.b16 %v1442
  %v1535 = vunpack.c.l.b16 %v1443
  %v1536 = vunpack.c.l.b16 %v1444
  %v1537 = vunpack.c.l.b16 %v1445
  %v1538 = vunpack.c.l.b16 %v1446
  %v1539 = vunpack.c.l.b16 %v1447
  %v1540 = vunpack.c.l.b16 %v1448
  %v1541 = vunpack.c.l.b16 %v1449
  %v1542 = vunpack.c.l.b16 %v1450
  %v1543 = vunpack.c.l.b16 %v1451
  %v1544 = vunpack.c.l.b16 %v1452
  %v1545 = vunpack.c.l.b16 %v1453
  %v1546 = vunpack.c.l.b16 %v1454
  %v1547 = vunpack.c.l.b16 %v1455
  %v1548 = vunpack.c.l.b16 %v1456
  %v1549 = vunpack.c.l.b16 %v1457
  %v1550 = vunpack.c.l.b16 %v1458
  %v1551 = vunpack.c.l.b16 %v1459
  %v1552 = vunpack.c.l.b16 %v1460
  %v1553 = vunpack.c.l.b16 %v1461
  %v1554 = vunpack.c.l.b16 %v1462
  %v1555 = vpack.c.b16 %v1512, %v1511
  %v1556 = vpack.c.b16 %v1514, %v1513
  %v1557 = vpack.c.b16 %v1516, %v1515
  %v1558 = vpack.c.b16 %v1518, %v1517
  %v1559 = vpack.c.b16 %v1520, %v1519
  %v1560 = vpack.c.b16 %v1522, %v1521
  %v1561 = vpack.c.b16 %v1524, %v1523
  %v1562 = vpack.c.b16 %v1526, %v1525
  %v1563 = vpack.c.b16 %v1528, %v1527
  %v1564 = vpack.c.b16 %v1530, %v1529
  %v1565 = vpack.c.b16 %v1532, %v1531
  %v1566 = vpack.c.b16 %v1534, %v1533
  %v1567 = vpack.c.b16 %v1536, %v1535
  %v1568 = vpack.c.b16 %v1538, %v1537
  %v1569 = vpack.c.b16 %v1540, %v1539
  %v1570 = vpack.c.b16 %v1542, %v1541
  %v1571 = vpack.c.b16 %v1544, %v1543
  %v1572 = vpack.c.b16 %v1546, %v1545
  %v1573 = vpack.c.b16 %v1548, %v1547
  %v1574 = vpack.c.b16 %v1550, %v1549
  %v1575 = vpack.c.b16 %v1552, %v1551
  %v1576 = vpack.c.b16 %v1554, %v1553
  %v1579 = vunpack.c.l.b16 %v1463
  %v1580 = vunpack.c.l.b16 %v1464
  %v1581 = vpack.c.b16 %v1580, %v1579
  %1582 = vrot.lane.b32.xlu0 %v1556, 32
  %v1583 = vpop.permute.xlu0 %1582
  %1584 = vrot.lane.b32.xlu0 %v1557, 32
  %v1585 = vpop.permute.xlu0 %1584
  %1586 = vrot.lane.b32.xlu0 %v1558, 32
  %v1587 = vpop.permute.xlu0 %1586
  %1588 = vrot.lane.b32.xlu0 %v1559, 32
  %v1589 = vpop.permute.xlu0 %1588
  %1590 = vrot.lane.b32.xlu0 %v1560, 32
  %v1591 = vpop.permute.xlu0 %1590
  %1592 = vrot.lane.b32.xlu0 %v1561, 32
  %v1593 = vpop.permute.xlu0 %1592
  %1594 = vrot.lane.b32.xlu0 %v1562, 32
  %v1595 = vpop.permute.xlu0 %1594
  %1596 = vrot.lane.b32.xlu0 %v1563, 32
  %v1597 = vpop.permute.xlu0 %1596
  %1598 = vrot.lane.b32.xlu0 %v1564, 32
  %v1599 = vpop.permute.xlu0 %1598
  %1600 = vrot.lane.b32.xlu0 %v1565, 32
  %v1601 = vpop.permute.xlu0 %1600
  %1602 = vrot.lane.b32.xlu0 %v1566, 32
  %v1603 = vpop.permute.xlu0 %1602
  %1604 = vrot.lane.b32.xlu0 %v1567, 32
  %v1605 = vpop.permute.xlu0 %1604
  %1606 = vrot.lane.b32.xlu0 %v1568, 32
  %v1607 = vpop.permute.xlu0 %1606
  %1608 = vrot.lane.b32.xlu0 %v1569, 32
  %v1609 = vpop.permute.xlu0 %1608
  %1610 = vrot.lane.b32.xlu0 %v1570, 32
  %v1611 = vpop.permute.xlu0 %1610
  %1612 = vrot.lane.b32.xlu0 %v1571, 32
  %v1613 = vpop.permute.xlu0 %1612
  %1614 = vrot.lane.b32.xlu0 %v1572, 32
  %v1615 = vpop.permute.xlu0 %1614
  %1616 = vrot.lane.b32.xlu0 %v1573, 32
  %v1617 = vpop.permute.xlu0 %1616
  %1618 = vrot.lane.b32.xlu0 %v1574, 32
  %v1619 = vpop.permute.xlu0 %1618
  %1620 = vrot.lane.b32.xlu0 %v1575, 32
  %v1621 = vpop.permute.xlu0 %1620
  %1622 = vrot.lane.b32.xlu0 %v1576, 32
  %v1623 = vpop.permute.xlu0 %1622
  %1624 = vrot.lane.b32.xlu0 %v1581, 32
  %v1625 = vpop.permute.xlu0 %1624
  %v1628 = vunpack.c.l.b16 %v1465
  %v1629 = vunpack.c.l.b16 %v1466
  %v1630 = vpack.c.b16 %v1629, %v1628
  %1631 = vrot.lane.b32.xlu0 %v1557, 64
  %v1632 = vpop.permute.xlu0 %1631
  %1633 = vrot.lane.b32.xlu0 %v1558, 64
  %v1634 = vpop.permute.xlu0 %1633
  %1635 = vrot.lane.b32.xlu0 %v1559, 64
  %v1636 = vpop.permute.xlu0 %1635
  %1637 = vrot.lane.b32.xlu0 %v1560, 64
  %v1638 = vpop.permute.xlu0 %1637
  %1639 = vrot.lane.b32.xlu0 %v1561, 64
  %v1640 = vpop.permute.xlu0 %1639
  %1641 = vrot.lane.b32.xlu0 %v1562, 64
  %v1642 = vpop.permute.xlu0 %1641
  %1643 = vrot.lane.b32.xlu0 %v1563, 64
  %v1644 = vpop.permute.xlu0 %1643
  %1645 = vrot.lane.b32.xlu0 %v1564, 64
  %v1646 = vpop.permute.xlu0 %1645
  %1647 = vrot.lane.b32.xlu0 %v1565, 64
  %v1648 = vpop.permute.xlu0 %1647
  %1649 = vrot.lane.b32.xlu0 %v1566, 64
  %v1650 = vpop.permute.xlu0 %1649
  %1651 = vrot.lane.b32.xlu0 %v1567, 64
  %v1652 = vpop.permute.xlu0 %1651
  %1653 = vrot.lane.b32.xlu0 %v1568, 64
  %v1654 = vpop.permute.xlu0 %1653
  %1655 = vrot.lane.b32.xlu0 %v1569, 64
  %v1656 = vpop.permute.xlu0 %1655
  %1657 = vrot.lane.b32.xlu0 %v1570, 64
  %v1658 = vpop.permute.xlu0 %1657
  %1659 = vrot.lane.b32.xlu0 %v1571, 64
  %v1660 = vpop.permute.xlu0 %1659
  %1661 = vrot.lane.b32.xlu0 %v1572, 64
  %v1662 = vpop.permute.xlu0 %1661
  %1663 = vrot.lane.b32.xlu0 %v1573, 64
  %v1664 = vpop.permute.xlu0 %1663
  %1665 = vrot.lane.b32.xlu0 %v1574, 64
  %v1666 = vpop.permute.xlu0 %1665
  %1667 = vrot.lane.b32.xlu0 %v1575, 64
  %v1668 = vpop.permute.xlu0 %1667
  %1669 = vrot.lane.b32.xlu0 %v1576, 64
  %v1670 = vpop.permute.xlu0 %1669
  %1671 = vrot.lane.b32.xlu0 %v1581, 64
  %v1672 = vpop.permute.xlu0 %1671
  %1673 = vrot.lane.b32.xlu0 %v1630, 64
  %v1674 = vpop.permute.xlu0 %1673
  %v1677 = vsel %vm908, %v1555, %v1583
  %v1680 = vsel %vm908, %v1556, %v1585
  %v1683 = vsel %vm908, %v1557, %v1587
  %v1686 = vsel %vm908, %v1558, %v1589
  %v1689 = vsel %vm908, %v1559, %v1591
  %v1692 = vsel %vm908, %v1560, %v1593
  %v1695 = vsel %vm908, %v1561, %v1595
  %v1698 = vsel %vm908, %v1562, %v1597
  %v1701 = vsel %vm908, %v1563, %v1599
  %v1704 = vsel %vm908, %v1564, %v1601
  %v1707 = vsel %vm908, %v1565, %v1603
  %v1710 = vsel %vm908, %v1566, %v1605
  %v1713 = vsel %vm908, %v1567, %v1607
  %v1716 = vsel %vm908, %v1568, %v1609
  %v1719 = vsel %vm908, %v1569, %v1611
  %v1722 = vsel %vm908, %v1570, %v1613
  %v1725 = vsel %vm908, %v1571, %v1615
  %v1728 = vsel %vm908, %v1572, %v1617
  %v1731 = vsel %vm908, %v1573, %v1619
  %v1734 = vsel %vm908, %v1574, %v1621
  %v1737 = vsel %vm908, %v1575, %v1623
  %v1740 = vsel %vm908, %v1576, %v1625
  %v1742 = vsel %vm975, %v1677, %v1632
  %v1744 = vsel %vm975, %v1680, %v1634
  %v1746 = vsel %vm975, %v1683, %v1636
  %v1748 = vsel %vm975, %v1686, %v1638
  %v1750 = vsel %vm975, %v1689, %v1640
  %v1752 = vsel %vm975, %v1692, %v1642
  %v1754 = vsel %vm975, %v1695, %v1644
  %v1756 = vsel %vm975, %v1698, %v1646
  %v1758 = vsel %vm975, %v1701, %v1648
  %v1760 = vsel %vm975, %v1704, %v1650
  %v1762 = vsel %vm975, %v1707, %v1652
  %v1764 = vsel %vm975, %v1710, %v1654
  %v1766 = vsel %vm975, %v1713, %v1656
  %v1768 = vsel %vm975, %v1716, %v1658
  %v1770 = vsel %vm975, %v1719, %v1660
  %v1772 = vsel %vm975, %v1722, %v1662
  %v1774 = vsel %vm975, %v1725, %v1664
  %v1776 = vsel %vm975, %v1728, %v1666
  %v1778 = vsel %vm975, %v1731, %v1668
  %v1780 = vsel %vm975, %v1734, %v1670
  %v1782 = vsel %vm975, %v1737, %v1672
  %v1784 = vsel %vm975, %v1740, %v1674
  %s1785 = scalar_lea.vmem %s3, 96
  %v1786 = vld [vmem:[%s1785] sm:$0xf]
  %v1787 = vld [vmem:[%s1785 + $0x4] sm:$0xf]
  %v1788 = vld [vmem:[%s1785 + $0x8] sm:$0xf]
  %v1789 = vld [vmem:[%s1785 + $0xc] sm:$0xf]
  %v1790 = vld [vmem:[%s1785 + $0x10] sm:$0xf]
  %v1791 = vld [vmem:[%s1785 + $0x14] sm:$0xf]
  %v1792 = vld [vmem:[%s1785 + $0x18] sm:$0xf]
  %v1793 = vld [vmem:[%s1785 + $0x1c] sm:$0xf]
  %v1794 = vld [vmem:[%s1785 + $0x20] sm:$0xf]
  %v1795 = vld [vmem:[%s1785 + $0x24] sm:$0xf]
  %v1796 = vld [vmem:[%s1785 + $0x28] sm:$0xf]
  %v1797 = vld [vmem:[%s1785 + $0x2c] sm:$0xf]
  %v1810 = vunpack.c.l.b16 %v1786
  %v1811 = vunpack.c.l.b16 %v1787
  %v1812 = vunpack.c.l.b16 %v1788
  %v1813 = vunpack.c.l.b16 %v1789
  %v1814 = vunpack.c.l.b16 %v1790
  %v1815 = vunpack.c.l.b16 %v1791
  %v1816 = vunpack.c.l.b16 %v1792
  %v1817 = vunpack.c.l.b16 %v1793
  %v1818 = vunpack.c.l.b16 %v1794
  %v1819 = vunpack.c.l.b16 %v1795
  %v1820 = vunpack.c.l.b16 %v1796
  %v1821 = vunpack.c.l.b16 %v1797
  %v1822 = vpack.c.b16 %v1811, %v1810
  %v1823 = vpack.c.b16 %v1813, %v1812
  %v1824 = vpack.c.b16 %v1815, %v1814
  %v1825 = vpack.c.b16 %v1817, %v1816
  %v1826 = vpack.c.b16 %v1819, %v1818
  %v1827 = vpack.c.b16 %v1821, %v1820
  %v1834 = vsel %vm1177, %v1742, 0
  %v1836 = vsel %vm1177, %v1744, 0
  %v1838 = vsel %vm1177, %v1746, 0
  %v1840 = vsel %vm1177, %v1748, 0
  %v1842 = vsel %vm1177, %v1750, 0
  %v1844 = vsel %vm1177, %v1752, 0
  %v1846 = vsel %vm1177, %v1754, 0
  %v1848 = vsel %vm1177, %v1756, 0
  %v1850 = vsel %vm1177, %v1758, 0
  %v1852 = vsel %vm1177, %v1760, 0
  %v1854 = vsel %vm1177, %v1762, 0
  %v1856 = vsel %vm1177, %v1764, 0
  %v1858 = vsel %vm1177, %v1766, 0
  %v1860 = vsel %vm1177, %v1768, 0
  %v1862 = vsel %vm1177, %v1770, 0
  %v1864 = vsel %vm1177, %v1772, 0
  %v1866 = vsel %vm1177, %v1774, 0
  %v1868 = vsel %vm1177, %v1776, 0
  %v1870 = vsel %vm1177, %v1778, 0
  %v1872 = vsel %vm1177, %v1780, 0
  %v1874 = vsel %vm1177, %v1782, 0
  %v1876 = vsel %vm1177, %v1784, 0
  %1878 = vmatprep.subr.bf16.mxu0 0
  %1879 = vmatpush1.bf16.msra.mxu0 0
  %1880 = vmatprep.subr.bf16.mxu0 0
  %1881 = vmatpush1.bf16.msra.mxu0 0
  %1882 = vmatprep.subr.bf16.mxu0 0
  %1883 = vmatpush1.bf16.msra.mxu0 %v1827
  %1884 = vmatprep.subr.bf16.mxu0 0
  %1885 = vmatpush1.bf16.msra.mxu0 %v1826
  %1886 = vmatprep.subr.bf16.mxu0 0
  %1887 = vmatpush1.bf16.msra.mxu0 %v1825
  %1888 = vmatprep.subr.bf16.mxu0 0
  %1889 = vmatpush1.bf16.msra.mxu0 %v1824
  %1890 = vmatprep.subr.bf16.mxu0 0
  %1891 = vmatpush1.bf16.msra.mxu0 %v1823
  %1892 = vmatprep.subr.bf16.mxu0 0
  %1893 = vmatpush1.bf16.msra.mxu0 %v1822
  %1894 = vmatprep.subr.bf16.mxu0 0
  %1895 = vmatpush2.bf16.msra.mxu0 0
  %1896 = vmatprep.subr.bf16.mxu0 0
  %1897 = vmatpush2.bf16.msra.mxu0 0
  %1898 = vmatprep.subr.bf16.mxu0 0
  %1899 = vmatpush2.bf16.msra.mxu0 0
  %1900 = vmatprep.subr.bf16.mxu0 0
  %1901 = vmatpush2.bf16.msra.mxu0 0
  %1902 = vmatprep.subr.bf16.mxu0 0
  %1903 = vmatpush2.bf16.msra.mxu0 0
  %1904 = vmatprep.subr.bf16.mxu0 0
  %1905 = vmatpush2.bf16.msra.mxu0 0
  %1906 = vmatprep.subr.bf16.mxu0 0
  %1907 = vmatpush2.bf16.msra.mxu0 0
  %1908 = vmatprep.subr.bf16.mxu0 0
  %1909 = vmatpush2.bf16.msra.mxu0 0
  %1910 = vmatprep.mubr.bf16.mxu0 0
  %1911 = vmatmul.mubr.bf16.gmra.mxu0 %v1834
  %v1912 = vpop.f32.mrf.mxu0
  %v1913 = vadd.f32 0.0, %v1912
  %v1914 = vpop.f32.mrf.mxu0
  %v1915 = vpop.f32.mrf.mxu0
  %v1916 = vadd.f32 0.0, %v1915
  %v1917 = vpop.f32.mrf.mxu0
  %1918 = vmatprep.mubr.bf16.mxu0 0
  %1919 = vmatmul.mubr.bf16.gmra.mxu0 %v1836
  %v1920 = vpop.f32.mrf.mxu0
  %v1921 = vadd.f32 0.0, %v1920
  %v1922 = vpop.f32.mrf.mxu0
  %v1923 = vpop.f32.mrf.mxu0
  %v1924 = vadd.f32 0.0, %v1923
  %v1925 = vpop.f32.mrf.mxu0
  %1926 = vmatprep.mubr.bf16.mxu0 0
  %1927 = vmatmul.mubr.bf16.gmra.mxu0 %v1838
  %v1928 = vpop.f32.mrf.mxu0
  %v1929 = vadd.f32 0.0, %v1928
  %v1930 = vpop.f32.mrf.mxu0
  %v1931 = vpop.f32.mrf.mxu0
  %v1932 = vadd.f32 0.0, %v1931
  %v1933 = vpop.f32.mrf.mxu0
  %1934 = vmatprep.mubr.bf16.mxu0 0
  %1935 = vmatmul.mubr.bf16.gmra.mxu0 %v1840
  %v1936 = vpop.f32.mrf.mxu0
  %v1937 = vadd.f32 0.0, %v1936
  %v1938 = vpop.f32.mrf.mxu0
  %v1939 = vpop.f32.mrf.mxu0
  %v1940 = vadd.f32 0.0, %v1939
  %v1941 = vpop.f32.mrf.mxu0
  %1942 = vmatprep.mubr.bf16.mxu0 0
  %1943 = vmatmul.mubr.bf16.gmra.mxu0 %v1842
  %v1944 = vpop.f32.mrf.mxu0
  %v1945 = vpop.f32.mrf.mxu0
  %v1946 = vpop.f32.mrf.mxu0
  %v1947 = vpop.f32.mrf.mxu0
  %1948 = vmatprep.mubr.bf16.mxu0 0
  %1949 = vmatmul.mubr.bf16.gmra.mxu0 %v1844
  %v1950 = vpop.f32.mrf.mxu0
  %v1951 = vpop.f32.mrf.mxu0
  %v1952 = vpop.f32.mrf.mxu0
  %v1953 = vpop.f32.mrf.mxu0
  %1954 = vmatprep.mubr.bf16.mxu0 0
  %1955 = vmatmul.mubr.bf16.gmra.mxu0 %v1846
  %v1956 = vpop.f32.mrf.mxu0
  %v1957 = vadd.f32 0.0, %v1956
  %v1958 = vpop.f32.mrf.mxu0
  %v1959 = vpop.f32.mrf.mxu0
  %v1960 = vadd.f32 0.0, %v1959
  %v1961 = vpop.f32.mrf.mxu0
  %1962 = vmatprep.mubr.bf16.mxu0 0
  %1963 = vmatmul.mubr.bf16.gmra.mxu0 %v1848
  %v1964 = vpop.f32.mrf.mxu0
  %v1965 = vadd.f32 0.0, %v1964
  %v1966 = vpop.f32.mrf.mxu0
  %v1967 = vpop.f32.mrf.mxu0
  %v1968 = vadd.f32 0.0, %v1967
  %v1969 = vpop.f32.mrf.mxu0
  %1970 = vmatprep.mubr.bf16.mxu0 0
  %1971 = vmatmul.mubr.bf16.gmra.mxu0 %v1850
  %v1972 = vpop.f32.mrf.mxu0
  %v1973 = vadd.f32 0.0, %v1972
  %v1974 = vpop.f32.mrf.mxu0
  %v1975 = vpop.f32.mrf.mxu0
  %v1976 = vadd.f32 0.0, %v1975
  %v1977 = vpop.f32.mrf.mxu0
  %1978 = vmatprep.mubr.bf16.mxu0 0
  %1979 = vmatmul.mubr.bf16.gmra.mxu0 %v1852
  %v1980 = vpop.f32.mrf.mxu0
  %v1981 = vadd.f32 0.0, %v1980
  %v1982 = vpop.f32.mrf.mxu0
  %v1983 = vpop.f32.mrf.mxu0
  %v1984 = vadd.f32 0.0, %v1983
  %v1985 = vpop.f32.mrf.mxu0
  %1986 = vmatprep.mubr.bf16.mxu0 0
  %1987 = vmatmul.mubr.bf16.gmra.mxu0 %v1854
  %v1988 = vpop.f32.mrf.mxu0
  %v1989 = vpop.f32.mrf.mxu0
  %v1990 = vpop.f32.mrf.mxu0
  %v1991 = vpop.f32.mrf.mxu0
  %1992 = vmatprep.mubr.bf16.mxu0 0
  %1993 = vmatmul.mubr.bf16.gmra.mxu0 %v1856
  %v1994 = vpop.f32.mrf.mxu0
  %v1995 = vpop.f32.mrf.mxu0
  %v1996 = vpop.f32.mrf.mxu0
  %v1997 = vpop.f32.mrf.mxu0
  %1998 = vmatprep.mubr.bf16.mxu0 0
  %1999 = vmatmul.mubr.bf16.gmra.mxu0 %v1858
  %v2000 = vpop.f32.mrf.mxu0
  %v2001 = vadd.f32 0.0, %v2000
  %v2002 = vpop.f32.mrf.mxu0
  %v2003 = vpop.f32.mrf.mxu0
  %v2004 = vadd.f32 0.0, %v2003
  %v2005 = vpop.f32.mrf.mxu0
  %2006 = vmatprep.mubr.bf16.mxu0 0
  %2007 = vmatmul.mubr.bf16.gmra.mxu0 %v1860
  %v2008 = vpop.f32.mrf.mxu0
  %v2009 = vadd.f32 0.0, %v2008
  %v2010 = vpop.f32.mrf.mxu0
  %v2011 = vpop.f32.mrf.mxu0
  %v2012 = vadd.f32 0.0, %v2011
  %v2013 = vpop.f32.mrf.mxu0
  %2014 = vmatprep.mubr.bf16.mxu0 0
  %2015 = vmatmul.mubr.bf16.gmra.mxu0 %v1862
  %v2016 = vpop.f32.mrf.mxu0
  %v2017 = vadd.f32 0.0, %v2016
  %v2018 = vpop.f32.mrf.mxu0
  %v2019 = vpop.f32.mrf.mxu0
  %v2020 = vadd.f32 0.0, %v2019
  %v2021 = vpop.f32.mrf.mxu0
  %2022 = vmatprep.mubr.bf16.mxu0 0
  %2023 = vmatmul.mubr.bf16.gmra.mxu0 %v1864
  %v2024 = vpop.f32.mrf.mxu0
  %v2025 = vadd.f32 0.0, %v2024
  %v2026 = vpop.f32.mrf.mxu0
  %v2027 = vpop.f32.mrf.mxu0
  %v2028 = vadd.f32 0.0, %v2027
  %v2029 = vpop.f32.mrf.mxu0
  %2030 = vmatprep.mubr.bf16.mxu0 0
  %2031 = vmatmul.mubr.bf16.gmra.mxu0 %v1866
  %v2032 = vpop.f32.mrf.mxu0
  %v2033 = vpop.f32.mrf.mxu0
  %v2034 = vpop.f32.mrf.mxu0
  %v2035 = vpop.f32.mrf.mxu0
  %2036 = vmatprep.mubr.bf16.mxu0 0
  %2037 = vmatmul.mubr.bf16.gmra.mxu0 %v1868
  %v2038 = vpop.f32.mrf.mxu0
  %v2039 = vpop.f32.mrf.mxu0
  %v2040 = vpop.f32.mrf.mxu0
  %v2041 = vpop.f32.mrf.mxu0
  %2042 = vmatprep.mubr.bf16.mxu0 0
  %2043 = vmatmul.mubr.bf16.gmra.mxu0 %v1870
  %v2044 = vpop.f32.mrf.mxu0
  %v2045 = vadd.f32 0.0, %v2044
  %v2046 = vpop.f32.mrf.mxu0
  %v2047 = vpop.f32.mrf.mxu0
  %v2048 = vadd.f32 0.0, %v2047
  %v2049 = vpop.f32.mrf.mxu0
  %2050 = vmatprep.mubr.bf16.mxu0 0
  %2051 = vmatmul.mubr.bf16.gmra.mxu0 %v1872
  %v2052 = vpop.f32.mrf.mxu0
  %v2053 = vadd.f32 0.0, %v2052
  %v2054 = vpop.f32.mrf.mxu0
  %v2055 = vpop.f32.mrf.mxu0
  %v2056 = vadd.f32 0.0, %v2055
  %v2057 = vpop.f32.mrf.mxu0
  %2058 = vmatprep.mubr.bf16.mxu0 0
  %2059 = vmatmul.mubr.bf16.gmra.mxu0 %v1874
  %v2060 = vpop.f32.mrf.mxu0
  %v2061 = vadd.f32 0.0, %v2060
  %v2062 = vpop.f32.mrf.mxu0
  %v2063 = vpop.f32.mrf.mxu0
  %v2064 = vadd.f32 0.0, %v2063
  %v2065 = vpop.f32.mrf.mxu0
  %2066 = vmatprep.mubr.bf16.mxu0 0
  %2067 = vmatmul.mubr.bf16.gmra.mxu0 %v1876
  %v2068 = vpop.f32.mrf.mxu0
  %v2069 = vadd.f32 0.0, %v2068
  %v2070 = vpop.f32.mrf.mxu0
  %v2071 = vpop.f32.mrf.mxu0
  %v2072 = vadd.f32 0.0, %v2071
  %v2073 = vpop.f32.mrf.mxu0
  %2074 = vdwg.mxu0
  %v2087 = vunpack.c.l.b16 %v1020
  %v2088 = vunpack.c.l.b16 %v1021
  %v2089 = vunpack.c.l.b16 %v1022
  %v2090 = vunpack.c.l.b16 %v1023
  %v2091 = vunpack.c.l.b16 %v1024
  %v2092 = vunpack.c.l.b16 %v1025
  %v2093 = vunpack.c.l.b16 %v1026
  %v2094 = vunpack.c.l.b16 %v1027
  %v2095 = vunpack.c.l.b16 %v1028
  %v2096 = vunpack.c.l.b16 %v1029
  %v2097 = vunpack.c.l.b16 %v1030
  %v2098 = vunpack.c.l.b16 %v1031
  %v2099 = vpack.c.b16 %v2088, %v2087
  %v2100 = vpack.c.b16 %v2090, %v2089
  %v2101 = vpack.c.b16 %v2092, %v2091
  %v2102 = vpack.c.b16 %v2094, %v2093
  %v2103 = vpack.c.b16 %v2096, %v2095
  %v2104 = vpack.c.b16 %v2098, %v2097
  %v2111 = vsel %vm1177, %v977, 0
  %v2113 = vsel %vm1177, %v979, 0
  %v2115 = vsel %vm1177, %v981, 0
  %v2117 = vsel %vm1177, %v983, 0
  %v2119 = vsel %vm1177, %v985, 0
  %v2121 = vsel %vm1177, %v987, 0
  %2123 = vmatprep.subr.bf16.mxu0 0
  %2124 = vmatpush1.bf16.msra.mxu0 0
  %2125 = vmatprep.subr.bf16.mxu0 0
  %2126 = vmatpush1.bf16.msra.mxu0 0
  %2127 = vmatprep.subr.bf16.mxu0 0
  %2128 = vmatpush1.bf16.msra.mxu0 %v2104
  %2129 = vmatprep.subr.bf16.mxu0 0
  %2130 = vmatpush1.bf16.msra.mxu0 %v2103
  %2131 = vmatprep.subr.bf16.mxu0 0
  %2132 = vmatpush1.bf16.msra.mxu0 %v2102
  %2133 = vmatprep.subr.bf16.mxu0 0
  %2134 = vmatpush1.bf16.msra.mxu0 %v2101
  %2135 = vmatprep.subr.bf16.mxu0 0
  %2136 = vmatpush1.bf16.msra.mxu0 %v2100
  %2137 = vmatprep.subr.bf16.mxu0 0
  %2138 = vmatpush1.bf16.msra.mxu0 %v2099
  %2139 = vmatprep.subr.bf16.mxu0 0
  %2140 = vmatpush2.bf16.msra.mxu0 0
  %2141 = vmatprep.subr.bf16.mxu0 0
  %2142 = vmatpush2.bf16.msra.mxu0 0
  %2143 = vmatprep.subr.bf16.mxu0 0
  %2144 = vmatpush2.bf16.msra.mxu0 0
  %2145 = vmatprep.subr.bf16.mxu0 0
  %2146 = vmatpush2.bf16.msra.mxu0 0
  %2147 = vmatprep.subr.bf16.mxu0 0
  %2148 = vmatpush2.bf16.msra.mxu0 0
  %2149 = vmatprep.subr.bf16.mxu0 0
  %2150 = vmatpush2.bf16.msra.mxu0 0
  %2151 = vmatprep.subr.bf16.mxu0 0
  %2152 = vmatpush2.bf16.msra.mxu0 0
  %2153 = vmatprep.subr.bf16.mxu0 0
  %2154 = vmatpush2.bf16.msra.mxu0 0
  %2155 = vmatprep.mubr.bf16.mxu0 0
  %2156 = vmatmul.mubr.bf16.gmra.mxu0 %v2111
  %v2157 = vpop.f32.mrf.mxu0
  %v2158 = vadd.f32 %v1257, %v2157
  %v2159 = vpop.f32.mrf.mxu0
  %v2160 = vpop.f32.mrf.mxu0
  %v2161 = vadd.f32 %v1260, %v2160
  %v2162 = vpop.f32.mrf.mxu0
  %2163 = vmatprep.mubr.bf16.mxu0 0
  %2164 = vmatmul.mubr.bf16.gmra.mxu0 %v2113
  %v2165 = vpop.f32.mrf.mxu0
  %v2166 = vadd.f32 %v1265, %v2165
  %v2167 = vpop.f32.mrf.mxu0
  %v2168 = vpop.f32.mrf.mxu0
  %v2169 = vadd.f32 %v1268, %v2168
  %v2170 = vpop.f32.mrf.mxu0
  %2171 = vmatprep.mubr.bf16.mxu0 0
  %2172 = vmatmul.mubr.bf16.gmra.mxu0 %v2115
  %v2173 = vpop.f32.mrf.mxu0
  %v2174 = vadd.f32 %v1273, %v2173
  %v2175 = vpop.f32.mrf.mxu0
  %v2176 = vpop.f32.mrf.mxu0
  %v2177 = vadd.f32 %v1276, %v2176
  %v2178 = vpop.f32.mrf.mxu0
  %2179 = vmatprep.mubr.bf16.mxu0 0
  %2180 = vmatmul.mubr.bf16.gmra.mxu0 %v2117
  %v2181 = vpop.f32.mrf.mxu0
  %v2182 = vadd.f32 %v1281, %v2181
  %v2183 = vpop.f32.mrf.mxu0
  %v2184 = vpop.f32.mrf.mxu0
  %v2185 = vadd.f32 %v1284, %v2184
  %v2186 = vpop.f32.mrf.mxu0
  %2187 = vmatprep.mubr.bf16.mxu0 0
  %2188 = vmatmul.mubr.bf16.gmra.mxu0 %v2119
  %v2189 = vpop.f32.mrf.mxu0
  %v2190 = vpop.f32.mrf.mxu0
  %v2191 = vpop.f32.mrf.mxu0
  %v2192 = vpop.f32.mrf.mxu0
  %2193 = vmatprep.mubr.bf16.mxu0 0
  %2194 = vmatmul.mubr.bf16.gmra.mxu0 %v2121
  %v2195 = vpop.f32.mrf.mxu0
  %v2196 = vpop.f32.mrf.mxu0
  %v2197 = vpop.f32.mrf.mxu0
  %v2198 = vpop.f32.mrf.mxu0
  %2199 = vmatprep.mubr.bf16.mxu0 0
  %2200 = vmatmul.mubr.bf16.gmra.mxu0 %v1178
  %v2201 = vpop.f32.mrf.mxu0
  %v2202 = vadd.f32 %v1301, %v2201
  %v2203 = vpop.f32.mrf.mxu0
  %v2204 = vpop.f32.mrf.mxu0
  %v2205 = vadd.f32 %v1304, %v2204
  %v2206 = vpop.f32.mrf.mxu0
  %2207 = vmatprep.mubr.bf16.mxu0 0
  %2208 = vmatmul.mubr.bf16.gmra.mxu0 %v1180
  %v2209 = vpop.f32.mrf.mxu0
  %v2210 = vadd.f32 %v1309, %v2209
  %v2211 = vpop.f32.mrf.mxu0
  %v2212 = vpop.f32.mrf.mxu0
  %v2213 = vadd.f32 %v1312, %v2212
  %v2214 = vpop.f32.mrf.mxu0
  %2215 = vmatprep.mubr.bf16.mxu0 0
  %2216 = vmatmul.mubr.bf16.gmra.mxu0 %v1182
  %v2217 = vpop.f32.mrf.mxu0
  %v2218 = vadd.f32 %v1317, %v2217
  %v2219 = vpop.f32.mrf.mxu0
  %v2220 = vpop.f32.mrf.mxu0
  %v2221 = vadd.f32 %v1320, %v2220
  %v2222 = vpop.f32.mrf.mxu0
  %2223 = vmatprep.mubr.bf16.mxu0 0
  %2224 = vmatmul.mubr.bf16.gmra.mxu0 %v1184
  %v2225 = vpop.f32.mrf.mxu0
  %v2226 = vadd.f32 %v1325, %v2225
  %v2227 = vpop.f32.mrf.mxu0
  %v2228 = vpop.f32.mrf.mxu0
  %v2229 = vadd.f32 %v1328, %v2228
  %v2230 = vpop.f32.mrf.mxu0
  %2231 = vmatprep.mubr.bf16.mxu0 0
  %2232 = vmatmul.mubr.bf16.gmra.mxu0 %v1186
  %v2233 = vpop.f32.mrf.mxu0
  %v2234 = vpop.f32.mrf.mxu0
  %v2235 = vpop.f32.mrf.mxu0
  %v2236 = vpop.f32.mrf.mxu0
  %2237 = vmatprep.mubr.bf16.mxu0 0
  %2238 = vmatmul.mubr.bf16.gmra.mxu0 %v1188
  %v2239 = vpop.f32.mrf.mxu0
  %v2240 = vpop.f32.mrf.mxu0
  %v2241 = vpop.f32.mrf.mxu0
  %v2242 = vpop.f32.mrf.mxu0
  %2243 = vmatprep.mubr.bf16.mxu0 0
  %2244 = vmatmul.mubr.bf16.gmra.mxu0 %v1190
  %v2245 = vpop.f32.mrf.mxu0
  %v2246 = vadd.f32 %v1345, %v2245
  %v2247 = vpop.f32.mrf.mxu0
  %v2248 = vpop.f32.mrf.mxu0
  %v2249 = vadd.f32 %v1348, %v2248
  %v2250 = vpop.f32.mrf.mxu0
  %2251 = vmatprep.mubr.bf16.mxu0 0
  %2252 = vmatmul.mubr.bf16.gmra.mxu0 %v1192
  %v2253 = vpop.f32.mrf.mxu0
  %v2254 = vadd.f32 %v1353, %v2253
  %v2255 = vpop.f32.mrf.mxu0
  %v2256 = vpop.f32.mrf.mxu0
  %v2257 = vadd.f32 %v1356, %v2256
  %v2258 = vpop.f32.mrf.mxu0
  %2259 = vmatprep.mubr.bf16.mxu0 0
  %2260 = vmatmul.mubr.bf16.gmra.mxu0 %v1194
  %v2261 = vpop.f32.mrf.mxu0
  %v2262 = vadd.f32 %v1361, %v2261
  %v2263 = vpop.f32.mrf.mxu0
  %v2264 = vpop.f32.mrf.mxu0
  %v2265 = vadd.f32 %v1364, %v2264
  %v2266 = vpop.f32.mrf.mxu0
  %2267 = vmatprep.mubr.bf16.mxu0 0
  %2268 = vmatmul.mubr.bf16.gmra.mxu0 %v1196
  %v2269 = vpop.f32.mrf.mxu0
  %v2270 = vadd.f32 %v1369, %v2269
  %v2271 = vpop.f32.mrf.mxu0
  %v2272 = vpop.f32.mrf.mxu0
  %v2273 = vadd.f32 %v1372, %v2272
  %v2274 = vpop.f32.mrf.mxu0
  %2275 = vmatprep.mubr.bf16.mxu0 0
  %2276 = vmatmul.mubr.bf16.gmra.mxu0 %v1198
  %v2277 = vpop.f32.mrf.mxu0
  %v2278 = vpop.f32.mrf.mxu0
  %v2279 = vpop.f32.mrf.mxu0
  %v2280 = vpop.f32.mrf.mxu0
  %2281 = vmatprep.mubr.bf16.mxu0 0
  %2282 = vmatmul.mubr.bf16.gmra.mxu0 %v1200
  %v2283 = vpop.f32.mrf.mxu0
  %v2284 = vpop.f32.mrf.mxu0
  %v2285 = vpop.f32.mrf.mxu0
  %v2286 = vpop.f32.mrf.mxu0
  %2287 = vmatprep.mubr.bf16.mxu0 0
  %2288 = vmatmul.mubr.bf16.gmra.mxu0 %v1202
  %v2289 = vpop.f32.mrf.mxu0
  %v2290 = vadd.f32 %v1389, %v2289
  %v2291 = vpop.f32.mrf.mxu0
  %v2292 = vpop.f32.mrf.mxu0
  %v2293 = vadd.f32 %v1392, %v2292
  %v2294 = vpop.f32.mrf.mxu0
  %2295 = vmatprep.mubr.bf16.mxu0 0
  %2296 = vmatmul.mubr.bf16.gmra.mxu0 %v1204
  %v2297 = vpop.f32.mrf.mxu0
  %v2298 = vadd.f32 %v1397, %v2297
  %v2299 = vpop.f32.mrf.mxu0
  %v2300 = vpop.f32.mrf.mxu0
  %v2301 = vadd.f32 %v1400, %v2300
  %v2302 = vpop.f32.mrf.mxu0
  %2303 = vmatprep.mubr.bf16.mxu0 0
  %2304 = vmatmul.mubr.bf16.gmra.mxu0 %v1206
  %v2305 = vpop.f32.mrf.mxu0
  %v2306 = vadd.f32 %v1405, %v2305
  %v2307 = vpop.f32.mrf.mxu0
  %v2308 = vpop.f32.mrf.mxu0
  %v2309 = vadd.f32 %v1408, %v2308
  %v2310 = vpop.f32.mrf.mxu0
  %2311 = vmatprep.mubr.bf16.mxu0 0
  %2312 = vmatmul.mubr.bf16.gmra.mxu0 %v1208
  %v2313 = vpop.f32.mrf.mxu0
  %v2314 = vadd.f32 %v1413, %v2313
  %v2315 = vpop.f32.mrf.mxu0
  %v2316 = vpop.f32.mrf.mxu0
  %v2317 = vadd.f32 %v1416, %v2316
  %v2318 = vpop.f32.mrf.mxu0
  %2319 = vdwg.mxu0
  %v2320 = vadd.f32 %v2158, %v1913
  %v2321 = vadd.f32 %v2161, %v1916
  %v2322 = vadd.f32 %v2166, %v1921
  %v2323 = vadd.f32 %v2169, %v1924
  %v2324 = vadd.f32 %v2174, %v1929
  %v2325 = vadd.f32 %v2177, %v1932
  %v2326 = vadd.f32 %v2182, %v1937
  %v2327 = vadd.f32 %v2185, %v1940
  %v2328 = vadd.f32 %v2202, %v1957
  %v2329 = vadd.f32 %v2205, %v1960
  %v2330 = vadd.f32 %v2210, %v1965
  %v2331 = vadd.f32 %v2213, %v1968
  %v2332 = vadd.f32 %v2218, %v1973
  %v2333 = vadd.f32 %v2221, %v1976
  %v2334 = vadd.f32 %v2226, %v1981
  %v2335 = vadd.f32 %v2229, %v1984
  %v2336 = vadd.f32 %v2246, %v2001
  %v2337 = vadd.f32 %v2249, %v2004
  %v2338 = vadd.f32 %v2254, %v2009
  %v2339 = vadd.f32 %v2257, %v2012
  %v2340 = vadd.f32 %v2262, %v2017
  %v2341 = vadd.f32 %v2265, %v2020
  %v2342 = vadd.f32 %v2270, %v2025
  %v2343 = vadd.f32 %v2273, %v2028
  %v2344 = vadd.f32 %v2290, %v2045
  %v2345 = vadd.f32 %v2293, %v2048
  %v2346 = vadd.f32 %v2298, %v2053
  %v2347 = vadd.f32 %v2301, %v2056
  %v2348 = vadd.f32 %v2306, %v2061
  %v2349 = vadd.f32 %v2309, %v2064
  %v2350 = vadd.f32 %v2314, %v2069
  %v2351 = vadd.f32 %v2317, %v2072
  %v2352 = vld [vmem:[%s4] sm:$0x1]
  %v2354 = vlaneseq
  %v2355 = vshrl.u32 %v2354, 7
  %v2356 = vsub.s32 0, %v2355
  %v2357 = vrot.slane %v2352, %v2356
  %v2359 = vadd.f32 %v2320, %v2357
  %v2360 = vadd.f32 %v2321, %v2357
  %v2361 = vadd.f32 %v2322, %v2357
  %v2362 = vadd.f32 %v2323, %v2357
  %v2363 = vadd.f32 %v2324, %v2357
  %v2364 = vadd.f32 %v2325, %v2357
  %v2365 = vadd.f32 %v2326, %v2357
  %v2366 = vadd.f32 %v2327, %v2357
  %v2367 = vadd.f32 %v2328, %v2357
  %v2368 = vadd.f32 %v2329, %v2357
  %v2369 = vadd.f32 %v2330, %v2357
  %v2370 = vadd.f32 %v2331, %v2357
  %v2371 = vadd.f32 %v2332, %v2357
  %v2372 = vadd.f32 %v2333, %v2357
  %v2373 = vadd.f32 %v2334, %v2357
  %v2374 = vadd.f32 %v2335, %v2357
  %v2375 = vadd.f32 %v2336, %v2357
  %v2376 = vadd.f32 %v2337, %v2357
  %v2377 = vadd.f32 %v2338, %v2357
  %v2378 = vadd.f32 %v2339, %v2357
  %v2379 = vadd.f32 %v2340, %v2357
  %v2380 = vadd.f32 %v2341, %v2357
  %v2381 = vadd.f32 %v2342, %v2357
  %v2382 = vadd.f32 %v2343, %v2357
  %v2383 = vadd.f32 %v2344, %v2357
  %v2384 = vadd.f32 %v2345, %v2357
  %v2385 = vadd.f32 %v2346, %v2357
  %v2386 = vadd.f32 %v2347, %v2357
  %v2387 = vadd.f32 %v2348, %v2357
  %v2388 = vadd.f32 %v2349, %v2357
  %v2389 = vadd.f32 %v2350, %v2357
  %v2390 = vadd.f32 %v2351, %v2357
  %v2391 = vmax.f32 %v2359, 0.0
  %v2392 = vmax.f32 %v2360, 0.0
  %v2393 = vmax.f32 %v2361, 0.0
  %v2394 = vmax.f32 %v2362, 0.0
  %v2395 = vmax.f32 %v2363, 0.0
  %v2396 = vmax.f32 %v2364, 0.0
  %v2397 = vmax.f32 %v2365, 0.0
  %v2398 = vmax.f32 %v2366, 0.0
  %v2399 = vmax.f32 %v2367, 0.0
  %v2400 = vmax.f32 %v2368, 0.0
  %v2401 = vmax.f32 %v2369, 0.0
  %v2402 = vmax.f32 %v2370, 0.0
  %v2403 = vmax.f32 %v2371, 0.0
  %v2404 = vmax.f32 %v2372, 0.0
  %v2405 = vmax.f32 %v2373, 0.0
  %v2406 = vmax.f32 %v2374, 0.0
  %v2407 = vmax.f32 %v2375, 0.0
  %v2408 = vmax.f32 %v2376, 0.0
  %v2409 = vmax.f32 %v2377, 0.0
  %v2410 = vmax.f32 %v2378, 0.0
  %v2411 = vmax.f32 %v2379, 0.0
  %v2412 = vmax.f32 %v2380, 0.0
  %v2413 = vmax.f32 %v2381, 0.0
  %v2414 = vmax.f32 %v2382, 0.0
  %v2415 = vmax.f32 %v2383, 0.0
  %v2416 = vmax.f32 %v2384, 0.0
  %v2417 = vmax.f32 %v2385, 0.0
  %v2418 = vmax.f32 %v2386, 0.0
  %v2419 = vmax.f32 %v2387, 0.0
  %v2420 = vmax.f32 %v2388, 0.0
  %v2421 = vmax.f32 %v2389, 0.0
  %v2422 = vmax.f32 %v2390, 0.0
  %v2423 = vpack.c.bf16 %v2392, %v2391
  %v2424 = vpack.c.bf16 %v2394, %v2393
  %v2425 = vpack.c.bf16 %v2396, %v2395
  %v2426 = vpack.c.bf16 %v2398, %v2397
  %v2427 = vpack.c.bf16 %v2400, %v2399
  %v2428 = vpack.c.bf16 %v2402, %v2401
  %v2429 = vpack.c.bf16 %v2404, %v2403
  %v2430 = vpack.c.bf16 %v2406, %v2405
  %v2431 = vpack.c.bf16 %v2408, %v2407
  %v2432 = vpack.c.bf16 %v2410, %v2409
  %v2433 = vpack.c.bf16 %v2412, %v2411
  %v2434 = vpack.c.bf16 %v2414, %v2413
  %v2435 = vpack.c.bf16 %v2416, %v2415
  %v2436 = vpack.c.bf16 %v2418, %v2417
  %v2437 = vpack.c.bf16 %v2420, %v2419
  %v2438 = vpack.c.bf16 %v2422, %v2421
  %v2443 = vunpack.c.l.b16 %v2423
  %v2444 = vunpack.c.h.b16 %v2423
  %v2445 = vunpack.c.l.b16 %v2424
  %v2446 = vunpack.c.h.b16 %v2424
  %v2447 = vunpack.c.l.b16 %v2425
  %v2448 = vunpack.c.h.b16 %v2425
  %v2449 = vunpack.c.l.b16 %v2426
  %v2450 = vunpack.c.h.b16 %v2426
  %v2451 = vpack.c.b16 %v2443, %v2443
  %v2452 = vpack.c.b16 %v2444, %v2444
  %v2453 = vpack.c.b16 %v2445, %v2445
  %v2454 = vpack.c.b16 %v2446, %v2446
  %v2455 = vpack.c.b16 %v2447, %v2447
  %v2456 = vpack.c.b16 %v2448, %v2448
  %v2457 = vpack.c.b16 %v2449, %v2449
  %v2458 = vpack.c.b16 %v2450, %v2450
  %2467 = vst.msk [vmem:[#allocation2 + $0x38] sm:$0xf] %vm27, %v2451
  %2468 = vst.msk [vmem:[#allocation2 + $0x3c] sm:$0xf] %vm27, %v2452
  %2469 = vst.msk [vmem:[#allocation2 + $0x40] sm:$0xf] %vm27, %v2453
  %2470 = vst.msk [vmem:[#allocation2 + $0x44] sm:$0xf] %vm27, %v2454
  %2471 = vst.msk [vmem:[#allocation2 + $0x48] sm:$0xf] %vm27, %v2455
  %2472 = vst.msk [vmem:[#allocation2 + $0x4c] sm:$0xf] %vm27, %v2456
  %2473 = vst.msk [vmem:[#allocation2 + $0x50] sm:$0xf] %vm27, %v2457
  %2474 = vst.msk [vmem:[#allocation2 + $0x54] sm:$0xf] %vm27, %v2458
  %v2479 = vunpack.c.l.b16 %v2427
  %v2480 = vunpack.c.h.b16 %v2427
  %v2481 = vunpack.c.l.b16 %v2428
  %v2482 = vunpack.c.h.b16 %v2428
  %v2483 = vunpack.c.l.b16 %v2429
  %v2484 = vunpack.c.h.b16 %v2429
  %v2485 = vunpack.c.l.b16 %v2430
  %v2486 = vunpack.c.h.b16 %v2430
  %v2487 = vpack.c.b16 %v2479, %v2479
  %v2488 = vpack.c.b16 %v2480, %v2480
  %v2489 = vpack.c.b16 %v2481, %v2481
  %v2490 = vpack.c.b16 %v2482, %v2482
  %v2491 = vpack.c.b16 %v2483, %v2483
  %v2492 = vpack.c.b16 %v2484, %v2484
  %v2493 = vpack.c.b16 %v2485, %v2485
  %v2494 = vpack.c.b16 %v2486, %v2486
  %2503 = vst.msk [vmem:[#allocation2 + $0x68] sm:$0xf] %vm27, %v2487
  %2504 = vst.msk [vmem:[#allocation2 + $0x6c] sm:$0xf] %vm27, %v2488
  %2505 = vst.msk [vmem:[#allocation2 + $0x70] sm:$0xf] %vm27, %v2489
  %2506 = vst.msk [vmem:[#allocation2 + $0x74] sm:$0xf] %vm27, %v2490
  %2507 = vst.msk [vmem:[#allocation2 + $0x78] sm:$0xf] %vm27, %v2491
  %2508 = vst.msk [vmem:[#allocation2 + $0x7c] sm:$0xf] %vm27, %v2492
  %2509 = vst.msk [vmem:[#allocation2 + $0x80] sm:$0xf] %vm27, %v2493
  %2510 = vst.msk [vmem:[#allocation2 + $0x84] sm:$0xf] %vm27, %v2494
  %v2515 = vunpack.c.l.b16 %v2431
  %v2516 = vunpack.c.h.b16 %v2431
  %v2517 = vunpack.c.l.b16 %v2432
  %v2518 = vunpack.c.h.b16 %v2432
  %v2519 = vunpack.c.l.b16 %v2433
  %v2520 = vunpack.c.h.b16 %v2433
  %v2521 = vunpack.c.l.b16 %v2434
  %v2522 = vunpack.c.h.b16 %v2434
  %v2523 = vpack.c.b16 %v2515, %v2515
  %v2524 = vpack.c.b16 %v2516, %v2516
  %v2525 = vpack.c.b16 %v2517, %v2517
  %v2526 = vpack.c.b16 %v2518, %v2518
  %v2527 = vpack.c.b16 %v2519, %v2519
  %v2528 = vpack.c.b16 %v2520, %v2520
  %v2529 = vpack.c.b16 %v2521, %v2521
  %v2530 = vpack.c.b16 %v2522, %v2522
  %2539 = vst.msk [vmem:[#allocation2 + $0x98] sm:$0xf] %vm27, %v2523
  %2540 = vst.msk [vmem:[#allocation2 + $0x9c] sm:$0xf] %vm27, %v2524
  %2541 = vst.msk [vmem:[#allocation2 + $0xa0] sm:$0xf] %vm27, %v2525
  %2542 = vst.msk [vmem:[#allocation2 + $0xa4] sm:$0xf] %vm27, %v2526
  %2543 = vst.msk [vmem:[#allocation2 + $0xa8] sm:$0xf] %vm27, %v2527
  %2544 = vst.msk [vmem:[#allocation2 + $0xac] sm:$0xf] %vm27, %v2528
  %2545 = vst.msk [vmem:[#allocation2 + $0xb0] sm:$0xf] %vm27, %v2529
  %2546 = vst.msk [vmem:[#allocation2 + $0xb4] sm:$0xf] %vm27, %v2530
  %v2551 = vunpack.c.l.b16 %v2435
  %v2552 = vunpack.c.h.b16 %v2435
  %v2553 = vunpack.c.l.b16 %v2436
  %v2554 = vunpack.c.h.b16 %v2436
  %v2555 = vunpack.c.l.b16 %v2437
  %v2556 = vunpack.c.h.b16 %v2437
  %v2557 = vunpack.c.l.b16 %v2438
  %v2558 = vunpack.c.h.b16 %v2438
  %v2559 = vpack.c.b16 %v2551, %v2551
  %v2560 = vpack.c.b16 %v2552, %v2552
  %v2561 = vpack.c.b16 %v2553, %v2553
  %v2562 = vpack.c.b16 %v2554, %v2554
  %v2563 = vpack.c.b16 %v2555, %v2555
  %v2564 = vpack.c.b16 %v2556, %v2556
  %v2565 = vpack.c.b16 %v2557, %v2557
  %v2566 = vpack.c.b16 %v2558, %v2558
  %2575 = vst.msk [vmem:[#allocation2 + $0xc8] sm:$0xf] %vm27, %v2559
  %2576 = vst.msk [vmem:[#allocation2 + $0xcc] sm:$0xf] %vm27, %v2560
  %2577 = vst.msk [vmem:[#allocation2 + $0xd0] sm:$0xf] %vm27, %v2561
  %2578 = vst.msk [vmem:[#allocation2 + $0xd4] sm:$0xf] %vm27, %v2562
  %2579 = vst.msk [vmem:[#allocation2 + $0xd8] sm:$0xf] %vm27, %v2563
  %2580 = vst.msk [vmem:[#allocation2 + $0xdc] sm:$0xf] %vm27, %v2564
  %2581 = vst.msk [vmem:[#allocation2 + $0xe0] sm:$0xf] %vm27, %v2565
  %2582 = vst.msk [vmem:[#allocation2 + $0xe4] sm:$0xf] %vm27, %v2566
  %v2583 = vld [vmem:[#allocation2] sm:$0xf]
  %v2584 = vld [vmem:[#allocation2 + $0x4] sm:$0xf]
  %v2585 = vld [vmem:[#allocation2 + $0x8] sm:$0xf]
  %v2586 = vld [vmem:[#allocation2 + $0xc] sm:$0xf]
  %v2587 = vld [vmem:[#allocation2 + $0x10] sm:$0xf]
  %v2588 = vld [vmem:[#allocation2 + $0x14] sm:$0xf]
  %v2589 = vld [vmem:[#allocation2 + $0x18] sm:$0xf]
  %v2590 = vld [vmem:[#allocation2 + $0x1c] sm:$0xf]
  %v2591 = vld [vmem:[#allocation2 + $0x20] sm:$0xf]
  %v2592 = vld [vmem:[#allocation2 + $0x24] sm:$0xf]
  %v2593 = vld [vmem:[#allocation2 + $0x28] sm:$0xf]
  %v2594 = vld [vmem:[#allocation2 + $0x2c] sm:$0xf]
  %v2595 = vld [vmem:[#allocation2 + $0x30] sm:$0xf]
  %v2596 = vld [vmem:[#allocation2 + $0x34] sm:$0xf]
  %v2597 = vld [vmem:[#allocation2 + $0x38] sm:$0xf]
  %v2598 = vld [vmem:[#allocation2 + $0x3c] sm:$0xf]
  %v2599 = vld [vmem:[#allocation2 + $0x40] sm:$0xf]
  %v2600 = vld [vmem:[#allocation2 + $0x44] sm:$0xf]
  %v2601 = vld [vmem:[#allocation2 + $0x48] sm:$0xf]
  %v2602 = vld [vmem:[#allocation2 + $0x4c] sm:$0xf]
  %v2603 = vld [vmem:[#allocation2 + $0x50] sm:$0xf]
  %v2604 = vld [vmem:[#allocation2 + $0x54] sm:$0xf]
  %v2605 = vld [vmem:[#allocation2 + $0x58] sm:$0xf]
  %v2606 = vld [vmem:[#allocation2 + $0x5c] sm:$0xf]
  %v2607 = vld [vmem:[#allocation2 + $0x60] sm:$0xf]
  %v2608 = vld [vmem:[#allocation2 + $0x64] sm:$0xf]
  %v2609 = vld [vmem:[#allocation2 + $0x68] sm:$0xf]
  %v2610 = vld [vmem:[#allocation2 + $0x6c] sm:$0xf]
  %v2611 = vld [vmem:[#allocation2 + $0x70] sm:$0xf]
  %v2612 = vld [vmem:[#allocation2 + $0x74] sm:$0xf]
  %v2613 = vld [vmem:[#allocation2 + $0x78] sm:$0xf]
  %v2614 = vld [vmem:[#allocation2 + $0x7c] sm:$0xf]
  %v2615 = vld [vmem:[#allocation2 + $0x80] sm:$0xf]
  %v2616 = vld [vmem:[#allocation2 + $0x84] sm:$0xf]
  %v2617 = vld [vmem:[#allocation2 + $0x88] sm:$0xf]
  %v2618 = vld [vmem:[#allocation2 + $0x8c] sm:$0xf]
  %v2619 = vld [vmem:[#allocation2 + $0x90] sm:$0xf]
  %v2620 = vld [vmem:[#allocation2 + $0x94] sm:$0xf]
  %v2621 = vld [vmem:[#allocation2 + $0x98] sm:$0xf]
  %v2622 = vld [vmem:[#allocation2 + $0x9c] sm:$0xf]
  %v2623 = vld [vmem:[#allocation2 + $0xa0] sm:$0xf]
  %v2624 = vld [vmem:[#allocation2 + $0xa4] sm:$0xf]
  %v2625 = vld [vmem:[#allocation2 + $0xa8] sm:$0xf]
  %v2626 = vld [vmem:[#allocation2 + $0xac] sm:$0xf]
  %v2627 = vld [vmem:[#allocation2 + $0xb0] sm:$0xf]
  %v2628 = vld [vmem:[#allocation2 + $0xb4] sm:$0xf]
  %v2629 = vld [vmem:[#allocation2 + $0xb8] sm:$0xf]
  %v2630 = vld [vmem:[#allocation2 + $0xbc] sm:$0xf]
  %v2675 = vunpack.c.l.b16 %v2583
  %v2676 = vunpack.c.l.b16 %v2584
  %v2677 = vunpack.c.l.b16 %v2585
  %v2678 = vunpack.c.l.b16 %v2586
  %v2679 = vunpack.c.l.b16 %v2587
  %v2680 = vunpack.c.l.b16 %v2588
  %v2681 = vunpack.c.l.b16 %v2589
  %v2682 = vunpack.c.l.b16 %v2590
  %v2683 = vunpack.c.l.b16 %v2591
  %v2684 = vunpack.c.l.b16 %v2592
  %v2685 = vunpack.c.l.b16 %v2593
  %v2686 = vunpack.c.l.b16 %v2594
  %v2687 = vunpack.c.l.b16 %v2595
  %v2688 = vunpack.c.l.b16 %v2596
  %v2689 = vunpack.c.l.b16 %v2597
  %v2690 = vunpack.c.l.b16 %v2598
  %v2691 = vunpack.c.l.b16 %v2599
  %v2692 = vunpack.c.l.b16 %v2600
  %v2693 = vunpack.c.l.b16 %v2601
  %v2694 = vunpack.c.l.b16 %v2602
  %v2695 = vunpack.c.l.b16 %v2603
  %v2696 = vunpack.c.l.b16 %v2604
  %v2697 = vunpack.c.l.b16 %v2605
  %v2698 = vunpack.c.l.b16 %v2606
  %v2699 = vunpack.c.l.b16 %v2607
  %v2700 = vunpack.c.l.b16 %v2608
  %v2701 = vunpack.c.l.b16 %v2609
  %v2702 = vunpack.c.l.b16 %v2610
  %v2703 = vunpack.c.l.b16 %v2611
  %v2704 = vunpack.c.l.b16 %v2612
  %v2705 = vunpack.c.l.b16 %v2613
  %v2706 = vunpack.c.l.b16 %v2614
  %v2707 = vunpack.c.l.b16 %v2615
  %v2708 = vunpack.c.l.b16 %v2616
  %v2709 = vunpack.c.l.b16 %v2617
  %v2710 = vunpack.c.l.b16 %v2618
  %v2711 = vunpack.c.l.b16 %v2619
  %v2712 = vunpack.c.l.b16 %v2620
  %v2713 = vunpack.c.l.b16 %v2621
  %v2714 = vunpack.c.l.b16 %v2622
  %v2715 = vunpack.c.l.b16 %v2623
  %v2716 = vunpack.c.l.b16 %v2624
  %v2717 = vunpack.c.l.b16 %v2625
  %v2718 = vunpack.c.l.b16 %v2626
  %v2719 = vpack.c.b16 %v2676, %v2675
  %v2720 = vpack.c.b16 %v2678, %v2677
  %v2721 = vpack.c.b16 %v2680, %v2679
  %v2722 = vpack.c.b16 %v2682, %v2681
  %v2723 = vpack.c.b16 %v2684, %v2683
  %v2724 = vpack.c.b16 %v2686, %v2685
  %v2725 = vpack.c.b16 %v2688, %v2687
  %v2726 = vpack.c.b16 %v2690, %v2689
  %v2727 = vpack.c.b16 %v2692, %v2691
  %v2728 = vpack.c.b16 %v2694, %v2693
  %v2729 = vpack.c.b16 %v2696, %v2695
  %v2730 = vpack.c.b16 %v2698, %v2697
  %v2731 = vpack.c.b16 %v2700, %v2699
  %v2732 = vpack.c.b16 %v2702, %v2701
  %v2733 = vpack.c.b16 %v2704, %v2703
  %v2734 = vpack.c.b16 %v2706, %v2705
  %v2735 = vpack.c.b16 %v2708, %v2707
  %v2736 = vpack.c.b16 %v2710, %v2709
  %v2737 = vpack.c.b16 %v2712, %v2711
  %v2738 = vpack.c.b16 %v2714, %v2713
  %v2739 = vpack.c.b16 %v2716, %v2715
  %v2740 = vpack.c.b16 %v2718, %v2717
  %v2743 = vunpack.c.l.b16 %v2627
  %v2744 = vunpack.c.l.b16 %v2628
  %v2745 = vpack.c.b16 %v2744, %v2743
  %2746 = vrot.lane.b32.xlu0 %v2720, 32
  %v2747 = vpop.permute.xlu0 %2746
  %2748 = vrot.lane.b32.xlu0 %v2721, 32
  %v2749 = vpop.permute.xlu0 %2748
  %2750 = vrot.lane.b32.xlu0 %v2722, 32
  %v2751 = vpop.permute.xlu0 %2750
  %2752 = vrot.lane.b32.xlu0 %v2723, 32
  %v2753 = vpop.permute.xlu0 %2752
  %2754 = vrot.lane.b32.xlu0 %v2724, 32
  %v2755 = vpop.permute.xlu0 %2754
  %2756 = vrot.lane.b32.xlu0 %v2725, 32
  %v2757 = vpop.permute.xlu0 %2756
  %2758 = vrot.lane.b32.xlu0 %v2726, 32
  %v2759 = vpop.permute.xlu0 %2758
  %2760 = vrot.lane.b32.xlu0 %v2727, 32
  %v2761 = vpop.permute.xlu0 %2760
  %2762 = vrot.lane.b32.xlu0 %v2728, 32
  %v2763 = vpop.permute.xlu0 %2762
  %2764 = vrot.lane.b32.xlu0 %v2729, 32
  %v2765 = vpop.permute.xlu0 %2764
  %2766 = vrot.lane.b32.xlu0 %v2730, 32
  %v2767 = vpop.permute.xlu0 %2766
  %2768 = vrot.lane.b32.xlu0 %v2731, 32
  %v2769 = vpop.permute.xlu0 %2768
  %2770 = vrot.lane.b32.xlu0 %v2732, 32
  %v2771 = vpop.permute.xlu0 %2770
  %2772 = vrot.lane.b32.xlu0 %v2733, 32
  %v2773 = vpop.permute.xlu0 %2772
  %2774 = vrot.lane.b32.xlu0 %v2734, 32
  %v2775 = vpop.permute.xlu0 %2774
  %2776 = vrot.lane.b32.xlu0 %v2735, 32
  %v2777 = vpop.permute.xlu0 %2776
  %2778 = vrot.lane.b32.xlu0 %v2736, 32
  %v2779 = vpop.permute.xlu0 %2778
  %2780 = vrot.lane.b32.xlu0 %v2737, 32
  %v2781 = vpop.permute.xlu0 %2780
  %2782 = vrot.lane.b32.xlu0 %v2738, 32
  %v2783 = vpop.permute.xlu0 %2782
  %2784 = vrot.lane.b32.xlu0 %v2739, 32
  %v2785 = vpop.permute.xlu0 %2784
  %2786 = vrot.lane.b32.xlu0 %v2740, 32
  %v2787 = vpop.permute.xlu0 %2786
  %2788 = vrot.lane.b32.xlu0 %v2745, 32
  %v2789 = vpop.permute.xlu0 %2788
  %v2792 = vunpack.c.l.b16 %v2629
  %v2793 = vunpack.c.l.b16 %v2630
  %v2794 = vpack.c.b16 %v2793, %v2792
  %2795 = vrot.lane.b32.xlu0 %v2721, 64
  %v2796 = vpop.permute.xlu0 %2795
  %2797 = vrot.lane.b32.xlu0 %v2722, 64
  %v2798 = vpop.permute.xlu0 %2797
  %2799 = vrot.lane.b32.xlu0 %v2723, 64
  %v2800 = vpop.permute.xlu0 %2799
  %2801 = vrot.lane.b32.xlu0 %v2724, 64
  %v2802 = vpop.permute.xlu0 %2801
  %2803 = vrot.lane.b32.xlu0 %v2725, 64
  %v2804 = vpop.permute.xlu0 %2803
  %2805 = vrot.lane.b32.xlu0 %v2726, 64
  %v2806 = vpop.permute.xlu0 %2805
  %2807 = vrot.lane.b32.xlu0 %v2727, 64
  %v2808 = vpop.permute.xlu0 %2807
  %2809 = vrot.lane.b32.xlu0 %v2728, 64
  %v2810 = vpop.permute.xlu0 %2809
  %2811 = vrot.lane.b32.xlu0 %v2729, 64
  %v2812 = vpop.permute.xlu0 %2811
  %2813 = vrot.lane.b32.xlu0 %v2730, 64
  %v2814 = vpop.permute.xlu0 %2813
  %2815 = vrot.lane.b32.xlu0 %v2731, 64
  %v2816 = vpop.permute.xlu0 %2815
  %2817 = vrot.lane.b32.xlu0 %v2732, 64
  %v2818 = vpop.permute.xlu0 %2817
  %2819 = vrot.lane.b32.xlu0 %v2733, 64
  %v2820 = vpop.permute.xlu0 %2819
  %2821 = vrot.lane.b32.xlu0 %v2734, 64
  %v2822 = vpop.permute.xlu0 %2821
  %2823 = vrot.lane.b32.xlu0 %v2735, 64
  %v2824 = vpop.permute.xlu0 %2823
  %2825 = vrot.lane.b32.xlu0 %v2736, 64
  %v2826 = vpop.permute.xlu0 %2825
  %2827 = vrot.lane.b32.xlu0 %v2737, 64
  %v2828 = vpop.permute.xlu0 %2827
  %2829 = vrot.lane.b32.xlu0 %v2738, 64
  %v2830 = vpop.permute.xlu0 %2829
  %2831 = vrot.lane.b32.xlu0 %v2739, 64
  %v2832 = vpop.permute.xlu0 %2831
  %2833 = vrot.lane.b32.xlu0 %v2740, 64
  %v2834 = vpop.permute.xlu0 %2833
  %2835 = vrot.lane.b32.xlu0 %v2745, 64
  %v2836 = vpop.permute.xlu0 %2835
  %2837 = vrot.lane.b32.xlu0 %v2794, 64
  %v2838 = vpop.permute.xlu0 %2837
  %v2841 = vsel %vm908, %v2719, %v2747
  %v2844 = vsel %vm908, %v2720, %v2749
  %v2847 = vsel %vm908, %v2721, %v2751
  %v2850 = vsel %vm908, %v2722, %v2753
  %v2853 = vsel %vm908, %v2723, %v2755
  %v2856 = vsel %vm908, %v2724, %v2757
  %v2859 = vsel %vm908, %v2725, %v2759
  %v2862 = vsel %vm908, %v2726, %v2761
  %v2865 = vsel %vm908, %v2727, %v2763
  %v2868 = vsel %vm908, %v2728, %v2765
  %v2871 = vsel %vm908, %v2729, %v2767
  %v2874 = vsel %vm908, %v2730, %v2769
  %v2877 = vsel %vm908, %v2731, %v2771
  %v2880 = vsel %vm908, %v2732, %v2773
  %v2883 = vsel %vm908, %v2733, %v2775
  %v2886 = vsel %vm908, %v2734, %v2777
  %v2889 = vsel %vm908, %v2735, %v2779
  %v2892 = vsel %vm908, %v2736, %v2781
  %v2895 = vsel %vm908, %v2737, %v2783
  %v2898 = vsel %vm908, %v2738, %v2785
  %v2901 = vsel %vm908, %v2739, %v2787
  %v2904 = vsel %vm908, %v2740, %v2789
  %v2906 = vsel %vm975, %v2841, %v2796
  %v2908 = vsel %vm975, %v2844, %v2798
  %v2910 = vsel %vm975, %v2847, %v2800
  %v2912 = vsel %vm975, %v2850, %v2802
  %v2914 = vsel %vm975, %v2853, %v2804
  %v2916 = vsel %vm975, %v2856, %v2806
  %v2918 = vsel %vm975, %v2859, %v2808
  %v2920 = vsel %vm975, %v2862, %v2810
  %v2922 = vsel %vm975, %v2865, %v2812
  %v2924 = vsel %vm975, %v2868, %v2814
  %v2926 = vsel %vm975, %v2871, %v2816
  %v2928 = vsel %vm975, %v2874, %v2818
  %v2930 = vsel %vm975, %v2877, %v2820
  %v2932 = vsel %vm975, %v2880, %v2822
  %v2934 = vsel %vm975, %v2883, %v2824
  %v2936 = vsel %vm975, %v2886, %v2826
  %v2938 = vsel %vm975, %v2889, %v2828
  %v2940 = vsel %vm975, %v2892, %v2830
  %v2942 = vsel %vm975, %v2895, %v2832
  %v2944 = vsel %vm975, %v2898, %v2834
  %v2946 = vsel %vm975, %v2901, %v2836
  %v2948 = vsel %vm975, %v2904, %v2838
  %s2949 = scalar_lea.vmem %s3, 144
  %v2950 = vld [vmem:[%s2949] sm:$0xf]
  %v2951 = vld [vmem:[%s2949 + $0x4] sm:$0xf]
  %v2952 = vld [vmem:[%s2949 + $0x8] sm:$0xf]
  %v2953 = vld [vmem:[%s2949 + $0xc] sm:$0xf]
  %v2954 = vld [vmem:[%s2949 + $0x10] sm:$0xf]
  %v2955 = vld [vmem:[%s2949 + $0x14] sm:$0xf]
  %v2956 = vld [vmem:[%s2949 + $0x18] sm:$0xf]
  %v2957 = vld [vmem:[%s2949 + $0x1c] sm:$0xf]
  %v2958 = vld [vmem:[%s2949 + $0x20] sm:$0xf]
  %v2959 = vld [vmem:[%s2949 + $0x24] sm:$0xf]
  %v2960 = vld [vmem:[%s2949 + $0x28] sm:$0xf]
  %v2961 = vld [vmem:[%s2949 + $0x2c] sm:$0xf]
  %v2962 = vld [vmem:[#allocation2 + $0xc0] sm:$0xf]
  %v2963 = vld [vmem:[#allocation2 + $0xc4] sm:$0xf]
  %v2964 = vld [vmem:[#allocation2 + $0xc8] sm:$0xf]
  %v2965 = vld [vmem:[#allocation2 + $0xcc] sm:$0xf]
  %v2966 = vld [vmem:[#allocation2 + $0xd0] sm:$0xf]
  %v2967 = vld [vmem:[#allocation2 + $0xd4] sm:$0xf]
  %v2968 = vld [vmem:[#allocation2 + $0xd8] sm:$0xf]
  %v2969 = vld [vmem:[#allocation2 + $0xdc] sm:$0xf]
  %v2970 = vld [vmem:[#allocation2 + $0xe0] sm:$0xf]
  %v2971 = vld [vmem:[#allocation2 + $0xe4] sm:$0xf]
  %v2972 = vld [vmem:[#allocation2 + $0xe8] sm:$0xf]
  %v2973 = vld [vmem:[#allocation2 + $0xec] sm:$0xf]
  %v2982 = vunpack.c.l.b16 %v2962
  %v2983 = vunpack.c.l.b16 %v2963
  %v2984 = vunpack.c.l.b16 %v2964
  %v2985 = vunpack.c.l.b16 %v2965
  %v2986 = vunpack.c.l.b16 %v2966
  %v2987 = vunpack.c.l.b16 %v2967
  %v2988 = vunpack.c.l.b16 %v2968
  %v2989 = vunpack.c.l.b16 %v2969
  %v2990 = vpack.c.b16 %v2983, %v2982
  %v2991 = vpack.c.b16 %v2985, %v2984
  %v2992 = vpack.c.b16 %v2987, %v2986
  %v2993 = vpack.c.b16 %v2989, %v2988
  %v2996 = vunpack.c.l.b16 %v2970
  %v2997 = vunpack.c.l.b16 %v2971
  %v2998 = vpack.c.b16 %v2997, %v2996
  %2999 = vrot.lane.b32.xlu0 %v2794, 32
  %v3000 = vpop.permute.xlu0 %2999
  %3001 = vrot.lane.b32.xlu0 %v2990, 32
  %v3002 = vpop.permute.xlu0 %3001
  %3003 = vrot.lane.b32.xlu0 %v2991, 32
  %v3004 = vpop.permute.xlu0 %3003
  %3005 = vrot.lane.b32.xlu0 %v2992, 32
  %v3006 = vpop.permute.xlu0 %3005
  %3007 = vrot.lane.b32.xlu0 %v2993, 32
  %v3008 = vpop.permute.xlu0 %3007
  %3009 = vrot.lane.b32.xlu0 %v2998, 32
  %v3010 = vpop.permute.xlu0 %3009
  %v3013 = vunpack.c.l.b16 %v2972
  %v3014 = vunpack.c.l.b16 %v2973
  %v3015 = vpack.c.b16 %v3014, %v3013
  %3016 = vrot.lane.b32.xlu0 %v2990, 64
  %v3017 = vpop.permute.xlu0 %3016
  %3018 = vrot.lane.b32.xlu0 %v2991, 64
  %v3019 = vpop.permute.xlu0 %3018
  %3020 = vrot.lane.b32.xlu0 %v2992, 64
  %v3021 = vpop.permute.xlu0 %3020
  %3022 = vrot.lane.b32.xlu0 %v2993, 64
  %v3023 = vpop.permute.xlu0 %3022
  %3024 = vrot.lane.b32.xlu0 %v2998, 64
  %v3025 = vpop.permute.xlu0 %3024
  %3026 = vrot.lane.b32.xlu0 %v3015, 64
  %v3027 = vpop.permute.xlu0 %3026
  %v3030 = vsel %vm908, %v2745, %v3000
  %v3033 = vsel %vm908, %v2794, %v3002
  %v3036 = vsel %vm908, %v2990, %v3004
  %v3039 = vsel %vm908, %v2991, %v3006
  %v3042 = vsel %vm908, %v2992, %v3008
  %v3045 = vsel %vm908, %v2993, %v3010
  %v3047 = vsel %vm975, %v3030, %v3017
  %v3049 = vsel %vm975, %v3033, %v3019
  %v3051 = vsel %vm975, %v3036, %v3021
  %v3053 = vsel %vm975, %v3039, %v3023
  %v3055 = vsel %vm975, %v3042, %v3025
  %v3057 = vsel %vm975, %v3045, %v3027
  %s3058 = scalar_lea.vmem %s3, 192
  %v3059 = vld [vmem:[%s3058] sm:$0xf]
  %v3060 = vld [vmem:[%s3058 + $0x4] sm:$0xf]
  %v3061 = vld [vmem:[%s3058 + $0x8] sm:$0xf]
  %v3062 = vld [vmem:[%s3058 + $0xc] sm:$0xf]
  %v3063 = vld [vmem:[%s3058 + $0x10] sm:$0xf]
  %v3064 = vld [vmem:[%s3058 + $0x14] sm:$0xf]
  %v3065 = vld [vmem:[%s3058 + $0x18] sm:$0xf]
  %v3066 = vld [vmem:[%s3058 + $0x1c] sm:$0xf]
  %v3067 = vld [vmem:[%s3058 + $0x20] sm:$0xf]
  %v3068 = vld [vmem:[%s3058 + $0x24] sm:$0xf]
  %v3069 = vld [vmem:[%s3058 + $0x28] sm:$0xf]
  %v3070 = vld [vmem:[%s3058 + $0x2c] sm:$0xf]
  %v3083 = vunpack.c.l.b16 %v3059
  %v3084 = vunpack.c.l.b16 %v3060
  %v3085 = vunpack.c.l.b16 %v3061
  %v3086 = vunpack.c.l.b16 %v3062
  %v3087 = vunpack.c.l.b16 %v3063
  %v3088 = vunpack.c.l.b16 %v3064
  %v3089 = vunpack.c.l.b16 %v3065
  %v3090 = vunpack.c.l.b16 %v3066
  %v3091 = vunpack.c.l.b16 %v3067
  %v3092 = vunpack.c.l.b16 %v3068
  %v3093 = vunpack.c.l.b16 %v3069
  %v3094 = vunpack.c.l.b16 %v3070
  %v3095 = vpack.c.b16 %v3084, %v3083
  %v3096 = vpack.c.b16 %v3086, %v3085
  %v3097 = vpack.c.b16 %v3088, %v3087
  %v3098 = vpack.c.b16 %v3090, %v3089
  %v3099 = vpack.c.b16 %v3092, %v3091
  %v3100 = vpack.c.b16 %v3094, %v3093
  %v3107 = vsel %vm1177, %v2918, 0
  %v3109 = vsel %vm1177, %v2920, 0
  %v3111 = vsel %vm1177, %v2922, 0
  %v3113 = vsel %vm1177, %v2924, 0
  %v3115 = vsel %vm1177, %v2926, 0
  %v3117 = vsel %vm1177, %v2928, 0
  %v3119 = vsel %vm1177, %v2930, 0
  %v3121 = vsel %vm1177, %v2932, 0
  %v3123 = vsel %vm1177, %v2934, 0
  %v3125 = vsel %vm1177, %v2936, 0
  %v3127 = vsel %vm1177, %v2938, 0
  %v3129 = vsel %vm1177, %v2940, 0
  %v3131 = vsel %vm1177, %v2942, 0
  %v3133 = vsel %vm1177, %v2944, 0
  %v3135 = vsel %vm1177, %v2946, 0
  %v3137 = vsel %vm1177, %v2948, 0
  %v3139 = vsel %vm1177, %v3047, 0
  %v3141 = vsel %vm1177, %v3049, 0
  %v3143 = vsel %vm1177, %v3051, 0
  %v3145 = vsel %vm1177, %v3053, 0
  %v3147 = vsel %vm1177, %v3055, 0
  %v3149 = vsel %vm1177, %v3057, 0
  %3151 = vmatprep.subr.bf16.mxu0 0
  %3152 = vmatpush1.bf16.msra.mxu0 0
  %3153 = vmatprep.subr.bf16.mxu0 0
  %3154 = vmatpush1.bf16.msra.mxu0 0
  %3155 = vmatprep.subr.bf16.mxu0 0
  %3156 = vmatpush1.bf16.msra.mxu0 %v3100
  %3157 = vmatprep.subr.bf16.mxu0 0
  %3158 = vmatpush1.bf16.msra.mxu0 %v3099
  %3159 = vmatprep.subr.bf16.mxu0 0
  %3160 = vmatpush1.bf16.msra.mxu0 %v3098
  %3161 = vmatprep.subr.bf16.mxu0 0
  %3162 = vmatpush1.bf16.msra.mxu0 %v3097
  %3163 = vmatprep.subr.bf16.mxu0 0
  %3164 = vmatpush1.bf16.msra.mxu0 %v3096
  %3165 = vmatprep.subr.bf16.mxu0 0
  %3166 = vmatpush1.bf16.msra.mxu0 %v3095
  %3167 = vmatprep.subr.bf16.mxu0 0
  %3168 = vmatpush2.bf16.msra.mxu0 0
  %3169 = vmatprep.subr.bf16.mxu0 0
  %3170 = vmatpush2.bf16.msra.mxu0 0
  %3171 = vmatprep.subr.bf16.mxu0 0
  %3172 = vmatpush2.bf16.msra.mxu0 0
  %3173 = vmatprep.subr.bf16.mxu0 0
  %3174 = vmatpush2.bf16.msra.mxu0 0
  %3175 = vmatprep.subr.bf16.mxu0 0
  %3176 = vmatpush2.bf16.msra.mxu0 0
  %3177 = vmatprep.subr.bf16.mxu0 0
  %3178 = vmatpush2.bf16.msra.mxu0 0
  %3179 = vmatprep.subr.bf16.mxu0 0
  %3180 = vmatpush2.bf16.msra.mxu0 0
  %3181 = vmatprep.subr.bf16.mxu0 0
  %3182 = vmatpush2.bf16.msra.mxu0 0
  %3183 = vmatprep.mubr.bf16.mxu0 0
  %3184 = vmatmul.mubr.bf16.gmra.mxu0 %v3107
  %v3185 = vpop.f32.mrf.mxu0
  %v3186 = vadd.f32 0.0, %v3185
  %v3187 = vpop.f32.mrf.mxu0
  %v3188 = vpop.f32.mrf.mxu0
  %v3189 = vadd.f32 0.0, %v3188
  %v3190 = vpop.f32.mrf.mxu0
  %3191 = vmatprep.mubr.bf16.mxu0 0
  %3192 = vmatmul.mubr.bf16.gmra.mxu0 %v3109
  %v3193 = vpop.f32.mrf.mxu0
  %v3194 = vadd.f32 0.0, %v3193
  %v3195 = vpop.f32.mrf.mxu0
  %v3196 = vpop.f32.mrf.mxu0
  %v3197 = vadd.f32 0.0, %v3196
  %v3198 = vpop.f32.mrf.mxu0
  %3199 = vmatprep.mubr.bf16.mxu0 0
  %3200 = vmatmul.mubr.bf16.gmra.mxu0 %v3111
  %v3201 = vpop.f32.mrf.mxu0
  %v3202 = vadd.f32 0.0, %v3201
  %v3203 = vpop.f32.mrf.mxu0
  %v3204 = vpop.f32.mrf.mxu0
  %v3205 = vadd.f32 0.0, %v3204
  %v3206 = vpop.f32.mrf.mxu0
  %3207 = vmatprep.mubr.bf16.mxu0 0
  %3208 = vmatmul.mubr.bf16.gmra.mxu0 %v3113
  %v3209 = vpop.f32.mrf.mxu0
  %v3210 = vadd.f32 0.0, %v3209
  %v3211 = vpop.f32.mrf.mxu0
  %v3212 = vpop.f32.mrf.mxu0
  %v3213 = vadd.f32 0.0, %v3212
  %v3214 = vpop.f32.mrf.mxu0
  %3215 = vmatprep.mubr.bf16.mxu0 0
  %3216 = vmatmul.mubr.bf16.gmra.mxu0 %v3115
  %v3217 = vpop.f32.mrf.mxu0
  %v3218 = vpop.f32.mrf.mxu0
  %v3219 = vpop.f32.mrf.mxu0
  %v3220 = vpop.f32.mrf.mxu0
  %3221 = vmatprep.mubr.bf16.mxu0 0
  %3222 = vmatmul.mubr.bf16.gmra.mxu0 %v3117
  %v3223 = vpop.f32.mrf.mxu0
  %v3224 = vpop.f32.mrf.mxu0
  %v3225 = vpop.f32.mrf.mxu0
  %v3226 = vpop.f32.mrf.mxu0
  %3227 = vmatprep.mubr.bf16.mxu0 0
  %3228 = vmatmul.mubr.bf16.gmra.mxu0 %v3119
  %v3229 = vpop.f32.mrf.mxu0
  %v3230 = vadd.f32 0.0, %v3229
  %v3231 = vpop.f32.mrf.mxu0
  %v3232 = vpop.f32.mrf.mxu0
  %v3233 = vadd.f32 0.0, %v3232
  %v3234 = vpop.f32.mrf.mxu0
  %3235 = vmatprep.mubr.bf16.mxu0 0
  %3236 = vmatmul.mubr.bf16.gmra.mxu0 %v3121
  %v3237 = vpop.f32.mrf.mxu0
  %v3238 = vadd.f32 0.0, %v3237
  %v3239 = vpop.f32.mrf.mxu0
  %v3240 = vpop.f32.mrf.mxu0
  %v3241 = vadd.f32 0.0, %v3240
  %v3242 = vpop.f32.mrf.mxu0
  %3243 = vmatprep.mubr.bf16.mxu0 0
  %3244 = vmatmul.mubr.bf16.gmra.mxu0 %v3123
  %v3245 = vpop.f32.mrf.mxu0
  %v3246 = vadd.f32 0.0, %v3245
  %v3247 = vpop.f32.mrf.mxu0
  %v3248 = vpop.f32.mrf.mxu0
  %v3249 = vadd.f32 0.0, %v3248
  %v3250 = vpop.f32.mrf.mxu0
  %3251 = vmatprep.mubr.bf16.mxu0 0
  %3252 = vmatmul.mubr.bf16.gmra.mxu0 %v3125
  %v3253 = vpop.f32.mrf.mxu0
  %v3254 = vadd.f32 0.0, %v3253
  %v3255 = vpop.f32.mrf.mxu0
  %v3256 = vpop.f32.mrf.mxu0
  %v3257 = vadd.f32 0.0, %v3256
  %v3258 = vpop.f32.mrf.mxu0
  %3259 = vmatprep.mubr.bf16.mxu0 0
  %3260 = vmatmul.mubr.bf16.gmra.mxu0 %v3127
  %v3261 = vpop.f32.mrf.mxu0
  %v3262 = vpop.f32.mrf.mxu0
  %v3263 = vpop.f32.mrf.mxu0
  %v3264 = vpop.f32.mrf.mxu0
  %3265 = vmatprep.mubr.bf16.mxu0 0
  %3266 = vmatmul.mubr.bf16.gmra.mxu0 %v3129
  %v3267 = vpop.f32.mrf.mxu0
  %v3268 = vpop.f32.mrf.mxu0
  %v3269 = vpop.f32.mrf.mxu0
  %v3270 = vpop.f32.mrf.mxu0
  %3271 = vmatprep.mubr.bf16.mxu0 0
  %3272 = vmatmul.mubr.bf16.gmra.mxu0 %v3131
  %v3273 = vpop.f32.mrf.mxu0
  %v3274 = vadd.f32 0.0, %v3273
  %v3275 = vpop.f32.mrf.mxu0
  %v3276 = vpop.f32.mrf.mxu0
  %v3277 = vadd.f32 0.0, %v3276
  %v3278 = vpop.f32.mrf.mxu0
  %3279 = vmatprep.mubr.bf16.mxu0 0
  %3280 = vmatmul.mubr.bf16.gmra.mxu0 %v3133
  %v3281 = vpop.f32.mrf.mxu0
  %v3282 = vadd.f32 0.0, %v3281
  %v3283 = vpop.f32.mrf.mxu0
  %v3284 = vpop.f32.mrf.mxu0
  %v3285 = vadd.f32 0.0, %v3284
  %v3286 = vpop.f32.mrf.mxu0
  %3287 = vmatprep.mubr.bf16.mxu0 0
  %3288 = vmatmul.mubr.bf16.gmra.mxu0 %v3135
  %v3289 = vpop.f32.mrf.mxu0
  %v3290 = vadd.f32 0.0, %v3289
  %v3291 = vpop.f32.mrf.mxu0
  %v3292 = vpop.f32.mrf.mxu0
  %v3293 = vadd.f32 0.0, %v3292
  %v3294 = vpop.f32.mrf.mxu0
  %3295 = vmatprep.mubr.bf16.mxu0 0
  %3296 = vmatmul.mubr.bf16.gmra.mxu0 %v3137
  %v3297 = vpop.f32.mrf.mxu0
  %v3298 = vadd.f32 0.0, %v3297
  %v3299 = vpop.f32.mrf.mxu0
  %v3300 = vpop.f32.mrf.mxu0
  %v3301 = vadd.f32 0.0, %v3300
  %v3302 = vpop.f32.mrf.mxu0
  %3303 = vmatprep.mubr.bf16.mxu0 0
  %3304 = vmatmul.mubr.bf16.gmra.mxu0 %v3139
  %v3305 = vpop.f32.mrf.mxu0
  %v3306 = vpop.f32.mrf.mxu0
  %v3307 = vpop.f32.mrf.mxu0
  %v3308 = vpop.f32.mrf.mxu0
  %3309 = vmatprep.mubr.bf16.mxu0 0
  %3310 = vmatmul.mubr.bf16.gmra.mxu0 %v3141
  %v3311 = vpop.f32.mrf.mxu0
  %v3312 = vpop.f32.mrf.mxu0
  %v3313 = vpop.f32.mrf.mxu0
  %v3314 = vpop.f32.mrf.mxu0
  %3315 = vmatprep.mubr.bf16.mxu0 0
  %3316 = vmatmul.mubr.bf16.gmra.mxu0 %v3143
  %v3317 = vpop.f32.mrf.mxu0
  %v3318 = vadd.f32 0.0, %v3317
  %v3319 = vpop.f32.mrf.mxu0
  %v3320 = vpop.f32.mrf.mxu0
  %v3321 = vadd.f32 0.0, %v3320
  %v3322 = vpop.f32.mrf.mxu0
  %3323 = vmatprep.mubr.bf16.mxu0 0
  %3324 = vmatmul.mubr.bf16.gmra.mxu0 %v3145
  %v3325 = vpop.f32.mrf.mxu0
  %v3326 = vadd.f32 0.0, %v3325
  %v3327 = vpop.f32.mrf.mxu0
  %v3328 = vpop.f32.mrf.mxu0
  %v3329 = vadd.f32 0.0, %v3328
  %v3330 = vpop.f32.mrf.mxu0
  %3331 = vmatprep.mubr.bf16.mxu0 0
  %3332 = vmatmul.mubr.bf16.gmra.mxu0 %v3147
  %v3333 = vpop.f32.mrf.mxu0
  %v3334 = vadd.f32 0.0, %v3333
  %v3335 = vpop.f32.mrf.mxu0
  %v3336 = vpop.f32.mrf.mxu0
  %v3337 = vadd.f32 0.0, %v3336
  %v3338 = vpop.f32.mrf.mxu0
  %3339 = vmatprep.mubr.bf16.mxu0 0
  %3340 = vmatmul.mubr.bf16.gmra.mxu0 %v3149
  %v3341 = vpop.f32.mrf.mxu0
  %v3342 = vadd.f32 0.0, %v3341
  %v3343 = vpop.f32.mrf.mxu0
  %v3344 = vpop.f32.mrf.mxu0
  %v3345 = vadd.f32 0.0, %v3344
  %v3346 = vpop.f32.mrf.mxu0
  %3347 = vdwg.mxu0
  %v3348 = vld [vmem:[#allocation2 + $0x60] sm:$0xf]
  %v3349 = vld [vmem:[#allocation2 + $0x64] sm:$0xf]
  %v3350 = vld [vmem:[#allocation2 + $0x68] sm:$0xf]
  %v3351 = vld [vmem:[#allocation2 + $0x6c] sm:$0xf]
  %v3352 = vld [vmem:[#allocation2 + $0x70] sm:$0xf]
  %v3353 = vld [vmem:[#allocation2 + $0x74] sm:$0xf]
  %v3354 = vld [vmem:[#allocation2 + $0x78] sm:$0xf]
  %v3355 = vld [vmem:[#allocation2 + $0x7c] sm:$0xf]
  %v3356 = vld [vmem:[#allocation2 + $0x80] sm:$0xf]
  %v3357 = vld [vmem:[#allocation2 + $0x84] sm:$0xf]
  %v3358 = vld [vmem:[#allocation2 + $0x88] sm:$0xf]
  %v3359 = vld [vmem:[#allocation2 + $0x8c] sm:$0xf]
  %v3360 = vld [vmem:[#allocation2 + $0x90] sm:$0xf]
  %v3361 = vld [vmem:[#allocation2 + $0x94] sm:$0xf]
  %v3362 = vld [vmem:[#allocation2 + $0x98] sm:$0xf]
  %v3363 = vld [vmem:[#allocation2 + $0x9c] sm:$0xf]
  %v3364 = vld [vmem:[#allocation2 + $0xa0] sm:$0xf]
  %v3365 = vld [vmem:[#allocation2 + $0xa4] sm:$0xf]
  %v3366 = vld [vmem:[#allocation2 + $0xa8] sm:$0xf]
  %v3367 = vld [vmem:[#allocation2 + $0xac] sm:$0xf]
  %v3368 = vld [vmem:[#allocation2 + $0xb0] sm:$0xf]
  %v3369 = vld [vmem:[#allocation2 + $0xb4] sm:$0xf]
  %v3370 = vld [vmem:[#allocation2 + $0xb8] sm:$0xf]
  %v3371 = vld [vmem:[#allocation2 + $0xbc] sm:$0xf]
  %v3372 = vld [vmem:[#allocation2 + $0xc0] sm:$0xf]
  %v3373 = vld [vmem:[#allocation2 + $0xc4] sm:$0xf]
  %v3374 = vld [vmem:[#allocation2 + $0xc8] sm:$0xf]
  %v3375 = vld [vmem:[#allocation2 + $0xcc] sm:$0xf]
  %v3376 = vld [vmem:[#allocation2 + $0xd0] sm:$0xf]
  %v3377 = vld [vmem:[#allocation2 + $0xd4] sm:$0xf]
  %v3378 = vld [vmem:[#allocation2 + $0xd8] sm:$0xf]
  %v3379 = vld [vmem:[#allocation2 + $0xdc] sm:$0xf]
  %v3380 = vld [vmem:[#allocation2 + $0xe0] sm:$0xf]
  %v3381 = vld [vmem:[#allocation2 + $0xe4] sm:$0xf]
  %v3382 = vld [vmem:[#allocation2 + $0xe8] sm:$0xf]
  %v3383 = vld [vmem:[#allocation2 + $0xec] sm:$0xf]
  %v3384 = vld [vmem:[#allocation2 + $0xf0] sm:$0xf]
  %v3385 = vld [vmem:[#allocation2 + $0xf4] sm:$0xf]
  %v3386 = vld [vmem:[#allocation2 + $0xf8] sm:$0xf]
  %v3387 = vld [vmem:[#allocation2 + $0xfc] sm:$0xf]
  %v3388 = vld [vmem:[#allocation2 + $0x100] sm:$0xf]
  %v3389 = vld [vmem:[#allocation2 + $0x104] sm:$0xf]
  %v3390 = vld [vmem:[#allocation2 + $0x108] sm:$0xf]
  %v3391 = vld [vmem:[#allocation2 + $0x10c] sm:$0xf]
  %v3392 = vld [vmem:[#allocation2 + $0x110] sm:$0xf]
  %v3393 = vld [vmem:[#allocation2 + $0x114] sm:$0xf]
  %v3394 = vld [vmem:[#allocation2 + $0x118] sm:$0xf]
  %v3395 = vld [vmem:[#allocation2 + $0x11c] sm:$0xf]
  %v3440 = vunpack.c.l.b16 %v3348
  %v3441 = vunpack.c.l.b16 %v3349
  %v3442 = vunpack.c.l.b16 %v3350
  %v3443 = vunpack.c.l.b16 %v3351
  %v3444 = vunpack.c.l.b16 %v3352
  %v3445 = vunpack.c.l.b16 %v3353
  %v3446 = vunpack.c.l.b16 %v3354
  %v3447 = vunpack.c.l.b16 %v3355
  %v3448 = vunpack.c.l.b16 %v3356
  %v3449 = vunpack.c.l.b16 %v3357
  %v3450 = vunpack.c.l.b16 %v3358
  %v3451 = vunpack.c.l.b16 %v3359
  %v3452 = vunpack.c.l.b16 %v3360
  %v3453 = vunpack.c.l.b16 %v3361
  %v3454 = vunpack.c.l.b16 %v3362
  %v3455 = vunpack.c.l.b16 %v3363
  %v3456 = vunpack.c.l.b16 %v3364
  %v3457 = vunpack.c.l.b16 %v3365
  %v3458 = vunpack.c.l.b16 %v3366
  %v3459 = vunpack.c.l.b16 %v3367
  %v3460 = vunpack.c.l.b16 %v3368
  %v3461 = vunpack.c.l.b16 %v3369
  %v3462 = vunpack.c.l.b16 %v3370
  %v3463 = vunpack.c.l.b16 %v3371
  %v3464 = vunpack.c.l.b16 %v3372
  %v3465 = vunpack.c.l.b16 %v3373
  %v3466 = vunpack.c.l.b16 %v3374
  %v3467 = vunpack.c.l.b16 %v3375
  %v3468 = vunpack.c.l.b16 %v3376
  %v3469 = vunpack.c.l.b16 %v3377
  %v3470 = vunpack.c.l.b16 %v3378
  %v3471 = vunpack.c.l.b16 %v3379
  %v3472 = vunpack.c.l.b16 %v3380
  %v3473 = vunpack.c.l.b16 %v3381
  %v3474 = vunpack.c.l.b16 %v3382
  %v3475 = vunpack.c.l.b16 %v3383
  %v3476 = vunpack.c.l.b16 %v3384
  %v3477 = vunpack.c.l.b16 %v3385
  %v3478 = vunpack.c.l.b16 %v3386
  %v3479 = vunpack.c.l.b16 %v3387
  %v3480 = vunpack.c.l.b16 %v3388
  %v3481 = vunpack.c.l.b16 %v3389
  %v3482 = vunpack.c.l.b16 %v3390
  %v3483 = vunpack.c.l.b16 %v3391
  %v3484 = vpack.c.b16 %v3441, %v3440
  %v3485 = vpack.c.b16 %v3443, %v3442
  %v3486 = vpack.c.b16 %v3445, %v3444
  %v3487 = vpack.c.b16 %v3447, %v3446
  %v3488 = vpack.c.b16 %v3449, %v3448
  %v3489 = vpack.c.b16 %v3451, %v3450
  %v3490 = vpack.c.b16 %v3453, %v3452
  %v3491 = vpack.c.b16 %v3455, %v3454
  %v3492 = vpack.c.b16 %v3457, %v3456
  %v3493 = vpack.c.b16 %v3459, %v3458
  %v3494 = vpack.c.b16 %v3461, %v3460
  %v3495 = vpack.c.b16 %v3463, %v3462
  %v3496 = vpack.c.b16 %v3465, %v3464
  %v3497 = vpack.c.b16 %v3467, %v3466
  %v3498 = vpack.c.b16 %v3469, %v3468
  %v3499 = vpack.c.b16 %v3471, %v3470
  %v3500 = vpack.c.b16 %v3473, %v3472
  %v3501 = vpack.c.b16 %v3475, %v3474
  %v3502 = vpack.c.b16 %v3477, %v3476
  %v3503 = vpack.c.b16 %v3479, %v3478
  %v3504 = vpack.c.b16 %v3481, %v3480
  %v3505 = vpack.c.b16 %v3483, %v3482
  %v3508 = vunpack.c.l.b16 %v3392
  %v3509 = vunpack.c.l.b16 %v3393
  %v3510 = vpack.c.b16 %v3509, %v3508
  %3511 = vrot.lane.b32.xlu0 %v3485, 32
  %v3512 = vpop.permute.xlu0 %3511
  %3513 = vrot.lane.b32.xlu0 %v3486, 32
  %v3514 = vpop.permute.xlu0 %3513
  %3515 = vrot.lane.b32.xlu0 %v3487, 32
  %v3516 = vpop.permute.xlu0 %3515
  %3517 = vrot.lane.b32.xlu0 %v3488, 32
  %v3518 = vpop.permute.xlu0 %3517
  %3519 = vrot.lane.b32.xlu0 %v3489, 32
  %v3520 = vpop.permute.xlu0 %3519
  %3521 = vrot.lane.b32.xlu0 %v3490, 32
  %v3522 = vpop.permute.xlu0 %3521
  %3523 = vrot.lane.b32.xlu0 %v3491, 32
  %v3524 = vpop.permute.xlu0 %3523
  %3525 = vrot.lane.b32.xlu0 %v3492, 32
  %v3526 = vpop.permute.xlu0 %3525
  %3527 = vrot.lane.b32.xlu0 %v3493, 32
  %v3528 = vpop.permute.xlu0 %3527
  %3529 = vrot.lane.b32.xlu0 %v3494, 32
  %v3530 = vpop.permute.xlu0 %3529
  %3531 = vrot.lane.b32.xlu0 %v3495, 32
  %v3532 = vpop.permute.xlu0 %3531
  %3533 = vrot.lane.b32.xlu0 %v3496, 32
  %v3534 = vpop.permute.xlu0 %3533
  %3535 = vrot.lane.b32.xlu0 %v3497, 32
  %v3536 = vpop.permute.xlu0 %3535
  %3537 = vrot.lane.b32.xlu0 %v3498, 32
  %v3538 = vpop.permute.xlu0 %3537
  %3539 = vrot.lane.b32.xlu0 %v3499, 32
  %v3540 = vpop.permute.xlu0 %3539
  %3541 = vrot.lane.b32.xlu0 %v3500, 32
  %v3542 = vpop.permute.xlu0 %3541
  %3543 = vrot.lane.b32.xlu0 %v3501, 32
  %v3544 = vpop.permute.xlu0 %3543
  %3545 = vrot.lane.b32.xlu0 %v3502, 32
  %v3546 = vpop.permute.xlu0 %3545
  %3547 = vrot.lane.b32.xlu0 %v3503, 32
  %v3548 = vpop.permute.xlu0 %3547
  %3549 = vrot.lane.b32.xlu0 %v3504, 32
  %v3550 = vpop.permute.xlu0 %3549
  %3551 = vrot.lane.b32.xlu0 %v3505, 32
  %v3552 = vpop.permute.xlu0 %3551
  %3553 = vrot.lane.b32.xlu0 %v3510, 32
  %v3554 = vpop.permute.xlu0 %3553
  %v3557 = vunpack.c.l.b16 %v3394
  %v3558 = vunpack.c.l.b16 %v3395
  %v3559 = vpack.c.b16 %v3558, %v3557
  %3560 = vrot.lane.b32.xlu0 %v3486, 64
  %v3561 = vpop.permute.xlu0 %3560
  %3562 = vrot.lane.b32.xlu0 %v3487, 64
  %v3563 = vpop.permute.xlu0 %3562
  %3564 = vrot.lane.b32.xlu0 %v3488, 64
  %v3565 = vpop.permute.xlu0 %3564
  %3566 = vrot.lane.b32.xlu0 %v3489, 64
  %v3567 = vpop.permute.xlu0 %3566
  %3568 = vrot.lane.b32.xlu0 %v3490, 64
  %v3569 = vpop.permute.xlu0 %3568
  %3570 = vrot.lane.b32.xlu0 %v3491, 64
  %v3571 = vpop.permute.xlu0 %3570
  %3572 = vrot.lane.b32.xlu0 %v3492, 64
  %v3573 = vpop.permute.xlu0 %3572
  %3574 = vrot.lane.b32.xlu0 %v3493, 64
  %v3575 = vpop.permute.xlu0 %3574
  %3576 = vrot.lane.b32.xlu0 %v3494, 64
  %v3577 = vpop.permute.xlu0 %3576
  %3578 = vrot.lane.b32.xlu0 %v3495, 64
  %v3579 = vpop.permute.xlu0 %3578
  %3580 = vrot.lane.b32.xlu0 %v3496, 64
  %v3581 = vpop.permute.xlu0 %3580
  %3582 = vrot.lane.b32.xlu0 %v3497, 64
  %v3583 = vpop.permute.xlu0 %3582
  %3584 = vrot.lane.b32.xlu0 %v3498, 64
  %v3585 = vpop.permute.xlu0 %3584
  %3586 = vrot.lane.b32.xlu0 %v3499, 64
  %v3587 = vpop.permute.xlu0 %3586
  %3588 = vrot.lane.b32.xlu0 %v3500, 64
  %v3589 = vpop.permute.xlu0 %3588
  %3590 = vrot.lane.b32.xlu0 %v3501, 64
  %v3591 = vpop.permute.xlu0 %3590
  %3592 = vrot.lane.b32.xlu0 %v3502, 64
  %v3593 = vpop.permute.xlu0 %3592
  %3594 = vrot.lane.b32.xlu0 %v3503, 64
  %v3595 = vpop.permute.xlu0 %3594
  %3596 = vrot.lane.b32.xlu0 %v3504, 64
  %v3597 = vpop.permute.xlu0 %3596
  %3598 = vrot.lane.b32.xlu0 %v3505, 64
  %v3599 = vpop.permute.xlu0 %3598
  %3600 = vrot.lane.b32.xlu0 %v3510, 64
  %v3601 = vpop.permute.xlu0 %3600
  %3602 = vrot.lane.b32.xlu0 %v3559, 64
  %v3603 = vpop.permute.xlu0 %3602
  %v3606 = vsel %vm908, %v3484, %v3512
  %v3609 = vsel %vm908, %v3485, %v3514
  %v3612 = vsel %vm908, %v3486, %v3516
  %v3615 = vsel %vm908, %v3487, %v3518
  %v3618 = vsel %vm908, %v3488, %v3520
  %v3621 = vsel %vm908, %v3489, %v3522
  %v3624 = vsel %vm908, %v3490, %v3524
  %v3627 = vsel %vm908, %v3491, %v3526
  %v3630 = vsel %vm908, %v3492, %v3528
  %v3633 = vsel %vm908, %v3493, %v3530
  %v3636 = vsel %vm908, %v3494, %v3532
  %v3639 = vsel %vm908, %v3495, %v3534
  %v3642 = vsel %vm908, %v3496, %v3536
  %v3645 = vsel %vm908, %v3497, %v3538
  %v3648 = vsel %vm908, %v3498, %v3540
  %v3651 = vsel %vm908, %v3499, %v3542
  %v3654 = vsel %vm908, %v3500, %v3544
  %v3657 = vsel %vm908, %v3501, %v3546
  %v3660 = vsel %vm908, %v3502, %v3548
  %v3663 = vsel %vm908, %v3503, %v3550
  %v3666 = vsel %vm908, %v3504, %v3552
  %v3669 = vsel %vm908, %v3505, %v3554
  %v3671 = vsel %vm975, %v3606, %v3561
  %v3673 = vsel %vm975, %v3609, %v3563
  %v3675 = vsel %vm975, %v3612, %v3565
  %v3677 = vsel %vm975, %v3615, %v3567
  %v3679 = vsel %vm975, %v3618, %v3569
  %v3681 = vsel %vm975, %v3621, %v3571
  %v3683 = vsel %vm975, %v3624, %v3573
  %v3685 = vsel %vm975, %v3627, %v3575
  %v3687 = vsel %vm975, %v3630, %v3577
  %v3689 = vsel %vm975, %v3633, %v3579
  %v3691 = vsel %vm975, %v3636, %v3581
  %v3693 = vsel %vm975, %v3639, %v3583
  %v3695 = vsel %vm975, %v3642, %v3585
  %v3697 = vsel %vm975, %v3645, %v3587
  %v3699 = vsel %vm975, %v3648, %v3589
  %v3701 = vsel %vm975, %v3651, %v3591
  %v3703 = vsel %vm975, %v3654, %v3593
  %v3705 = vsel %vm975, %v3657, %v3595
  %v3707 = vsel %vm975, %v3660, %v3597
  %v3709 = vsel %vm975, %v3663, %v3599
  %v3711 = vsel %vm975, %v3666, %v3601
  %v3713 = vsel %vm975, %v3669, %v3603
  %s3714 = scalar_lea.vmem %s3, 240
  %v3715 = vld [vmem:[%s3714] sm:$0xf]
  %v3716 = vld [vmem:[%s3714 + $0x4] sm:$0xf]
  %v3717 = vld [vmem:[%s3714 + $0x8] sm:$0xf]
  %v3718 = vld [vmem:[%s3714 + $0xc] sm:$0xf]
  %v3719 = vld [vmem:[%s3714 + $0x10] sm:$0xf]
  %v3720 = vld [vmem:[%s3714 + $0x14] sm:$0xf]
  %v3721 = vld [vmem:[%s3714 + $0x18] sm:$0xf]
  %v3722 = vld [vmem:[%s3714 + $0x1c] sm:$0xf]
  %v3723 = vld [vmem:[%s3714 + $0x20] sm:$0xf]
  %v3724 = vld [vmem:[%s3714 + $0x24] sm:$0xf]
  %v3725 = vld [vmem:[%s3714 + $0x28] sm:$0xf]
  %v3726 = vld [vmem:[%s3714 + $0x2c] sm:$0xf]
  %v3739 = vunpack.c.l.b16 %v3715
  %v3740 = vunpack.c.l.b16 %v3716
  %v3741 = vunpack.c.l.b16 %v3717
  %v3742 = vunpack.c.l.b16 %v3718
  %v3743 = vunpack.c.l.b16 %v3719
  %v3744 = vunpack.c.l.b16 %v3720
  %v3745 = vunpack.c.l.b16 %v3721
  %v3746 = vunpack.c.l.b16 %v3722
  %v3747 = vunpack.c.l.b16 %v3723
  %v3748 = vunpack.c.l.b16 %v3724
  %v3749 = vunpack.c.l.b16 %v3725
  %v3750 = vunpack.c.l.b16 %v3726
  %v3751 = vpack.c.b16 %v3740, %v3739
  %v3752 = vpack.c.b16 %v3742, %v3741
  %v3753 = vpack.c.b16 %v3744, %v3743
  %v3754 = vpack.c.b16 %v3746, %v3745
  %v3755 = vpack.c.b16 %v3748, %v3747
  %v3756 = vpack.c.b16 %v3750, %v3749
  %v3763 = vsel %vm1177, %v3671, 0
  %v3765 = vsel %vm1177, %v3673, 0
  %v3767 = vsel %vm1177, %v3675, 0
  %v3769 = vsel %vm1177, %v3677, 0
  %v3771 = vsel %vm1177, %v3679, 0
  %v3773 = vsel %vm1177, %v3681, 0
  %v3775 = vsel %vm1177, %v3683, 0
  %v3777 = vsel %vm1177, %v3685, 0
  %v3779 = vsel %vm1177, %v3687, 0
  %v3781 = vsel %vm1177, %v3689, 0
  %v3783 = vsel %vm1177, %v3691, 0
  %v3785 = vsel %vm1177, %v3693, 0
  %v3787 = vsel %vm1177, %v3695, 0
  %v3789 = vsel %vm1177, %v3697, 0
  %v3791 = vsel %vm1177, %v3699, 0
  %v3793 = vsel %vm1177, %v3701, 0
  %v3795 = vsel %vm1177, %v3703, 0
  %v3797 = vsel %vm1177, %v3705, 0
  %v3799 = vsel %vm1177, %v3707, 0
  %v3801 = vsel %vm1177, %v3709, 0
  %v3803 = vsel %vm1177, %v3711, 0
  %v3805 = vsel %vm1177, %v3713, 0
  %3807 = vmatprep.subr.bf16.mxu0 0
  %3808 = vmatpush1.bf16.msra.mxu0 0
  %3809 = vmatprep.subr.bf16.mxu0 0
  %3810 = vmatpush1.bf16.msra.mxu0 0
  %3811 = vmatprep.subr.bf16.mxu0 0
  %3812 = vmatpush1.bf16.msra.mxu0 %v3756
  %3813 = vmatprep.subr.bf16.mxu0 0
  %3814 = vmatpush1.bf16.msra.mxu0 %v3755
  %3815 = vmatprep.subr.bf16.mxu0 0
  %3816 = vmatpush1.bf16.msra.mxu0 %v3754
  %3817 = vmatprep.subr.bf16.mxu0 0
  %3818 = vmatpush1.bf16.msra.mxu0 %v3753
  %3819 = vmatprep.subr.bf16.mxu0 0
  %3820 = vmatpush1.bf16.msra.mxu0 %v3752
  %3821 = vmatprep.subr.bf16.mxu0 0
  %3822 = vmatpush1.bf16.msra.mxu0 %v3751
  %3823 = vmatprep.subr.bf16.mxu0 0
  %3824 = vmatpush2.bf16.msra.mxu0 0
  %3825 = vmatprep.subr.bf16.mxu0 0
  %3826 = vmatpush2.bf16.msra.mxu0 0
  %3827 = vmatprep.subr.bf16.mxu0 0
  %3828 = vmatpush2.bf16.msra.mxu0 0
  %3829 = vmatprep.subr.bf16.mxu0 0
  %3830 = vmatpush2.bf16.msra.mxu0 0
  %3831 = vmatprep.subr.bf16.mxu0 0
  %3832 = vmatpush2.bf16.msra.mxu0 0
  %3833 = vmatprep.subr.bf16.mxu0 0
  %3834 = vmatpush2.bf16.msra.mxu0 0
  %3835 = vmatprep.subr.bf16.mxu0 0
  %3836 = vmatpush2.bf16.msra.mxu0 0
  %3837 = vmatprep.subr.bf16.mxu0 0
  %3838 = vmatpush2.bf16.msra.mxu0 0
  %3839 = vmatprep.mubr.bf16.mxu0 0
  %3840 = vmatmul.mubr.bf16.gmra.mxu0 %v3763
  %v3841 = vpop.f32.mrf.mxu0
  %v3842 = vadd.f32 0.0, %v3841
  %v3843 = vpop.f32.mrf.mxu0
  %v3844 = vpop.f32.mrf.mxu0
  %v3845 = vadd.f32 0.0, %v3844
  %v3846 = vpop.f32.mrf.mxu0
  %3847 = vmatprep.mubr.bf16.mxu0 0
  %3848 = vmatmul.mubr.bf16.gmra.mxu0 %v3765
  %v3849 = vpop.f32.mrf.mxu0
  %v3850 = vadd.f32 0.0, %v3849
  %v3851 = vpop.f32.mrf.mxu0
  %v3852 = vpop.f32.mrf.mxu0
  %v3853 = vadd.f32 0.0, %v3852
  %v3854 = vpop.f32.mrf.mxu0
  %3855 = vmatprep.mubr.bf16.mxu0 0
  %3856 = vmatmul.mubr.bf16.gmra.mxu0 %v3767
  %v3857 = vpop.f32.mrf.mxu0
  %v3858 = vadd.f32 0.0, %v3857
  %v3859 = vpop.f32.mrf.mxu0
  %v3860 = vpop.f32.mrf.mxu0
  %v3861 = vadd.f32 0.0, %v3860
  %v3862 = vpop.f32.mrf.mxu0
  %3863 = vmatprep.mubr.bf16.mxu0 0
  %3864 = vmatmul.mubr.bf16.gmra.mxu0 %v3769
  %v3865 = vpop.f32.mrf.mxu0
  %v3866 = vadd.f32 0.0, %v3865
  %v3867 = vpop.f32.mrf.mxu0
  %v3868 = vpop.f32.mrf.mxu0
  %v3869 = vadd.f32 0.0, %v3868
  %v3870 = vpop.f32.mrf.mxu0
  %3871 = vmatprep.mubr.bf16.mxu0 0
  %3872 = vmatmul.mubr.bf16.gmra.mxu0 %v3771
  %v3873 = vpop.f32.mrf.mxu0
  %v3874 = vpop.f32.mrf.mxu0
  %v3875 = vpop.f32.mrf.mxu0
  %v3876 = vpop.f32.mrf.mxu0
  %3877 = vmatprep.mubr.bf16.mxu0 0
  %3878 = vmatmul.mubr.bf16.gmra.mxu0 %v3773
  %v3879 = vpop.f32.mrf.mxu0
  %v3880 = vpop.f32.mrf.mxu0
  %v3881 = vpop.f32.mrf.mxu0
  %v3882 = vpop.f32.mrf.mxu0
  %3883 = vmatprep.mubr.bf16.mxu0 0
  %3884 = vmatmul.mubr.bf16.gmra.mxu0 %v3775
  %v3885 = vpop.f32.mrf.mxu0
  %v3886 = vadd.f32 0.0, %v3885
  %v3887 = vpop.f32.mrf.mxu0
  %v3888 = vpop.f32.mrf.mxu0
  %v3889 = vadd.f32 0.0, %v3888
  %v3890 = vpop.f32.mrf.mxu0
  %3891 = vmatprep.mubr.bf16.mxu0 0
  %3892 = vmatmul.mubr.bf16.gmra.mxu0 %v3777
  %v3893 = vpop.f32.mrf.mxu0
  %v3894 = vadd.f32 0.0, %v3893
  %v3895 = vpop.f32.mrf.mxu0
  %v3896 = vpop.f32.mrf.mxu0
  %v3897 = vadd.f32 0.0, %v3896
  %v3898 = vpop.f32.mrf.mxu0
  %3899 = vmatprep.mubr.bf16.mxu0 0
  %3900 = vmatmul.mubr.bf16.gmra.mxu0 %v3779
  %v3901 = vpop.f32.mrf.mxu0
  %v3902 = vadd.f32 0.0, %v3901
  %v3903 = vpop.f32.mrf.mxu0
  %v3904 = vpop.f32.mrf.mxu0
  %v3905 = vadd.f32 0.0, %v3904
  %v3906 = vpop.f32.mrf.mxu0
  %3907 = vmatprep.mubr.bf16.mxu0 0
  %3908 = vmatmul.mubr.bf16.gmra.mxu0 %v3781
  %v3909 = vpop.f32.mrf.mxu0
  %v3910 = vadd.f32 0.0, %v3909
  %v3911 = vpop.f32.mrf.mxu0
  %v3912 = vpop.f32.mrf.mxu0
  %v3913 = vadd.f32 0.0, %v3912
  %v3914 = vpop.f32.mrf.mxu0
  %3915 = vmatprep.mubr.bf16.mxu0 0
  %3916 = vmatmul.mubr.bf16.gmra.mxu0 %v3783
  %v3917 = vpop.f32.mrf.mxu0
  %v3918 = vpop.f32.mrf.mxu0
  %v3919 = vpop.f32.mrf.mxu0
  %v3920 = vpop.f32.mrf.mxu0
  %3921 = vmatprep.mubr.bf16.mxu0 0
  %3922 = vmatmul.mubr.bf16.gmra.mxu0 %v3785
  %v3923 = vpop.f32.mrf.mxu0
  %v3924 = vpop.f32.mrf.mxu0
  %v3925 = vpop.f32.mrf.mxu0
  %v3926 = vpop.f32.mrf.mxu0
  %3927 = vmatprep.mubr.bf16.mxu0 0
  %3928 = vmatmul.mubr.bf16.gmra.mxu0 %v3787
  %v3929 = vpop.f32.mrf.mxu0
  %v3930 = vadd.f32 0.0, %v3929
  %v3931 = vpop.f32.mrf.mxu0
  %v3932 = vpop.f32.mrf.mxu0
  %v3933 = vadd.f32 0.0, %v3932
  %v3934 = vpop.f32.mrf.mxu0
  %3935 = vmatprep.mubr.bf16.mxu0 0
  %3936 = vmatmul.mubr.bf16.gmra.mxu0 %v3789
  %v3937 = vpop.f32.mrf.mxu0
  %v3938 = vadd.f32 0.0, %v3937
  %v3939 = vpop.f32.mrf.mxu0
  %v3940 = vpop.f32.mrf.mxu0
  %v3941 = vadd.f32 0.0, %v3940
  %v3942 = vpop.f32.mrf.mxu0
  %3943 = vmatprep.mubr.bf16.mxu0 0
  %3944 = vmatmul.mubr.bf16.gmra.mxu0 %v3791
  %v3945 = vpop.f32.mrf.mxu0
  %v3946 = vadd.f32 0.0, %v3945
  %v3947 = vpop.f32.mrf.mxu0
  %v3948 = vpop.f32.mrf.mxu0
  %v3949 = vadd.f32 0.0, %v3948
  %v3950 = vpop.f32.mrf.mxu0
  %3951 = vmatprep.mubr.bf16.mxu0 0
  %3952 = vmatmul.mubr.bf16.gmra.mxu0 %v3793
  %v3953 = vpop.f32.mrf.mxu0
  %v3954 = vadd.f32 0.0, %v3953
  %v3955 = vpop.f32.mrf.mxu0
  %v3956 = vpop.f32.mrf.mxu0
  %v3957 = vadd.f32 0.0, %v3956
  %v3958 = vpop.f32.mrf.mxu0
  %3959 = vmatprep.mubr.bf16.mxu0 0
  %3960 = vmatmul.mubr.bf16.gmra.mxu0 %v3795
  %v3961 = vpop.f32.mrf.mxu0
  %v3962 = vpop.f32.mrf.mxu0
  %v3963 = vpop.f32.mrf.mxu0
  %v3964 = vpop.f32.mrf.mxu0
  %3965 = vmatprep.mubr.bf16.mxu0 0
  %3966 = vmatmul.mubr.bf16.gmra.mxu0 %v3797
  %v3967 = vpop.f32.mrf.mxu0
  %v3968 = vpop.f32.mrf.mxu0
  %v3969 = vpop.f32.mrf.mxu0
  %v3970 = vpop.f32.mrf.mxu0
  %3971 = vmatprep.mubr.bf16.mxu0 0
  %3972 = vmatmul.mubr.bf16.gmra.mxu0 %v3799
  %v3973 = vpop.f32.mrf.mxu0
  %v3974 = vadd.f32 0.0, %v3973
  %v3975 = vpop.f32.mrf.mxu0
  %v3976 = vpop.f32.mrf.mxu0
  %v3977 = vadd.f32 0.0, %v3976
  %v3978 = vpop.f32.mrf.mxu0
  %3979 = vmatprep.mubr.bf16.mxu0 0
  %3980 = vmatmul.mubr.bf16.gmra.mxu0 %v3801
  %v3981 = vpop.f32.mrf.mxu0
  %v3982 = vadd.f32 0.0, %v3981
  %v3983 = vpop.f32.mrf.mxu0
  %v3984 = vpop.f32.mrf.mxu0
  %v3985 = vadd.f32 0.0, %v3984
  %v3986 = vpop.f32.mrf.mxu0
  %3987 = vmatprep.mubr.bf16.mxu0 0
  %3988 = vmatmul.mubr.bf16.gmra.mxu0 %v3803
  %v3989 = vpop.f32.mrf.mxu0
  %v3990 = vadd.f32 0.0, %v3989
  %v3991 = vpop.f32.mrf.mxu0
  %v3992 = vpop.f32.mrf.mxu0
  %v3993 = vadd.f32 0.0, %v3992
  %v3994 = vpop.f32.mrf.mxu0
  %3995 = vmatprep.mubr.bf16.mxu0 0
  %3996 = vmatmul.mubr.bf16.gmra.mxu0 %v3805
  %v3997 = vpop.f32.mrf.mxu0
  %v3998 = vadd.f32 0.0, %v3997
  %v3999 = vpop.f32.mrf.mxu0
  %v4000 = vpop.f32.mrf.mxu0
  %v4001 = vadd.f32 0.0, %v4000
  %v4002 = vpop.f32.mrf.mxu0
  %4003 = vdwg.mxu0
  %v4016 = vunpack.c.l.b16 %v2950
  %v4017 = vunpack.c.l.b16 %v2951
  %v4018 = vunpack.c.l.b16 %v2952
  %v4019 = vunpack.c.l.b16 %v2953
  %v4020 = vunpack.c.l.b16 %v2954
  %v4021 = vunpack.c.l.b16 %v2955
  %v4022 = vunpack.c.l.b16 %v2956
  %v4023 = vunpack.c.l.b16 %v2957
  %v4024 = vunpack.c.l.b16 %v2958
  %v4025 = vunpack.c.l.b16 %v2959
  %v4026 = vunpack.c.l.b16 %v2960
  %v4027 = vunpack.c.l.b16 %v2961
  %v4028 = vpack.c.b16 %v4017, %v4016
  %v4029 = vpack.c.b16 %v4019, %v4018
  %v4030 = vpack.c.b16 %v4021, %v4020
  %v4031 = vpack.c.b16 %v4023, %v4022
  %v4032 = vpack.c.b16 %v4025, %v4024
  %v4033 = vpack.c.b16 %v4027, %v4026
  %v4040 = vsel %vm1177, %v2906, 0
  %v4042 = vsel %vm1177, %v2908, 0
  %v4044 = vsel %vm1177, %v2910, 0
  %v4046 = vsel %vm1177, %v2912, 0
  %v4048 = vsel %vm1177, %v2914, 0
  %v4050 = vsel %vm1177, %v2916, 0
  %4052 = vmatprep.subr.bf16.mxu0 0
  %4053 = vmatpush1.bf16.msra.mxu0 0
  %4054 = vmatprep.subr.bf16.mxu0 0
  %4055 = vmatpush1.bf16.msra.mxu0 0
  %4056 = vmatprep.subr.bf16.mxu0 0
  %4057 = vmatpush1.bf16.msra.mxu0 %v4033
  %4058 = vmatprep.subr.bf16.mxu0 0
  %4059 = vmatpush1.bf16.msra.mxu0 %v4032
  %4060 = vmatprep.subr.bf16.mxu0 0
  %4061 = vmatpush1.bf16.msra.mxu0 %v4031
  %4062 = vmatprep.subr.bf16.mxu0 0
  %4063 = vmatpush1.bf16.msra.mxu0 %v4030
  %4064 = vmatprep.subr.bf16.mxu0 0
  %4065 = vmatpush1.bf16.msra.mxu0 %v4029
  %4066 = vmatprep.subr.bf16.mxu0 0
  %4067 = vmatpush1.bf16.msra.mxu0 %v4028
  %4068 = vmatprep.subr.bf16.mxu0 0
  %4069 = vmatpush2.bf16.msra.mxu0 0
  %4070 = vmatprep.subr.bf16.mxu0 0
  %4071 = vmatpush2.bf16.msra.mxu0 0
  %4072 = vmatprep.subr.bf16.mxu0 0
  %4073 = vmatpush2.bf16.msra.mxu0 0
  %4074 = vmatprep.subr.bf16.mxu0 0
  %4075 = vmatpush2.bf16.msra.mxu0 0
  %4076 = vmatprep.subr.bf16.mxu0 0
  %4077 = vmatpush2.bf16.msra.mxu0 0
  %4078 = vmatprep.subr.bf16.mxu0 0
  %4079 = vmatpush2.bf16.msra.mxu0 0
  %4080 = vmatprep.subr.bf16.mxu0 0
  %4081 = vmatpush2.bf16.msra.mxu0 0
  %4082 = vmatprep.subr.bf16.mxu0 0
  %4083 = vmatpush2.bf16.msra.mxu0 0
  %4084 = vmatprep.mubr.bf16.mxu0 0
  %4085 = vmatmul.mubr.bf16.gmra.mxu0 %v4040
  %v4086 = vpop.f32.mrf.mxu0
  %v4087 = vadd.f32 %v3186, %v4086
  %v4088 = vpop.f32.mrf.mxu0
  %v4089 = vpop.f32.mrf.mxu0
  %v4090 = vadd.f32 %v3189, %v4089
  %v4091 = vpop.f32.mrf.mxu0
  %4092 = vmatprep.mubr.bf16.mxu0 0
  %4093 = vmatmul.mubr.bf16.gmra.mxu0 %v4042
  %v4094 = vpop.f32.mrf.mxu0
  %v4095 = vadd.f32 %v3194, %v4094
  %v4096 = vpop.f32.mrf.mxu0
  %v4097 = vpop.f32.mrf.mxu0
  %v4098 = vadd.f32 %v3197, %v4097
  %v4099 = vpop.f32.mrf.mxu0
  %4100 = vmatprep.mubr.bf16.mxu0 0
  %4101 = vmatmul.mubr.bf16.gmra.mxu0 %v4044
  %v4102 = vpop.f32.mrf.mxu0
  %v4103 = vadd.f32 %v3202, %v4102
  %v4104 = vpop.f32.mrf.mxu0
  %v4105 = vpop.f32.mrf.mxu0
  %v4106 = vadd.f32 %v3205, %v4105
  %v4107 = vpop.f32.mrf.mxu0
  %4108 = vmatprep.mubr.bf16.mxu0 0
  %4109 = vmatmul.mubr.bf16.gmra.mxu0 %v4046
  %v4110 = vpop.f32.mrf.mxu0
  %v4111 = vadd.f32 %v3210, %v4110
  %v4112 = vpop.f32.mrf.mxu0
  %v4113 = vpop.f32.mrf.mxu0
  %v4114 = vadd.f32 %v3213, %v4113
  %v4115 = vpop.f32.mrf.mxu0
  %4116 = vmatprep.mubr.bf16.mxu0 0
  %4117 = vmatmul.mubr.bf16.gmra.mxu0 %v4048
  %v4118 = vpop.f32.mrf.mxu0
  %v4119 = vpop.f32.mrf.mxu0
  %v4120 = vpop.f32.mrf.mxu0
  %v4121 = vpop.f32.mrf.mxu0
  %4122 = vmatprep.mubr.bf16.mxu0 0
  %4123 = vmatmul.mubr.bf16.gmra.mxu0 %v4050
  %v4124 = vpop.f32.mrf.mxu0
  %v4125 = vpop.f32.mrf.mxu0
  %v4126 = vpop.f32.mrf.mxu0
  %v4127 = vpop.f32.mrf.mxu0
  %4128 = vmatprep.mubr.bf16.mxu0 0
  %4129 = vmatmul.mubr.bf16.gmra.mxu0 %v3107
  %v4130 = vpop.f32.mrf.mxu0
  %v4131 = vadd.f32 %v3230, %v4130
  %v4132 = vpop.f32.mrf.mxu0
  %v4133 = vpop.f32.mrf.mxu0
  %v4134 = vadd.f32 %v3233, %v4133
  %v4135 = vpop.f32.mrf.mxu0
  %4136 = vmatprep.mubr.bf16.mxu0 0
  %4137 = vmatmul.mubr.bf16.gmra.mxu0 %v3109
  %v4138 = vpop.f32.mrf.mxu0
  %v4139 = vadd.f32 %v3238, %v4138
  %v4140 = vpop.f32.mrf.mxu0
  %v4141 = vpop.f32.mrf.mxu0
  %v4142 = vadd.f32 %v3241, %v4141
  %v4143 = vpop.f32.mrf.mxu0
  %4144 = vmatprep.mubr.bf16.mxu0 0
  %4145 = vmatmul.mubr.bf16.gmra.mxu0 %v3111
  %v4146 = vpop.f32.mrf.mxu0
  %v4147 = vadd.f32 %v3246, %v4146
  %v4148 = vpop.f32.mrf.mxu0
  %v4149 = vpop.f32.mrf.mxu0
  %v4150 = vadd.f32 %v3249, %v4149
  %v4151 = vpop.f32.mrf.mxu0
  %4152 = vmatprep.mubr.bf16.mxu0 0
  %4153 = vmatmul.mubr.bf16.gmra.mxu0 %v3113
  %v4154 = vpop.f32.mrf.mxu0
  %v4155 = vadd.f32 %v3254, %v4154
  %v4156 = vpop.f32.mrf.mxu0
  %v4157 = vpop.f32.mrf.mxu0
  %v4158 = vadd.f32 %v3257, %v4157
  %v4159 = vpop.f32.mrf.mxu0
  %4160 = vmatprep.mubr.bf16.mxu0 0
  %4161 = vmatmul.mubr.bf16.gmra.mxu0 %v3115
  %v4162 = vpop.f32.mrf.mxu0
  %v4163 = vpop.f32.mrf.mxu0
  %v4164 = vpop.f32.mrf.mxu0
  %v4165 = vpop.f32.mrf.mxu0
  %4166 = vmatprep.mubr.bf16.mxu0 0
  %4167 = vmatmul.mubr.bf16.gmra.mxu0 %v3117
  %v4168 = vpop.f32.mrf.mxu0
  %v4169 = vpop.f32.mrf.mxu0
  %v4170 = vpop.f32.mrf.mxu0
  %v4171 = vpop.f32.mrf.mxu0
  %4172 = vmatprep.mubr.bf16.mxu0 0
  %4173 = vmatmul.mubr.bf16.gmra.mxu0 %v3119
  %v4174 = vpop.f32.mrf.mxu0
  %v4175 = vadd.f32 %v3274, %v4174
  %v4176 = vpop.f32.mrf.mxu0
  %v4177 = vpop.f32.mrf.mxu0
  %v4178 = vadd.f32 %v3277, %v4177
  %v4179 = vpop.f32.mrf.mxu0
  %4180 = vmatprep.mubr.bf16.mxu0 0
  %4181 = vmatmul.mubr.bf16.gmra.mxu0 %v3121
  %v4182 = vpop.f32.mrf.mxu0
  %v4183 = vadd.f32 %v3282, %v4182
  %v4184 = vpop.f32.mrf.mxu0
  %v4185 = vpop.f32.mrf.mxu0
  %v4186 = vadd.f32 %v3285, %v4185
  %v4187 = vpop.f32.mrf.mxu0
  %4188 = vmatprep.mubr.bf16.mxu0 0
  %4189 = vmatmul.mubr.bf16.gmra.mxu0 %v3123
  %v4190 = vpop.f32.mrf.mxu0
  %v4191 = vadd.f32 %v3290, %v4190
  %v4192 = vpop.f32.mrf.mxu0
  %v4193 = vpop.f32.mrf.mxu0
  %v4194 = vadd.f32 %v3293, %v4193
  %v4195 = vpop.f32.mrf.mxu0
  %4196 = vmatprep.mubr.bf16.mxu0 0
  %4197 = vmatmul.mubr.bf16.gmra.mxu0 %v3125
  %v4198 = vpop.f32.mrf.mxu0
  %v4199 = vadd.f32 %v3298, %v4198
  %v4200 = vpop.f32.mrf.mxu0
  %v4201 = vpop.f32.mrf.mxu0
  %v4202 = vadd.f32 %v3301, %v4201
  %v4203 = vpop.f32.mrf.mxu0
  %4204 = vmatprep.mubr.bf16.mxu0 0
  %4205 = vmatmul.mubr.bf16.gmra.mxu0 %v3127
  %v4206 = vpop.f32.mrf.mxu0
  %v4207 = vpop.f32.mrf.mxu0
  %v4208 = vpop.f32.mrf.mxu0
  %v4209 = vpop.f32.mrf.mxu0
  %4210 = vmatprep.mubr.bf16.mxu0 0
  %4211 = vmatmul.mubr.bf16.gmra.mxu0 %v3129
  %v4212 = vpop.f32.mrf.mxu0
  %v4213 = vpop.f32.mrf.mxu0
  %v4214 = vpop.f32.mrf.mxu0
  %v4215 = vpop.f32.mrf.mxu0
  %4216 = vmatprep.mubr.bf16.mxu0 0
  %4217 = vmatmul.mubr.bf16.gmra.mxu0 %v3131
  %v4218 = vpop.f32.mrf.mxu0
  %v4219 = vadd.f32 %v3318, %v4218
  %v4220 = vpop.f32.mrf.mxu0
  %v4221 = vpop.f32.mrf.mxu0
  %v4222 = vadd.f32 %v3321, %v4221
  %v4223 = vpop.f32.mrf.mxu0
  %4224 = vmatprep.mubr.bf16.mxu0 0
  %4225 = vmatmul.mubr.bf16.gmra.mxu0 %v3133
  %v4226 = vpop.f32.mrf.mxu0
  %v4227 = vadd.f32 %v3326, %v4226
  %v4228 = vpop.f32.mrf.mxu0
  %v4229 = vpop.f32.mrf.mxu0
  %v4230 = vadd.f32 %v3329, %v4229
  %v4231 = vpop.f32.mrf.mxu0
  %4232 = vmatprep.mubr.bf16.mxu0 0
  %4233 = vmatmul.mubr.bf16.gmra.mxu0 %v3135
  %v4234 = vpop.f32.mrf.mxu0
  %v4235 = vadd.f32 %v3334, %v4234
  %v4236 = vpop.f32.mrf.mxu0
  %v4237 = vpop.f32.mrf.mxu0
  %v4238 = vadd.f32 %v3337, %v4237
  %v4239 = vpop.f32.mrf.mxu0
  %4240 = vmatprep.mubr.bf16.mxu0 0
  %4241 = vmatmul.mubr.bf16.gmra.mxu0 %v3137
  %v4242 = vpop.f32.mrf.mxu0
  %v4243 = vadd.f32 %v3342, %v4242
  %v4244 = vpop.f32.mrf.mxu0
  %v4245 = vpop.f32.mrf.mxu0
  %v4246 = vadd.f32 %v3345, %v4245
  %v4247 = vpop.f32.mrf.mxu0
  %4248 = vdwg.mxu0
  %v4249 = vadd.f32 %v4087, %v3842
  %v4250 = vadd.f32 %v4090, %v3845
  %v4251 = vadd.f32 %v4095, %v3850
  %v4252 = vadd.f32 %v4098, %v3853
  %v4253 = vadd.f32 %v4103, %v3858
  %v4254 = vadd.f32 %v4106, %v3861
  %v4255 = vadd.f32 %v4111, %v3866
  %v4256 = vadd.f32 %v4114, %v3869
  %v4257 = vadd.f32 %v4131, %v3886
  %v4258 = vadd.f32 %v4134, %v3889
  %v4259 = vadd.f32 %v4139, %v3894
  %v4260 = vadd.f32 %v4142, %v3897
  %v4261 = vadd.f32 %v4147, %v3902
  %v4262 = vadd.f32 %v4150, %v3905
  %v4263 = vadd.f32 %v4155, %v3910
  %v4264 = vadd.f32 %v4158, %v3913
  %v4265 = vadd.f32 %v4175, %v3930
  %v4266 = vadd.f32 %v4178, %v3933
  %v4267 = vadd.f32 %v4183, %v3938
  %v4268 = vadd.f32 %v4186, %v3941
  %v4269 = vadd.f32 %v4191, %v3946
  %v4270 = vadd.f32 %v4194, %v3949
  %v4271 = vadd.f32 %v4199, %v3954
  %v4272 = vadd.f32 %v4202, %v3957
  %v4273 = vadd.f32 %v4219, %v3974
  %v4274 = vadd.f32 %v4222, %v3977
  %v4275 = vadd.f32 %v4227, %v3982
  %v4276 = vadd.f32 %v4230, %v3985
  %v4277 = vadd.f32 %v4235, %v3990
  %v4278 = vadd.f32 %v4238, %v3993
  %v4279 = vadd.f32 %v4243, %v3998
  %v4280 = vadd.f32 %v4246, %v4001
  %s4281 = scalar_lea.vmem %s4, 1
  %v4282 = vld [vmem:[%s4281] sm:$0x1]
  %v4284 = vlaneseq
  %v4285 = vshrl.u32 %v4284, 7
  %v4286 = vsub.s32 0, %v4285
  %v4287 = vrot.slane %v4282, %v4286
  %v4289 = vadd.f32 %v4249, %v4287
  %v4290 = vadd.f32 %v4250, %v4287
  %v4291 = vadd.f32 %v4251, %v4287
  %v4292 = vadd.f32 %v4252, %v4287
  %v4293 = vadd.f32 %v4253, %v4287
  %v4294 = vadd.f32 %v4254, %v4287
  %v4295 = vadd.f32 %v4255, %v4287
  %v4296 = vadd.f32 %v4256, %v4287
  %v4297 = vadd.f32 %v4257, %v4287
  %v4298 = vadd.f32 %v4258, %v4287
  %v4299 = vadd.f32 %v4259, %v4287
  %v4300 = vadd.f32 %v4260, %v4287
  %v4301 = vadd.f32 %v4261, %v4287
  %v4302 = vadd.f32 %v4262, %v4287
  %v4303 = vadd.f32 %v4263, %v4287
  %v4304 = vadd.f32 %v4264, %v4287
  %v4305 = vadd.f32 %v4265, %v4287
  %v4306 = vadd.f32 %v4266, %v4287
  %v4307 = vadd.f32 %v4267, %v4287
  %v4308 = vadd.f32 %v4268, %v4287
  %v4309 = vadd.f32 %v4269, %v4287
  %v4310 = vadd.f32 %v4270, %v4287
  %v4311 = vadd.f32 %v4271, %v4287
  %v4312 = vadd.f32 %v4272, %v4287
  %v4313 = vadd.f32 %v4273, %v4287
  %v4314 = vadd.f32 %v4274, %v4287
  %v4315 = vadd.f32 %v4275, %v4287
  %v4316 = vadd.f32 %v4276, %v4287
  %v4317 = vadd.f32 %v4277, %v4287
  %v4318 = vadd.f32 %v4278, %v4287
  %v4319 = vadd.f32 %v4279, %v4287
  %v4320 = vadd.f32 %v4280, %v4287
  %v4321 = vmax.f32 %v4289, 0.0
  %v4322 = vmax.f32 %v4290, 0.0
  %v4323 = vmax.f32 %v4291, 0.0
  %v4324 = vmax.f32 %v4292, 0.0
  %v4325 = vmax.f32 %v4293, 0.0
  %v4326 = vmax.f32 %v4294, 0.0
  %v4327 = vmax.f32 %v4295, 0.0
  %v4328 = vmax.f32 %v4296, 0.0
  %v4329 = vmax.f32 %v4297, 0.0
  %v4330 = vmax.f32 %v4298, 0.0
  %v4331 = vmax.f32 %v4299, 0.0
  %v4332 = vmax.f32 %v4300, 0.0
  %v4333 = vmax.f32 %v4301, 0.0
  %v4334 = vmax.f32 %v4302, 0.0
  %v4335 = vmax.f32 %v4303, 0.0
  %v4336 = vmax.f32 %v4304, 0.0
  %v4337 = vmax.f32 %v4305, 0.0
  %v4338 = vmax.f32 %v4306, 0.0
  %v4339 = vmax.f32 %v4307, 0.0
  %v4340 = vmax.f32 %v4308, 0.0
  %v4341 = vmax.f32 %v4309, 0.0
  %v4342 = vmax.f32 %v4310, 0.0
  %v4343 = vmax.f32 %v4311, 0.0
  %v4344 = vmax.f32 %v4312, 0.0
  %v4345 = vmax.f32 %v4313, 0.0
  %v4346 = vmax.f32 %v4314, 0.0
  %v4347 = vmax.f32 %v4315, 0.0
  %v4348 = vmax.f32 %v4316, 0.0
  %v4349 = vmax.f32 %v4317, 0.0
  %v4350 = vmax.f32 %v4318, 0.0
  %v4351 = vmax.f32 %v4319, 0.0
  %v4352 = vmax.f32 %v4320, 0.0
  %v4353 = vpack.c.bf16 %v4322, %v4321
  %v4354 = vpack.c.bf16 %v4324, %v4323
  %v4355 = vpack.c.bf16 %v4326, %v4325
  %v4356 = vpack.c.bf16 %v4328, %v4327
  %v4357 = vpack.c.bf16 %v4330, %v4329
  %v4358 = vpack.c.bf16 %v4332, %v4331
  %v4359 = vpack.c.bf16 %v4334, %v4333
  %v4360 = vpack.c.bf16 %v4336, %v4335
  %v4361 = vpack.c.bf16 %v4338, %v4337
  %v4362 = vpack.c.bf16 %v4340, %v4339
  %v4363 = vpack.c.bf16 %v4342, %v4341
  %v4364 = vpack.c.bf16 %v4344, %v4343
  %v4365 = vpack.c.bf16 %v4346, %v4345
  %v4366 = vpack.c.bf16 %v4348, %v4347
  %v4367 = vpack.c.bf16 %v4350, %v4349
  %v4368 = vpack.c.bf16 %v4352, %v4351
  %v4373 = vunpack.c.l.b16 %v4353
  %v4374 = vunpack.c.h.b16 %v4353
  %v4375 = vunpack.c.l.b16 %v4354
  %v4376 = vunpack.c.h.b16 %v4354
  %v4377 = vunpack.c.l.b16 %v4355
  %v4378 = vunpack.c.h.b16 %v4355
  %v4379 = vunpack.c.l.b16 %v4356
  %v4380 = vunpack.c.h.b16 %v4356
  %v4381 = vpack.c.b16 %v4373, %v4373
  %v4382 = vpack.c.b16 %v4374, %v4374
  %v4383 = vpack.c.b16 %v4375, %v4375
  %v4384 = vpack.c.b16 %v4376, %v4376
  %v4385 = vpack.c.b16 %v4377, %v4377
  %v4386 = vpack.c.b16 %v4378, %v4378
  %v4387 = vpack.c.b16 %v4379, %v4379
  %v4388 = vpack.c.b16 %v4380, %v4380
  %4397 = vst.msk [vmem:[#allocation2 + $0x38] sm:$0xf] %vm27, %v4381
  %4398 = vst.msk [vmem:[#allocation2 + $0x3c] sm:$0xf] %vm27, %v4382
  %4399 = vst.msk [vmem:[#allocation2 + $0x40] sm:$0xf] %vm27, %v4383
  %4400 = vst.msk [vmem:[#allocation2 + $0x44] sm:$0xf] %vm27, %v4384
  %4401 = vst.msk [vmem:[#allocation2 + $0x48] sm:$0xf] %vm27, %v4385
  %4402 = vst.msk [vmem:[#allocation2 + $0x4c] sm:$0xf] %vm27, %v4386
  %4403 = vst.msk [vmem:[#allocation2 + $0x50] sm:$0xf] %vm27, %v4387
  %4404 = vst.msk [vmem:[#allocation2 + $0x54] sm:$0xf] %vm27, %v4388
  %v4409 = vunpack.c.l.b16 %v4357
  %v4410 = vunpack.c.h.b16 %v4357
  %v4411 = vunpack.c.l.b16 %v4358
  %v4412 = vunpack.c.h.b16 %v4358
  %v4413 = vunpack.c.l.b16 %v4359
  %v4414 = vunpack.c.h.b16 %v4359
  %v4415 = vunpack.c.l.b16 %v4360
  %v4416 = vunpack.c.h.b16 %v4360
  %v4417 = vpack.c.b16 %v4409, %v4409
  %v4418 = vpack.c.b16 %v4410, %v4410
  %v4419 = vpack.c.b16 %v4411, %v4411
  %v4420 = vpack.c.b16 %v4412, %v4412
  %v4421 = vpack.c.b16 %v4413, %v4413
  %v4422 = vpack.c.b16 %v4414, %v4414
  %v4423 = vpack.c.b16 %v4415, %v4415
  %v4424 = vpack.c.b16 %v4416, %v4416
  %4433 = vst.msk [vmem:[#allocation2 + $0x68] sm:$0xf] %vm27, %v4417
  %4434 = vst.msk [vmem:[#allocation2 + $0x6c] sm:$0xf] %vm27, %v4418
  %4435 = vst.msk [vmem:[#allocation2 + $0x70] sm:$0xf] %vm27, %v4419
  %4436 = vst.msk [vmem:[#allocation2 + $0x74] sm:$0xf] %vm27, %v4420
  %4437 = vst.msk [vmem:[#allocation2 + $0x78] sm:$0xf] %vm27, %v4421
  %4438 = vst.msk [vmem:[#allocation2 + $0x7c] sm:$0xf] %vm27, %v4422
  %4439 = vst.msk [vmem:[#allocation2 + $0x80] sm:$0xf] %vm27, %v4423
  %4440 = vst.msk [vmem:[#allocation2 + $0x84] sm:$0xf] %vm27, %v4424
  %v4445 = vunpack.c.l.b16 %v4361
  %v4446 = vunpack.c.h.b16 %v4361
  %v4447 = vunpack.c.l.b16 %v4362
  %v4448 = vunpack.c.h.b16 %v4362
  %v4449 = vunpack.c.l.b16 %v4363
  %v4450 = vunpack.c.h.b16 %v4363
  %v4451 = vunpack.c.l.b16 %v4364
  %v4452 = vunpack.c.h.b16 %v4364
  %v4453 = vpack.c.b16 %v4445, %v4445
  %v4454 = vpack.c.b16 %v4446, %v4446
  %v4455 = vpack.c.b16 %v4447, %v4447
  %v4456 = vpack.c.b16 %v4448, %v4448
  %v4457 = vpack.c.b16 %v4449, %v4449
  %v4458 = vpack.c.b16 %v4450, %v4450
  %v4459 = vpack.c.b16 %v4451, %v4451
  %v4460 = vpack.c.b16 %v4452, %v4452
  %4469 = vst.msk [vmem:[#allocation2 + $0x98] sm:$0xf] %vm27, %v4453
  %4470 = vst.msk [vmem:[#allocation2 + $0x9c] sm:$0xf] %vm27, %v4454
  %4471 = vst.msk [vmem:[#allocation2 + $0xa0] sm:$0xf] %vm27, %v4455
  %4472 = vst.msk [vmem:[#allocation2 + $0xa4] sm:$0xf] %vm27, %v4456
  %4473 = vst.msk [vmem:[#allocation2 + $0xa8] sm:$0xf] %vm27, %v4457
  %4474 = vst.msk [vmem:[#allocation2 + $0xac] sm:$0xf] %vm27, %v4458
  %4475 = vst.msk [vmem:[#allocation2 + $0xb0] sm:$0xf] %vm27, %v4459
  %4476 = vst.msk [vmem:[#allocation2 + $0xb4] sm:$0xf] %vm27, %v4460
  %v4481 = vunpack.c.l.b16 %v4365
  %v4482 = vunpack.c.h.b16 %v4365
  %v4483 = vunpack.c.l.b16 %v4366
  %v4484 = vunpack.c.h.b16 %v4366
  %v4485 = vunpack.c.l.b16 %v4367
  %v4486 = vunpack.c.h.b16 %v4367
  %v4487 = vunpack.c.l.b16 %v4368
  %v4488 = vunpack.c.h.b16 %v4368
  %v4489 = vpack.c.b16 %v4481, %v4481
  %v4490 = vpack.c.b16 %v4482, %v4482
  %v4491 = vpack.c.b16 %v4483, %v4483
  %v4492 = vpack.c.b16 %v4484, %v4484
  %v4493 = vpack.c.b16 %v4485, %v4485
  %v4494 = vpack.c.b16 %v4486, %v4486
  %v4495 = vpack.c.b16 %v4487, %v4487
  %v4496 = vpack.c.b16 %v4488, %v4488
  %4505 = vst.msk [vmem:[#allocation2 + $0xc8] sm:$0xf] %vm27, %v4489
  %4506 = vst.msk [vmem:[#allocation2 + $0xcc] sm:$0xf] %vm27, %v4490
  %4507 = vst.msk [vmem:[#allocation2 + $0xd0] sm:$0xf] %vm27, %v4491
  %4508 = vst.msk [vmem:[#allocation2 + $0xd4] sm:$0xf] %vm27, %v4492
  %4509 = vst.msk [vmem:[#allocation2 + $0xd8] sm:$0xf] %vm27, %v4493
  %4510 = vst.msk [vmem:[#allocation2 + $0xdc] sm:$0xf] %vm27, %v4494
  %4511 = vst.msk [vmem:[#allocation2 + $0xe0] sm:$0xf] %vm27, %v4495
  %4512 = vst.msk [vmem:[#allocation2 + $0xe4] sm:$0xf] %vm27, %v4496
  %4515 = vrot.lane.b32.xlu0 %v4323, 32
  %v4516 = vpop.permute.xlu0 %4515
  %4517 = vrot.lane.b32.xlu0 %v4324, 32
  %v4518 = vpop.permute.xlu0 %4517
  %4523 = vrot.lane.b32.xlu0 %v4325, 64
  %v4524 = vpop.permute.xlu0 %4523
  %4525 = vrot.lane.b32.xlu0 %v4326, 64
  %v4526 = vpop.permute.xlu0 %4525
  %4531 = vrot.lane.b32.xlu0 %v4327, 96
  %v4532 = vpop.permute.xlu0 %4531
  %4533 = vrot.lane.b32.xlu0 %v4328, 96
  %v4534 = vpop.permute.xlu0 %4533
  %4539 = vrot.lane.b32.xlu0 %v4331, 32
  %v4540 = vpop.permute.xlu0 %4539
  %4541 = vrot.lane.b32.xlu0 %v4332, 32
  %v4542 = vpop.permute.xlu0 %4541
  %4547 = vrot.lane.b32.xlu0 %v4333, 64
  %v4548 = vpop.permute.xlu0 %4547
  %4549 = vrot.lane.b32.xlu0 %v4334, 64
  %v4550 = vpop.permute.xlu0 %4549
  %4555 = vrot.lane.b32.xlu0 %v4335, 96
  %v4556 = vpop.permute.xlu0 %4555
  %4557 = vrot.lane.b32.xlu0 %v4336, 96
  %v4558 = vpop.permute.xlu0 %4557
  %4563 = vrot.lane.b32.xlu0 %v4339, 32
  %v4564 = vpop.permute.xlu0 %4563
  %4565 = vrot.lane.b32.xlu0 %v4340, 32
  %v4566 = vpop.permute.xlu0 %4565
  %4571 = vrot.lane.b32.xlu0 %v4341, 64
  %v4572 = vpop.permute.xlu0 %4571
  %4573 = vrot.lane.b32.xlu0 %v4342, 64
  %v4574 = vpop.permute.xlu0 %4573
  %4579 = vrot.lane.b32.xlu0 %v4343, 96
  %v4580 = vpop.permute.xlu0 %4579
  %4581 = vrot.lane.b32.xlu0 %v4344, 96
  %v4582 = vpop.permute.xlu0 %4581
  %4587 = vrot.lane.b32.xlu0 %v4347, 32
  %v4588 = vpop.permute.xlu0 %4587
  %4589 = vrot.lane.b32.xlu0 %v4348, 32
  %v4590 = vpop.permute.xlu0 %4589
  %4595 = vrot.lane.b32.xlu0 %v4349, 64
  %v4596 = vpop.permute.xlu0 %4595
  %4597 = vrot.lane.b32.xlu0 %v4350, 64
  %v4598 = vpop.permute.xlu0 %4597
  %4603 = vrot.lane.b32.xlu0 %v4351, 96
  %v4604 = vpop.permute.xlu0 %4603
  %4605 = vrot.lane.b32.xlu0 %v4352, 96
  %v4606 = vpop.permute.xlu0 %4605
  %v4609 = vsel %vm908, %v4321, %v4516
  %v4610 = vsel %vm908, %v4322, %v4518
  %v4611 = vsel %vm975, %v4609, %v4524
  %v4612 = vsel %vm975, %v4610, %v4526
  %v4613 = vsel %vm1177, %v4611, %v4532
  %v4614 = vsel %vm1177, %v4612, %v4534
  %v4615 = vsel %vm908, %v4329, %v4540
  %v4616 = vsel %vm908, %v4330, %v4542
  %v4617 = vsel %vm975, %v4615, %v4548
  %v4618 = vsel %vm975, %v4616, %v4550
  %v4619 = vsel %vm1177, %v4617, %v4556
  %v4620 = vsel %vm1177, %v4618, %v4558
  %v4621 = vsel %vm908, %v4337, %v4564
  %v4622 = vsel %vm908, %v4338, %v4566
  %v4623 = vsel %vm975, %v4621, %v4572
  %v4624 = vsel %vm975, %v4622, %v4574
  %v4625 = vsel %vm1177, %v4623, %v4580
  %v4626 = vsel %vm1177, %v4624, %v4582
  %v4627 = vsel %vm908, %v4345, %v4588
  %v4628 = vsel %vm908, %v4346, %v4590
  %v4629 = vsel %vm975, %v4627, %v4596
  %v4630 = vsel %vm975, %v4628, %v4598
  %v4631 = vsel %vm1177, %v4629, %v4604
  %v4632 = vsel %vm1177, %v4630, %v4606
  %v4633 = vpack.c.bf16 %v4614, %v4613
  %v4634 = vpack.c.bf16 %v4620, %v4619
  %v4635 = vpack.c.bf16 %v4626, %v4625
  %v4636 = vpack.c.bf16 %v4632, %v4631
  %v4637 = vld [vmem:[%s5] sm:$0xf]
  %v4638 = vld [vmem:[%s5 + $0x4] sm:$0xf]
  %v4639 = vld [vmem:[%s5 + $0x8] sm:$0xf]
  %v4640 = vld [vmem:[%s5 + $0xc] sm:$0xf]
  %v4641 = vld [vmem:[%s5 + $0x10] sm:$0xf]
  %v4642 = vld [vmem:[%s5 + $0x14] sm:$0xf]
  %v4643 = vld [vmem:[%s5 + $0x18] sm:$0xf]
  %v4644 = vld [vmem:[%s5 + $0x1c] sm:$0xf]
  %v4645 = vld [vmem:[%s5 + $0x20] sm:$0xf]
  %v4646 = vld [vmem:[%s5 + $0x24] sm:$0xf]
  %v4647 = vld [vmem:[%s5 + $0x28] sm:$0xf]
  %v4648 = vld [vmem:[%s5 + $0x2c] sm:$0xf]
  %v4649 = vld [vmem:[%s5 + $0x30] sm:$0xf]
  %v4650 = vld [vmem:[%s5 + $0x34] sm:$0xf]
  %v4651 = vld [vmem:[%s5 + $0x38] sm:$0xf]
  %v4652 = vld [vmem:[%s5 + $0x3c] sm:$0xf]
  %v4653 = vld [vmem:[%s5 + $0x40] sm:$0xf]
  %v4654 = vld [vmem:[%s5 + $0x44] sm:$0xf]
  %v4655 = vld [vmem:[%s5 + $0x48] sm:$0xf]
  %v4656 = vld [vmem:[%s5 + $0x4c] sm:$0xf]
  %v4657 = vld [vmem:[%s5 + $0x50] sm:$0xf]
  %v4658 = vld [vmem:[%s5 + $0x54] sm:$0xf]
  %v4659 = vld [vmem:[%s5 + $0x58] sm:$0xf]
  %v4660 = vld [vmem:[%s5 + $0x5c] sm:$0xf]
  %v4661 = vld [vmem:[%s5 + $0x60] sm:$0xf]
  %v4662 = vld [vmem:[%s5 + $0x64] sm:$0xf]
  %v4663 = vld [vmem:[%s5 + $0x68] sm:$0xf]
  %v4664 = vld [vmem:[%s5 + $0x6c] sm:$0xf]
  %v4665 = vld [vmem:[%s5 + $0x70] sm:$0xf]
  %v4666 = vld [vmem:[%s5 + $0x74] sm:$0xf]
  %v4667 = vld [vmem:[%s5 + $0x78] sm:$0xf]
  %v4668 = vld [vmem:[%s5 + $0x7c] sm:$0xf]
  %v4669 = vld [vmem:[%s5 + $0x80] sm:$0xf]
  %v4670 = vld [vmem:[%s5 + $0x84] sm:$0xf]
  %v4671 = vld [vmem:[%s5 + $0x88] sm:$0xf]
  %v4672 = vld [vmem:[%s5 + $0x8c] sm:$0xf]
  %v4673 = vld [vmem:[%s5 + $0x90] sm:$0xf]
  %v4674 = vld [vmem:[%s5 + $0x94] sm:$0xf]
  %v4675 = vld [vmem:[%s5 + $0x98] sm:$0xf]
  %v4676 = vld [vmem:[%s5 + $0x9c] sm:$0xf]
  %v4677 = vld [vmem:[%s5 + $0xa0] sm:$0xf]
  %v4678 = vld [vmem:[%s5 + $0xa4] sm:$0xf]
  %v4679 = vld [vmem:[%s5 + $0xa8] sm:$0xf]
  %v4680 = vld [vmem:[%s5 + $0xac] sm:$0xf]
  %v4681 = vld [vmem:[%s5 + $0xb0] sm:$0xf]
  %v4682 = vld [vmem:[%s5 + $0xb4] sm:$0xf]
  %v4683 = vld [vmem:[%s5 + $0xb8] sm:$0xf]
  %v4684 = vld [vmem:[%s5 + $0xbc] sm:$0xf]
  %v4685 = vld [vmem:[%s5 + $0xc0] sm:$0xf]
  %v4686 = vld [vmem:[%s5 + $0xc4] sm:$0xf]
  %v4687 = vld [vmem:[%s5 + $0xc8] sm:$0xf]
  %v4688 = vld [vmem:[%s5 + $0xcc] sm:$0xf]
  %v4689 = vld [vmem:[%s5 + $0xd0] sm:$0xf]
  %v4690 = vld [vmem:[%s5 + $0xd4] sm:$0xf]
  %v4691 = vld [vmem:[%s5 + $0xd8] sm:$0xf]
  %v4692 = vld [vmem:[%s5 + $0xdc] sm:$0xf]
  %v4693 = vld [vmem:[%s5 + $0xe0] sm:$0xf]
  %v4694 = vld [vmem:[%s5 + $0xe4] sm:$0xf]
  %v4695 = vld [vmem:[%s5 + $0xe8] sm:$0xf]
  %v4696 = vld [vmem:[%s5 + $0xec] sm:$0xf]
  %v4697 = vld [vmem:[%s5 + $0xf0] sm:$0xf]
  %v4698 = vld [vmem:[%s5 + $0xf4] sm:$0xf]
  %v4699 = vld [vmem:[%s5 + $0xf8] sm:$0xf]
  %v4700 = vld [vmem:[%s5 + $0xfc] sm:$0xf]
  %v4701 = vld [vmem:[%s6] sm:$0x1]
  %v4703 = vlaneseq
  %v4704 = vshrl.u32 %v4703, 7
  %v4705 = vsub.s32 0, %v4704
  %v4706 = vrot.slane %v4701, %v4705
  %v4772 = vunpack.c.l.b16 %v4637
  %v4773 = vunpack.c.l.b16 %v4638
  %v4774 = vunpack.c.l.b16 %v4639
  %v4775 = vunpack.c.l.b16 %v4640
  %v4776 = vunpack.c.l.b16 %v4641
  %v4777 = vunpack.c.l.b16 %v4642
  %v4778 = vunpack.c.l.b16 %v4643
  %v4779 = vunpack.c.l.b16 %v4644
  %v4780 = vunpack.c.l.b16 %v4645
  %v4781 = vunpack.c.l.b16 %v4646
  %v4782 = vunpack.c.l.b16 %v4647
  %v4783 = vunpack.c.l.b16 %v4648
  %v4784 = vunpack.c.l.b16 %v4649
  %v4785 = vunpack.c.l.b16 %v4650
  %v4786 = vunpack.c.l.b16 %v4651
  %v4787 = vunpack.c.l.b16 %v4652
  %v4788 = vunpack.c.l.b16 %v4653
  %v4789 = vunpack.c.l.b16 %v4654
  %v4790 = vunpack.c.l.b16 %v4655
  %v4791 = vunpack.c.l.b16 %v4656
  %v4792 = vunpack.c.l.b16 %v4657
  %v4793 = vunpack.c.l.b16 %v4658
  %v4794 = vunpack.c.l.b16 %v4659
  %v4795 = vunpack.c.l.b16 %v4660
  %v4796 = vunpack.c.l.b16 %v4661
  %v4797 = vunpack.c.l.b16 %v4662
  %v4798 = vunpack.c.l.b16 %v4663
  %v4799 = vunpack.c.l.b16 %v4664
  %v4800 = vunpack.c.l.b16 %v4665
  %v4801 = vunpack.c.l.b16 %v4666
  %v4802 = vunpack.c.l.b16 %v4667
  %v4803 = vunpack.c.l.b16 %v4668
  %v4804 = vunpack.c.l.b16 %v4669
  %v4805 = vunpack.c.l.b16 %v4670
  %v4806 = vunpack.c.l.b16 %v4671
  %v4807 = vunpack.c.l.b16 %v4672
  %v4808 = vunpack.c.l.b16 %v4673
  %v4809 = vunpack.c.l.b16 %v4674
  %v4810 = vunpack.c.l.b16 %v4675
  %v4811 = vunpack.c.l.b16 %v4676
  %v4812 = vunpack.c.l.b16 %v4677
  %v4813 = vunpack.c.l.b16 %v4678
  %v4814 = vunpack.c.l.b16 %v4679
  %v4815 = vunpack.c.l.b16 %v4680
  %v4816 = vunpack.c.l.b16 %v4681
  %v4817 = vunpack.c.l.b16 %v4682
  %v4818 = vunpack.c.l.b16 %v4683
  %v4819 = vunpack.c.l.b16 %v4684
  %v4820 = vunpack.c.l.b16 %v4685
  %v4821 = vunpack.c.l.b16 %v4686
  %v4822 = vunpack.c.l.b16 %v4687
  %v4823 = vunpack.c.l.b16 %v4688
  %v4824 = vunpack.c.l.b16 %v4689
  %v4825 = vunpack.c.l.b16 %v4690
  %v4826 = vunpack.c.l.b16 %v4691
  %v4827 = vunpack.c.l.b16 %v4692
  %v4828 = vunpack.c.l.b16 %v4693
  %v4829 = vunpack.c.l.b16 %v4694
  %v4830 = vunpack.c.l.b16 %v4695
  %v4831 = vunpack.c.l.b16 %v4696
  %v4832 = vunpack.c.l.b16 %v4697
  %v4833 = vunpack.c.l.b16 %v4698
  %v4834 = vunpack.c.l.b16 %v4699
  %v4835 = vunpack.c.l.b16 %v4700
  %v4836 = vpack.c.b16 %v4773, %v4772
  %v4837 = vpack.c.b16 %v4775, %v4774
  %v4838 = vpack.c.b16 %v4777, %v4776
  %v4839 = vpack.c.b16 %v4779, %v4778
  %v4840 = vpack.c.b16 %v4781, %v4780
  %v4841 = vpack.c.b16 %v4783, %v4782
  %v4842 = vpack.c.b16 %v4785, %v4784
  %v4843 = vpack.c.b16 %v4787, %v4786
  %v4844 = vpack.c.b16 %v4789, %v4788
  %v4845 = vpack.c.b16 %v4791, %v4790
  %v4846 = vpack.c.b16 %v4793, %v4792
  %v4847 = vpack.c.b16 %v4795, %v4794
  %v4848 = vpack.c.b16 %v4797, %v4796
  %v4849 = vpack.c.b16 %v4799, %v4798
  %v4850 = vpack.c.b16 %v4801, %v4800
  %v4851 = vpack.c.b16 %v4803, %v4802
  %v4852 = vpack.c.b16 %v4805, %v4804
  %v4853 = vpack.c.b16 %v4807, %v4806
  %v4854 = vpack.c.b16 %v4809, %v4808
  %v4855 = vpack.c.b16 %v4811, %v4810
  %v4856 = vpack.c.b16 %v4813, %v4812
  %v4857 = vpack.c.b16 %v4815, %v4814
  %v4858 = vpack.c.b16 %v4817, %v4816
  %v4859 = vpack.c.b16 %v4819, %v4818
  %v4860 = vpack.c.b16 %v4821, %v4820
  %v4861 = vpack.c.b16 %v4823, %v4822
  %v4862 = vpack.c.b16 %v4825, %v4824
  %v4863 = vpack.c.b16 %v4827, %v4826
  %v4864 = vpack.c.b16 %v4829, %v4828
  %v4865 = vpack.c.b16 %v4831, %v4830
  %v4866 = vpack.c.b16 %v4833, %v4832
  %v4867 = vpack.c.b16 %v4835, %v4834
  %4900 = vmatprep.subr.bf16.mxu0 0
  %4901 = vmatpush1.bf16.msra.mxu0 %v4843
  %4902 = vmatprep.subr.bf16.mxu0 0
  %4903 = vmatpush1.bf16.msra.mxu0 %v4842
  %4904 = vmatprep.subr.bf16.mxu0 0
  %4905 = vmatpush1.bf16.msra.mxu0 %v4841
  %4906 = vmatprep.subr.bf16.mxu0 0
  %4907 = vmatpush1.bf16.msra.mxu0 %v4840
  %4908 = vmatprep.subr.bf16.mxu0 0
  %4909 = vmatpush1.bf16.msra.mxu0 %v4839
  %4910 = vmatprep.subr.bf16.mxu0 0
  %4911 = vmatpush1.bf16.msra.mxu0 %v4838
  %4912 = vmatprep.subr.bf16.mxu0 0
  %4913 = vmatpush1.bf16.msra.mxu0 %v4837
  %4914 = vmatprep.subr.bf16.mxu0 0
  %4915 = vmatpush1.bf16.msra.mxu0 %v4836
  %4916 = vmatprep.subr.bf16.mxu0 0
  %4917 = vmatpush2.bf16.msra.mxu0 %v4851
  %4918 = vmatprep.subr.bf16.mxu0 0
  %4919 = vmatpush2.bf16.msra.mxu0 %v4850
  %4920 = vmatprep.subr.bf16.mxu0 0
  %4921 = vmatpush2.bf16.msra.mxu0 %v4849
  %4922 = vmatprep.subr.bf16.mxu0 0
  %4923 = vmatpush2.bf16.msra.mxu0 %v4848
  %4924 = vmatprep.subr.bf16.mxu0 0
  %4925 = vmatpush2.bf16.msra.mxu0 %v4847
  %4926 = vmatprep.subr.bf16.mxu0 0
  %4927 = vmatpush2.bf16.msra.mxu0 %v4846
  %4928 = vmatprep.subr.bf16.mxu0 0
  %4929 = vmatpush2.bf16.msra.mxu0 %v4845
  %4930 = vmatprep.subr.bf16.mxu0 0
  %4931 = vmatpush2.bf16.msra.mxu0 %v4844
  %4932 = vmatprep.mubr.bf16.mxu0 %v4634
  %4933 = vmatmul.mubr.bf16.gmra.mxu0 %v4633
  %v4934 = vpop.f32.mrf.mxu0
  %v4935 = vadd.f32 %v4706, %v4934
  %v4936 = vpop.f32.mrf.mxu0
  %v4937 = vpop.f32.mrf.mxu0
  %v4938 = vadd.f32 %v4706, %v4937
  %v4939 = vpop.f32.mrf.mxu0
  %4940 = vdwg.mxu0
  %4941 = vmatprep.subr.bf16.mxu0 0
  %4942 = vmatpush1.bf16.msra.mxu0 %v4859
  %4943 = vmatprep.subr.bf16.mxu0 0
  %4944 = vmatpush1.bf16.msra.mxu0 %v4858
  %4945 = vmatprep.subr.bf16.mxu0 0
  %4946 = vmatpush1.bf16.msra.mxu0 %v4857
  %4947 = vmatprep.subr.bf16.mxu0 0
  %4948 = vmatpush1.bf16.msra.mxu0 %v4856
  %4949 = vmatprep.subr.bf16.mxu0 0
  %4950 = vmatpush1.bf16.msra.mxu0 %v4855
  %4951 = vmatprep.subr.bf16.mxu0 0
  %4952 = vmatpush1.bf16.msra.mxu0 %v4854
  %4953 = vmatprep.subr.bf16.mxu0 0
  %4954 = vmatpush1.bf16.msra.mxu0 %v4853
  %4955 = vmatprep.subr.bf16.mxu0 0
  %4956 = vmatpush1.bf16.msra.mxu0 %v4852
  %4957 = vmatprep.subr.bf16.mxu0 0
  %4958 = vmatpush2.bf16.msra.mxu0 %v4867
  %4959 = vmatprep.subr.bf16.mxu0 0
  %4960 = vmatpush2.bf16.msra.mxu0 %v4866
  %4961 = vmatprep.subr.bf16.mxu0 0
  %4962 = vmatpush2.bf16.msra.mxu0 %v4865
  %4963 = vmatprep.subr.bf16.mxu0 0
  %4964 = vmatpush2.bf16.msra.mxu0 %v4864
  %4965 = vmatprep.subr.bf16.mxu0 0
  %4966 = vmatpush2.bf16.msra.mxu0 %v4863
  %4967 = vmatprep.subr.bf16.mxu0 0
  %4968 = vmatpush2.bf16.msra.mxu0 %v4862
  %4969 = vmatprep.subr.bf16.mxu0 0
  %4970 = vmatpush2.bf16.msra.mxu0 %v4861
  %4971 = vmatprep.subr.bf16.mxu0 0
  %4972 = vmatpush2.bf16.msra.mxu0 %v4860
  %4973 = vmatprep.mubr.bf16.mxu0 %v4636
  %4974 = vmatmul.mubr.bf16.gmra.mxu0 %v4635
  %v4975 = vpop.f32.mrf.mxu0
  %v4976 = vadd.f32 %v4935, %v4975
  %v4977 = vpop.f32.mrf.mxu0
  %v4978 = vpop.f32.mrf.mxu0
  %v4979 = vadd.f32 %v4938, %v4978
  %v4980 = vpop.f32.mrf.mxu0
  %4981 = vdwg.mxu0
  %4982 = vst [vmem:[%s7] sm:$0xff] %v4976
  %4983 = vst [vmem:[%s7 + $0x8] sm:$0xff] %v4979
  // Predicated region
  $region30: #{forward.1} parent=0 // pred_check
    _
  $region31: #{forward.1} parent=0 // pred_check_branch
    %4985 = sbr.rel (0) target = $region33
  $region32: #{forward.1} parent=0 // pred_region
    _
  $region33: #{forward.1} parent=0 // pred_fallthru
    _
  // Predicated region
  $region34: #{forward.1} parent=0 // pred_check
    _
  $region35: #{forward.1} parent=0 // pred_check_branch
    %4987 = sbr.rel (0) target = $region37
  $region36: #{forward.1} parent=0 // pred_region
    _
  $region37: #{forward.1} parent=0 // pred_fallthru
    _

</llo_original>
